<compile_context>
chip_gen: v7x
topology: tpu7x:2x2x1
jax: 0.10.0
libtpu: 0.0.40
codegen_flags: <defaults>
</compile_context>

<pallas_src>
import jax
import jax.numpy as jnp
from jax.experimental import pallas as pl
from jax.experimental.pallas import tpu as pltpu


def _round_up(x, m):
    return ((x + m - 1) // m) * m


def make_cpc_kernel(num_heads, d_model, d_pad, dk_pad, seq_len, batch_blk):
    """SASRec encoder block + CPC scoring; one (batch block, layer) per grid step."""
    H = num_heads
    D = d_model          # real (unpadded) feature width -> LayerNorm divisor
    Dp = d_pad           # D zero-padded to a multiple of 128
    dkp = dk_pad         # per-head width zero-padded to a multiple of 128
    L = seq_len
    Bb = batch_blk
    M = Bb * L
    NEG_INF = -1e9
    LN_EPS = 1e-12
    inv_D = 1.0 / float(D)

    def layernorm(v, g, b):
        # Padded feature columns of v are identically zero, so sums over Dp == sums over D.
        s1 = jnp.sum(v, axis=-1, keepdims=True)
        s2 = jnp.sum(v * v, axis=-1, keepdims=True)
        mu = s1 * inv_D
        var = s2 * inv_D - mu * mu
        # g, b are zero in padded columns -> padded columns stay exactly zero.
        return (v - mu) * jax.lax.rsqrt(var + LN_EPS) * g + b

    def softplus(z):  # numerically stable log(1 + exp(z))
        return jnp.maximum(z, 0.0) + jnp.log(1.0 + jnp.exp(-jnp.abs(z)))

    def kernel(x_ref, pe_ref, lm_ref,
               ln0g_ref, ln0b_ref,
               ln1g_ref, ln1b_ref, wqkv_ref, bqkv_ref, wo_ref, bo_ref,
               ln2g_ref, ln2b_ref, w1_ref, b1_ref, w2_ref, b2_ref,
               tpos_ref, tneg_ref,
               out_ref,
               h_ref, mask_ref):
        li = pl.program_id(1)
        n_layers = pl.num_programs(1)

        # ---- once per batch block: pos-emb add + input LN + causal/padding mask ----
        @pl.when(li == 0)
        def _():
            xp = x_ref[...] + pe_ref[...]                            # (Bb, L, Dp)
            h_ref[...] = layernorm(xp.reshape(M, Dp),
                                   ln0g_ref[...], ln0b_ref[...])
            row = jax.lax.broadcasted_iota(jnp.int32, (L, L), 0)
            col = jax.lax.broadcasted_iota(jnp.int32, (L, L), 1)
            causal = (col <= row)[None, :, :]                        # (1, L, L)
            keypad = lm_ref[...] != 0.0                              # (Bb, 1, L)
            mask_ref[...] = jnp.where(causal & keypad, 0.0, NEG_INF).astype(jnp.float32)

        # ---- transformer block `li` (pre-LN, residual) ----
        h = h_ref[...]                                               # (M, Dp) f32
        hn = layernorm(h, ln1g_ref[...], ln1b_ref[...])
        # fused QKV projection (bf16 MXU, f32 accumulation); 1/sqrt(dk) folded into Q
        qkv = jnp.dot(hn.astype(jnp.bfloat16), wqkv_ref[...],
                      preferred_element_type=jnp.float32) + bqkv_ref[...]   # (M, 3*H*dkp)
        qkv_b = qkv.reshape(Bb, L, 3 * H * dkp).astype(jnp.bfloat16)        # single bf16 pack
        att_mask = mask_ref[...]                                             # (Bb, L, L)

        attn = jnp.zeros((M, Dp), jnp.float32)
        for hh in range(H):                                          # static head loop
            qo = hh * dkp
            ko = (H + hh) * dkp
            vo = (2 * H + hh) * dkp
            q3 = qkv_b[:, :, qo:qo + dkp]                            # 128-lane aligned slices
            k3 = qkv_b[:, :, ko:ko + dkp]
            v3 = qkv_b[:, :, vo:vo + dkp]
            s = jax.lax.dot_general(q3, k3, (((2,), (2,)), ((0,), (0,))),
                                    preferred_element_type=jnp.float32)      # (Bb, L, L)
            s = s + att_mask
            s = s - jnp.max(s, axis=-1, keepdims=True)
            p = jnp.exp(s)
            p = p * pl.reciprocal(jnp.sum(p, axis=-1, keepdims=True), approx=True)
            ctx = jax.lax.dot_general(p.astype(jnp.bfloat16), v3,
                                      (((2,), (1,)), ((0,), (0,))),
                                      preferred_element_type=jnp.float32)    # (Bb, L, dkp)
            # fold the output projection into the head loop (no ctx slab / partial stores)
            attn = attn + jnp.dot(ctx.reshape(M, dkp).astype(jnp.bfloat16),
                                  wo_ref[hh * dkp:(hh + 1) * dkp, :],
                                  preferred_element_type=jnp.float32)
        h = h + attn + bo_ref[...]

        hn2 = layernorm(h, ln2g_ref[...], ln2b_ref[...])
        ff = jnp.dot(hn2.astype(jnp.bfloat16), w1_ref[...],
                     preferred_element_type=jnp.float32) + b1_ref[...]
        ff = jax.nn.gelu(ff, approximate=True)
        ff = jnp.dot(ff.astype(jnp.bfloat16), w2_ref[...],
                     preferred_element_type=jnp.float32) + b2_ref[...]
        h = h + ff
        h_ref[...] = h

        # ---- final layer: CPC scoring on last position + per-example BCE terms ----
        @pl.when(li == n_layers - 1)
        def _():
            prec3 = h.reshape(Bb, L, Dp)[:, L - 1:L, :]              # (Bb, 1, Dp)
            pos_score = jnp.sum(prec3 * tpos_ref[...], axis=-1)      # (Bb, 1)
            neg_score = jnp.sum(prec3 * tneg_ref[...], axis=-1)      # (Bb, 1)
            out_ref[0] = softplus(-pos_score) + softplus(neg_score)  # (Bb, 1)

    return kernel


def init_params(key, item_num, max_seq_len, d_model, n_layers):
    d_ffn = 4 * d_model
    ks = jax.random.split(key, 8)
    xavier_std = (2.0 / float(item_num + 1 + d_model)) ** 0.5

    def w(k, shape):
        return 0.02 * jax.random.normal(k, shape, jnp.float32)

    return {
        "id_embedding": xavier_std * jax.random.normal(
            ks[0], (item_num + 1, d_model), jnp.float32),
        "pos_embedding": 0.02 * jax.random.normal(
            ks[1], (max_seq_len, d_model), jnp.float32),
        "ln0_g": jnp.ones((1, d_model), jnp.float32),
        "ln0_b": jnp.zeros((1, d_model), jnp.float32),
        "ln1_g": jnp.ones((n_layers, 1, d_model), jnp.float32),
        "ln1_b": jnp.zeros((n_layers, 1, d_model), jnp.float32),
        "wq": w(ks[2], (n_layers, d_model, d_model)),
        "bq": jnp.zeros((n_layers, 1, d_model), jnp.float32),
        "wk": w(ks[3], (n_layers, d_model, d_model)),
        "bk": jnp.zeros((n_layers, 1, d_model), jnp.float32),
        "wv": w(ks[4], (n_layers, d_model, d_model)),
        "bv": jnp.zeros((n_layers, 1, d_model), jnp.float32),
        "wo": w(ks[5], (n_layers, d_model, d_model)),
        "bo": jnp.zeros((n_layers, 1, d_model), jnp.float32),
        "ln2_g": jnp.ones((n_layers, 1, d_model), jnp.float32),
        "ln2_b": jnp.zeros((n_layers, 1, d_model), jnp.float32),
        "w1": w(ks[6], (n_layers, d_model, d_ffn)),
        "b1": jnp.zeros((n_layers, 1, d_ffn), jnp.float32),
        "w2": w(ks[7], (n_layers, d_ffn, d_model)),
        "b2": jnp.zeros((n_layers, 1, d_model), jnp.float32),
    }


def model_cpc_forward(params, sample_items, log_mask, *, d_model, n_heads, n_layers):
    """Glue (embedding gather, pos/neg split, lane padding, weight fusion) + Pallas call."""
    B, L = log_mask.shape
    D = d_model
    H = n_heads
    NL = n_layers
    assert D % H == 0
    dk = D // H
    scale = 1.0 / float(dk) ** 0.5

    Dp = _round_up(D, 128)          # explicit zero-padding -> unmasked, lane-dense tiles
    dkp = _round_up(dk, 128)        # per-head slab width (128-lane aligned slices)
    Dffn = 4 * D
    Dffn_p = _round_up(Dffn, 128)

    # --- glue: embedding lookup, pos/neg split, CPC targets ---
    emb = jnp.take(params["id_embedding"], sample_items, axis=0)
    embs = emb.reshape(B, L + 1, 2, D)
    pos_items = embs[:, :, 0]                                   # (B, L+1, D)
    neg_items = embs[:, :, 1]                                   # (B, L+1, D)

    def padD(a):
        return jnp.pad(a, [(0, 0)] * (a.ndim - 1) + [(0, Dp - D)])

    input_logs = padD(pos_items[:, :-1, :])                     # (B, L, Dp)
    # target_pos_embs[:, -1] == pos_items[:, L];  target_neg_embs[:, -1] == neg_items[:, L-1]
    tpos_last = padD(pos_items[:, -1, :]).reshape(B, 1, Dp)
    tneg_last = padD(neg_items[:, L - 1, :]).reshape(B, 1, Dp)
    pos_table = padD(params["pos_embedding"])                   # (L, Dp)
    lm = log_mask.astype(jnp.float32).reshape(B, 1, L)

    # zero-pad LN/bias params so padded feature columns stay exactly zero
    ln0g, ln0b = padD(params["ln0_g"]), padD(params["ln0_b"])
    ln1g, ln1b = padD(params["ln1_g"]), padD(params["ln1_b"])
    ln2g, ln2b = padD(params["ln2_g"]), padD(params["ln2_b"])
    bo = padD(params["bo"])
    b2 = padD(params["b2"])
    b1 = jnp.pad(params["b1"], [(0, 0), (0, 0), (0, Dffn_p - Dffn)])

    # head-padded, fused QKV layout: Q/K/V segments of H slabs of width dkp each,
    # so every in-kernel head slice starts on a 128-lane boundary.
    def head_slab(w, s=1.0):                    # (NL, D, D) -> (NL, Dp, H*dkp)
        cols = []
        for h in range(H):
            wh = w[:, :, h * dk:(h + 1) * dk] * s
            cols.append(jnp.pad(wh, [(0, 0), (0, Dp - D), (0, dkp - dk)]))
        return jnp.concatenate(cols, axis=-1)

    def head_bias(b, s=1.0):                    # (NL, 1, D) -> (NL, 1, H*dkp)
        cols = []
        for h in range(H):
            bh = b[:, :, h * dk:(h + 1) * dk] * s
            cols.append(jnp.pad(bh, [(0, 0), (0, 0), (0, dkp - dk)]))
        return jnp.concatenate(cols, axis=-1)

    def wo_slab(w):                             # (NL, D, D) -> (NL, H*dkp, Dp)
        rows = []
        for h in range(H):
            wh = w[:, h * dk:(h + 1) * dk, :]
            rows.append(jnp.pad(wh, [(0, 0), (0, dkp - dk), (0, Dp - D)]))
        return jnp.concatenate(rows, axis=1)

    # 1/sqrt(dk) folded into Q weights/bias; matmul weights in bf16 (f32 acc in-kernel)
    wqkv = jnp.concatenate([head_slab(params["wq"], scale),
                            head_slab(params["wk"]),
                            head_slab(params["wv"])], axis=-1).astype(jnp.bfloat16)
    bqkv = jnp.concatenate([head_bias(params["bq"], scale),
                            head_bias(params["bk"]),
                            head_bias(params["bv"])], axis=-1)
    wo = wo_slab(params["wo"]).astype(jnp.bfloat16)
    w1 = jnp.pad(params["w1"],
                 [(0, 0), (0, Dp - D), (0, Dffn_p - Dffn)]).astype(jnp.bfloat16)
    w2 = jnp.pad(params["w2"],
                 [(0, 0), (0, Dffn_p - Dffn), (0, Dp - D)]).astype(jnp.bfloat16)

    # --- batch blocking: target GEMM M = bblk*L ~ 256 rows ---
    target_rows = 256
    bblk = max(1, min(B, max(1, target_rows // max(L, 1))))
    while B % bblk != 0:
        bblk -= 1
    nblk = B // bblk

    kernel = make_cpc_kernel(H, D, Dp, dkp, L, bblk)

    def per_block(shape):            # batch-blocked leading dim, rest full
        nd = len(shape)
        return pl.BlockSpec((bblk,) + tuple(shape[1:]),
                            lambda b, l: (b,) + (0,) * (nd - 1))

    def per_layer(shape):            # layer-blocked (squeezed) leading dim -> per-layer prefetch
        nd = len(shape)
        return pl.BlockSpec((None,) + tuple(shape[1:]),
                            lambda b, l: (l,) + (0,) * (nd - 1))

    def shared(shape):               # single block, fetched once
        nd = len(shape)
        return pl.BlockSpec(tuple(shape), lambda b, l: (0,) * nd)

    inputs = (input_logs, pos_table, lm,
              ln0g, ln0b,
              ln1g, ln1b, wqkv, bqkv, wo, bo,
              ln2g, ln2b, w1, b1, w2, b2,
              tpos_last, tneg_last)
    in_specs = [
        per_block(input_logs.shape),                  # x        (B, L, Dp)
        shared(pos_table.shape),                      # pos tbl  (L, Dp)
        per_block(lm.shape),                          # log_mask (B, 1, L)
        shared(ln0g.shape), shared(ln0b.shape),
        per_layer(ln1g.shape), per_layer(ln1b.shape),
        per_layer(wqkv.shape), per_layer(bqkv.shape),
        per_layer(wo.shape), per_layer(bo.shape),
        per_layer(ln2g.shape), per_layer(ln2b.shape),
        per_layer(w1.shape), per_layer(b1.shape),
        per_layer(w2.shape), per_layer(b2.shape),
        per_block(tpos_last.shape),                   # (B, 1, Dp)
        per_block(tneg_last.shape),                   # (B, 1, Dp)
    ]

    # --- explicit VMEM budget (double-buffered per-layer weights + IO + scratch) ---
    bf16_b, f32_b = 2, 4
    per_layer_bytes = (bf16_b * (Dp * 3 * H * dkp + H * dkp * Dp + Dp * Dffn_p + Dffn_p * Dp)
                       + f32_b * (3 * H * dkp + 5 * Dp + Dffn_p))
    io_bytes = f32_b * 2 * (bblk * L * Dp + bblk * L + L * Dp + 2 * Dp
                            + 2 * bblk * Dp + bblk)
    scratch_bytes = f32_b * (bblk * L * Dp + bblk * L * L)
    vmem_need = 2 * per_layer_bytes + io_bytes + scratch_bytes
    vmem_limit = int(min(max(2 * vmem_need, 16 * 2 ** 20), 64 * 2 ** 20))  # v7x-safe cap

    grid_spec = pltpu.PrefetchScalarGridSpec(
        num_scalar_prefetch=0,
        grid=(nblk, NL),                              # batch blocks (parallel), layers (arbitrary)
        in_specs=in_specs,
        out_specs=pl.BlockSpec((1, bblk, 1), lambda b, l: (b, 0, 0)),
        scratch_shapes=[pltpu.VMEM((bblk * L, Dp), jnp.float32),   # hidden-state carry
                        pltpu.VMEM((bblk, L, L), jnp.float32)])    # additive attn mask

    per_example_loss = pl.pallas_call(
        kernel,
        out_shape=jax.ShapeDtypeStruct((nblk, bblk, 1), jnp.float32),
        grid_spec=grid_spec,
        compiler_params=pltpu.CompilerParams(
            dimension_semantics=("parallel", "arbitrary"),
            vmem_limit_bytes=vmem_limit),
    )(*inputs)

    # BCE(pos,1).mean + BCE(neg,0).mean == mean over batch of per-example sums.
    return jnp.mean(per_example_loss)


if __name__ == "__main__":
    B = 2
    MAX_SEQ_LEN = 8          # -> L = 8, sequences of length L+1 = 9 (pos/neg pairs)
    D = 32                   # embedding_dim
    H = 2                    # num_attention_heads
    NL = 2                   # transformer_block
    ITEM_NUM = 50

    key = jax.random.PRNGKey(0)
    pkey, ikey = jax.random.split(key)
    params = init_params(pkey, ITEM_NUM, MAX_SEQ_LEN, D, NL)

    # sample_items: flattened (B * (max_seq_len+1) * 2,) item ids in [1, ITEM_NUM]
    sample_items = jax.random.randint(
        ikey, (B * (MAX_SEQ_LEN + 1) * 2,), 1, ITEM_NUM + 1, dtype=jnp.int32)
    # log_mask: (B, max_seq_len), 0 marks padded positions
    log_mask = jnp.array([[0, 0, 0, 1, 1, 1, 1, 1],
                          [1, 1, 1, 1, 1, 1, 1, 1]], dtype=jnp.float32)

    loss = model_cpc_forward(params, sample_items, log_mask,
                             d_model=D, n_heads=H, n_layers=NL)
    jax.block_until_ready(loss)
    print("KERNEL_OK")
</pallas_src>

<mosaic_0001>
module attributes {stable_mosaic.version = 11 : i64} {
  func.func @kernel(%arg0: i32, %arg1: i32, %arg2: memref<2x8x128xf32, #tpu.memory_space<vmem>>, %arg3: memref<8x128xf32, #tpu.memory_space<vmem>>, %arg4: memref<2x1x8xf32, #tpu.memory_space<vmem>>, %arg5: memref<1x128xf32, #tpu.memory_space<vmem>>, %arg6: memref<1x128xf32, #tpu.memory_space<vmem>>, %arg7: memref<1x1x128xf32, #tpu.memory_space<vmem>>, %arg8: memref<1x1x128xf32, #tpu.memory_space<vmem>>, %arg9: memref<1x128x768xbf16, #tpu.memory_space<vmem>>, %arg10: memref<1x1x768xf32, #tpu.memory_space<vmem>>, %arg11: memref<1x256x128xbf16, #tpu.memory_space<vmem>>, %arg12: memref<1x1x128xf32, #tpu.memory_space<vmem>>, %arg13: memref<1x1x128xf32, #tpu.memory_space<vmem>>, %arg14: memref<1x1x128xf32, #tpu.memory_space<vmem>>, %arg15: memref<1x128x128xbf16, #tpu.memory_space<vmem>>, %arg16: memref<1x1x128xf32, #tpu.memory_space<vmem>>, %arg17: memref<1x128x128xbf16, #tpu.memory_space<vmem>>, %arg18: memref<1x1x128xf32, #tpu.memory_space<vmem>>, %arg19: memref<2x1x128xf32, #tpu.memory_space<vmem>>, %arg20: memref<2x1x128xf32, #tpu.memory_space<vmem>>, %arg21: memref<1x2x1xf32, #tpu.memory_space<vmem>>, %arg22: memref<16x128xf32, #tpu.memory_space<vmem>>, %arg23: memref<2x8x8xf32, #tpu.memory_space<vmem>>) attributes {dimension_semantics = [#tpu.dimension_semantics<parallel>, #tpu.dimension_semantics<arbitrary>], iteration_bounds = array<i64: 1, 2>, scalar_prefetch = 0 : i64, scratch_operands = 2 : i64, tpu.core_type = #tpu.core_type<tc>, window_params = [{transform_indices = @transform_0, window_bounds = array<i64: 2, 8, 128>}, {pipeline_mode = #tpu.pipeline_mode<synchronous>, transform_indices = @transform_1, window_bounds = array<i64: 8, 128>}, {transform_indices = @transform_2, window_bounds = array<i64: 2, 1, 8>}, {pipeline_mode = #tpu.pipeline_mode<synchronous>, transform_indices = @transform_3, window_bounds = array<i64: 1, 128>}, {pipeline_mode = #tpu.pipeline_mode<synchronous>, transform_indices = @transform_4, window_bounds = array<i64: 1, 128>}, {transform_indices = @transform_5, window_bounds = array<i64: 1, 1, 128>}, {transform_indices = @transform_6, window_bounds = array<i64: 1, 1, 128>}, {transform_indices = @transform_7, window_bounds = array<i64: 1, 128, 768>}, {transform_indices = @transform_8, window_bounds = array<i64: 1, 1, 768>}, {transform_indices = @transform_9, window_bounds = array<i64: 1, 256, 128>}, {transform_indices = @transform_10, window_bounds = array<i64: 1, 1, 128>}, {transform_indices = @transform_11, window_bounds = array<i64: 1, 1, 128>}, {transform_indices = @transform_12, window_bounds = array<i64: 1, 1, 128>}, {transform_indices = @transform_13, window_bounds = array<i64: 1, 128, 128>}, {transform_indices = @transform_14, window_bounds = array<i64: 1, 1, 128>}, {transform_indices = @transform_15, window_bounds = array<i64: 1, 128, 128>}, {transform_indices = @transform_16, window_bounds = array<i64: 1, 1, 128>}, {transform_indices = @transform_17, window_bounds = array<i64: 2, 1, 128>}, {transform_indices = @transform_18, window_bounds = array<i64: 2, 1, 128>}, {transform_indices = @transform_19, window_bounds = array<i64: 1, 2, 1>}]} {
    %c0_i32 = arith.constant 0 : i32
    %0 = arith.cmpi eq, %arg1, %c0_i32 : i32
    %1 = arith.extui %0 : i1 to i32
    %c0_i32_0 = arith.constant 0 : i32
    %2 = arith.cmpi ne, %1, %c0_i32_0 : i32
    scf.if %2 {
      %c0_73 = arith.constant 0 : index
      %c0_74 = arith.constant 0 : index
      %c0_75 = arith.constant 0 : index
      %153 = vector.load %arg2[%c0_73, %c0_74, %c0_75] : memref<2x8x128xf32, #tpu.memory_space<vmem>>, vector<2x8x128xf32>
      %c0_76 = arith.constant 0 : index
      %c0_77 = arith.constant 0 : index
      %154 = vector.load %arg3[%c0_76, %c0_77] : memref<8x128xf32, #tpu.memory_space<vmem>>, vector<8x128xf32>
      %155 = vector.shape_cast %154 : vector<8x128xf32> to vector<1x8x128xf32>
      %156 = vector.broadcast %155 : vector<1x8x128xf32> to vector<2x8x128xf32>
      %157 = arith.addf %153, %156 : vector<2x8x128xf32>
      %158 = vector.shape_cast %157 : vector<2x8x128xf32> to vector<16x128xf32>
      %c0_78 = arith.constant 0 : index
      %c0_79 = arith.constant 0 : index
      %159 = vector.load %arg5[%c0_78, %c0_79] : memref<1x128xf32, #tpu.memory_space<vmem>>, vector<1x128xf32>
      %c0_80 = arith.constant 0 : index
      %c0_81 = arith.constant 0 : index
      %160 = vector.load %arg6[%c0_80, %c0_81] : memref<1x128xf32, #tpu.memory_space<vmem>>, vector<1x128xf32>
      %cst_82 = arith.constant dense<0.000000e+00> : vector<16xf32>
      %161 = vector.multi_reduction <add>, %158, %cst_82 [1] : vector<16x128xf32> to vector<16xf32>
      %162 = vector.shape_cast %161 : vector<16xf32> to vector<16x1xf32>
      %163 = arith.mulf %158, %158 : vector<16x128xf32>
      %cst_83 = arith.constant dense<0.000000e+00> : vector<16xf32>
      %164 = vector.multi_reduction <add>, %163, %cst_83 [1] : vector<16x128xf32> to vector<16xf32>
      %165 = vector.shape_cast %164 : vector<16xf32> to vector<16x1xf32>
      %cst_84 = arith.constant 3.125000e-02 : f32
      %166 = vector.broadcast %cst_84 : f32 to vector<16x1xf32>
      %167 = arith.mulf %162, %166 : vector<16x1xf32>
      %cst_85 = arith.constant 3.125000e-02 : f32
      %168 = vector.broadcast %cst_85 : f32 to vector<16x1xf32>
      %169 = arith.mulf %165, %168 : vector<16x1xf32>
      %170 = arith.mulf %167, %167 : vector<16x1xf32>
      %171 = arith.subf %169, %170 : vector<16x1xf32>
      %172 = vector.broadcast %167 : vector<16x1xf32> to vector<16x128xf32>
      %173 = arith.subf %158, %172 : vector<16x128xf32>
      %cst_86 = arith.constant 9.99999996E-13 : f32
      %174 = vector.broadcast %cst_86 : f32 to vector<16x1xf32>
      %175 = arith.addf %171, %174 : vector<16x1xf32>
      %176 = math.rsqrt %175 : vector<16x1xf32>
      %177 = vector.broadcast %176 : vector<16x1xf32> to vector<16x128xf32>
      %178 = arith.mulf %173, %177 : vector<16x128xf32>
      %179 = vector.broadcast %159 : vector<1x128xf32> to vector<16x128xf32>
      %180 = arith.mulf %178, %179 : vector<16x128xf32>
      %181 = vector.broadcast %160 : vector<1x128xf32> to vector<16x128xf32>
      %182 = arith.addf %180, %181 : vector<16x128xf32>
      %c0_87 = arith.constant 0 : index
      %c0_88 = arith.constant 0 : index
      %183 = vector.load %arg22[%c0_87, %c0_88] : memref<16x128xf32, #tpu.memory_space<vmem>>, vector<16x128xf32>
      tpu.vector_store %arg22[%c0_87, %c0_88], %182 {strides = array<i32>} : memref<16x128xf32, #tpu.memory_space<vmem>>, vector<16x128xf32>,
      %184 = tpu.iota {dimensions = array<i32: 0>} : vector<8x8xi32>
      %185 = tpu.iota {dimensions = array<i32: 1>} : vector<8x8xi32>
      %186 = arith.cmpi sle, %185, %184 : vector<8x8xi32>
      %187 = vector.shape_cast %186 : vector<8x8xi1> to vector<1x8x8xi1>
      %c0_89 = arith.constant 0 : index
      %c0_90 = arith.constant 0 : index
      %c0_91 = arith.constant 0 : index
      %188 = vector.load %arg4[%c0_89, %c0_90, %c0_91] : memref<2x1x8xf32, #tpu.memory_space<vmem>>, vector<2x1x8xf32>
      %cst_92 = arith.constant 0.000000e+00 : f32
      %189 = vector.broadcast %cst_92 : f32 to vector<2x1x8xf32>
      %190 = arith.cmpf one, %188, %189 : vector<2x1x8xf32>
      %191 = vector.broadcast %187 : vector<1x8x8xi1> to vector<2x8x8xi1>
      %192 = vector.broadcast %190 : vector<2x1x8xi1> to vector<2x8x8xi1>
      %193 = arith.andi %191, %192 : vector<2x8x8xi1>
      %cst_93 = arith.constant 0.000000e+00 : f32
      %cst_94 = arith.constant -1.000000e+09 : f32
      %194 = vector.broadcast %cst_93 : f32 to vector<2x8x8xf32>
      %195 = vector.broadcast %cst_94 : f32 to vector<2x8x8xf32>
      %196 = arith.select %193, %194, %195 : vector<2x8x8xi1>, vector<2x8x8xf32>
      %c0_95 = arith.constant 0 : index
      %c0_96 = arith.constant 0 : index
      %c0_97 = arith.constant 0 : index
      %197 = vector.load %arg23[%c0_95, %c0_96, %c0_97] : memref<2x8x8xf32, #tpu.memory_space<vmem>>, vector<2x8x8xf32>
      tpu.vector_store %arg23[%c0_95, %c0_96, %c0_97], %196 {strides = array<i32>} : memref<2x8x8xf32, #tpu.memory_space<vmem>>, vector<2x8x8xf32>,
    } else {
    }
    %c0 = arith.constant 0 : index
    %c0_1 = arith.constant 0 : index
    %3 = vector.load %arg22[%c0, %c0_1] : memref<16x128xf32, #tpu.memory_space<vmem>>, vector<16x128xf32>
    %c0_2 = arith.constant 0 : index
    %c0_3 = arith.constant 0 : index
    %c0_4 = arith.constant 0 : index
    %4 = vector.load %arg7[%c0_2, %c0_3, %c0_4] : memref<1x1x128xf32, #tpu.memory_space<vmem>>, vector<1x1x128xf32>
    %5 = vector.shape_cast %4 : vector<1x1x128xf32> to vector<1x128xf32>
    %c0_5 = arith.constant 0 : index
    %c0_6 = arith.constant 0 : index
    %c0_7 = arith.constant 0 : index
    %6 = vector.load %arg8[%c0_5, %c0_6, %c0_7] : memref<1x1x128xf32, #tpu.memory_space<vmem>>, vector<1x1x128xf32>
    %7 = vector.shape_cast %6 : vector<1x1x128xf32> to vector<1x128xf32>
    %cst = arith.constant dense<0.000000e+00> : vector<16xf32>
    %8 = vector.multi_reduction <add>, %3, %cst [1] : vector<16x128xf32> to vector<16xf32>
    %9 = vector.shape_cast %8 : vector<16xf32> to vector<16x1xf32>
    %10 = arith.mulf %3, %3 : vector<16x128xf32>
    %cst_8 = arith.constant dense<0.000000e+00> : vector<16xf32>
    %11 = vector.multi_reduction <add>, %10, %cst_8 [1] : vector<16x128xf32> to vector<16xf32>
    %12 = vector.shape_cast %11 : vector<16xf32> to vector<16x1xf32>
    %cst_9 = arith.constant 3.125000e-02 : f32
    %13 = vector.broadcast %cst_9 : f32 to vector<16x1xf32>
    %14 = arith.mulf %9, %13 : vector<16x1xf32>
    %cst_10 = arith.constant 3.125000e-02 : f32
    %15 = vector.broadcast %cst_10 : f32 to vector<16x1xf32>
    %16 = arith.mulf %12, %15 : vector<16x1xf32>
    %17 = arith.mulf %14, %14 : vector<16x1xf32>
    %18 = arith.subf %16, %17 : vector<16x1xf32>
    %19 = vector.broadcast %14 : vector<16x1xf32> to vector<16x128xf32>
    %20 = arith.subf %3, %19 : vector<16x128xf32>
    %cst_11 = arith.constant 9.99999996E-13 : f32
    %21 = vector.broadcast %cst_11 : f32 to vector<16x1xf32>
    %22 = arith.addf %18, %21 : vector<16x1xf32>
    %23 = math.rsqrt %22 : vector<16x1xf32>
    %24 = vector.broadcast %23 : vector<16x1xf32> to vector<16x128xf32>
    %25 = arith.mulf %20, %24 : vector<16x128xf32>
    %26 = vector.broadcast %5 : vector<1x128xf32> to vector<16x128xf32>
    %27 = arith.mulf %25, %26 : vector<16x128xf32>
    %28 = vector.broadcast %7 : vector<1x128xf32> to vector<16x128xf32>
    %29 = arith.addf %27, %28 : vector<16x128xf32>
    %30 = arith.truncf %29 : vector<16x128xf32> to vector<16x128xbf16>
    %c0_12 = arith.constant 0 : index
    %c0_13 = arith.constant 0 : index
    %c0_14 = arith.constant 0 : index
    %31 = vector.load %arg9[%c0_12, %c0_13, %c0_14] : memref<1x128x768xbf16, #tpu.memory_space<vmem>>, vector<1x128x768xbf16>
    %32 = vector.shape_cast %31 : vector<1x128x768xbf16> to vector<128x768xbf16>
    %cst_15 = arith.constant dense<0.000000e+00> : vector<16x768xf32>
    %33 = tpu.matmul %30, %32, %cst_15 {dimension_numbers = #tpu.dot_dimension_numbers<[1], [0], [0], [1], [0, 0, 1, 1], [], []>} : vector<16x128xbf16>, vector<128x768xbf16>, vector<16x768xf32> -> vector<16x768xf32>
    %c0_16 = arith.constant 0 : index
    %c0_17 = arith.constant 0 : index
    %c0_18 = arith.constant 0 : index
    %34 = vector.load %arg10[%c0_16, %c0_17, %c0_18] : memref<1x1x768xf32, #tpu.memory_space<vmem>>, vector<1x1x768xf32>
    %35 = vector.shape_cast %34 : vector<1x1x768xf32> to vector<1x768xf32>
    %36 = vector.broadcast %35 : vector<1x768xf32> to vector<16x768xf32>
    %37 = arith.addf %33, %36 : vector<16x768xf32>
    %38 = vector.shape_cast %37 : vector<16x768xf32> to vector<2x8x768xf32>
    %39 = arith.truncf %38 : vector<2x8x768xf32> to vector<2x8x768xbf16>
    %c0_19 = arith.constant 0 : index
    %c0_20 = arith.constant 0 : index
    %c0_21 = arith.constant 0 : index
    %40 = vector.load %arg23[%c0_19, %c0_20, %c0_21] : memref<2x8x8xf32, #tpu.memory_space<vmem>>, vector<2x8x8xf32>
    %cst_22 = arith.constant 0.000000e+00 : f32
    %41 = vector.broadcast %cst_22 : f32 to vector<16x128xf32>
    %42 = vector.extract_strided_slice %39 {offsets = [0, 0, 0], sizes = [2, 8, 128], strides = [1, 1, 1]} : vector<2x8x768xbf16> to vector<2x8x128xbf16>
    %43 = vector.extract_strided_slice %39 {offsets = [0, 0, 256], sizes = [2, 8, 128], strides = [1, 1, 1]} : vector<2x8x768xbf16> to vector<2x8x128xbf16>
    %44 = vector.extract_strided_slice %39 {offsets = [0, 0, 512], sizes = [2, 8, 128], strides = [1, 1, 1]} : vector<2x8x768xbf16> to vector<2x8x128xbf16>
    %cst_23 = arith.constant dense<0.000000e+00> : vector<2x8x8xf32>
    %45 = tpu.matmul %42, %43, %cst_23 {dimension_numbers = #tpu.dot_dimension_numbers<[2], [2], [1], [1], [0, 0, 0, 1, 1, 1], [0], [0]>} : vector<2x8x128xbf16>, vector<2x8x128xbf16>, vector<2x8x8xf32> -> vector<2x8x8xf32>
    %46 = arith.addf %45, %40 : vector<2x8x8xf32>
    %cst_24 = arith.constant dense<0xFF800000> : vector<2x8xf32>
    %47 = vector.multi_reduction <maximumf>, %46, %cst_24 [2] : vector<2x8x8xf32> to vector<2x8xf32>
    %48 = vector.shape_cast %47 : vector<2x8xf32> to vector<2x8x1xf32>
    %49 = vector.broadcast %48 : vector<2x8x1xf32> to vector<2x8x8xf32>
    %50 = arith.subf %46, %49 : vector<2x8x8xf32>
    %51 = math.exp %50 : vector<2x8x8xf32>
    %cst_25 = arith.constant dense<0.000000e+00> : vector<2x8xf32>
    %52 = vector.multi_reduction <add>, %51, %cst_25 [2] : vector<2x8x8xf32> to vector<2x8xf32>
    %53 = vector.shape_cast %52 : vector<2x8xf32> to vector<2x8x1xf32>
    %54 = tpu.reciprocal %53 {approx = true} : vector<2x8x1xf32> -> vector<2x8x1xf32>
    %55 = vector.broadcast %54 : vector<2x8x1xf32> to vector<2x8x8xf32>
    %56 = arith.mulf %51, %55 : vector<2x8x8xf32>
    %57 = arith.truncf %56 : vector<2x8x8xf32> to vector<2x8x8xbf16>
    %cst_26 = arith.constant dense<0.000000e+00> : vector<2x8x128xf32>
    %58 = tpu.matmul %57, %44, %cst_26 {dimension_numbers = #tpu.dot_dimension_numbers<[2], [1], [1], [2], [0, 0, 0, 1, 1, 2], [0], [0]>} : vector<2x8x8xbf16>, vector<2x8x128xbf16>, vector<2x8x128xf32> -> vector<2x8x128xf32>
    %59 = vector.shape_cast %58 : vector<2x8x128xf32> to vector<16x128xf32>
    %60 = arith.truncf %59 : vector<16x128xf32> to vector<16x128xbf16>
    %c0_27 = arith.constant 0 : index
    %c0_28 = arith.constant 0 : index
    %c0_29 = arith.constant 0 : index
    %61 = vector.load %arg11[%c0_27, %c0_28, %c0_29] : memref<1x256x128xbf16, #tpu.memory_space<vmem>>, vector<1x128x128xbf16>
    %62 = vector.shape_cast %61 : vector<1x128x128xbf16> to vector<128x128xbf16>
    %cst_30 = arith.constant dense<0.000000e+00> : vector<16x128xf32>
    %63 = tpu.matmul %60, %62, %cst_30 {dimension_numbers = #tpu.dot_dimension_numbers<[1], [0], [0], [1], [0, 0, 1, 1], [], []>} : vector<16x128xbf16>, vector<128x128xbf16>, vector<16x128xf32> -> vector<16x128xf32>
    %64 = arith.addf %41, %63 : vector<16x128xf32>
    %65 = vector.extract_strided_slice %39 {offsets = [0, 0, 128], sizes = [2, 8, 128], strides = [1, 1, 1]} : vector<2x8x768xbf16> to vector<2x8x128xbf16>
    %66 = vector.extract_strided_slice %39 {offsets = [0, 0, 384], sizes = [2, 8, 128], strides = [1, 1, 1]} : vector<2x8x768xbf16> to vector<2x8x128xbf16>
    %67 = vector.extract_strided_slice %39 {offsets = [0, 0, 640], sizes = [2, 8, 128], strides = [1, 1, 1]} : vector<2x8x768xbf16> to vector<2x8x128xbf16>
    %cst_31 = arith.constant dense<0.000000e+00> : vector<2x8x8xf32>
    %68 = tpu.matmul %65, %66, %cst_31 {dimension_numbers = #tpu.dot_dimension_numbers<[2], [2], [1], [1], [0, 0, 0, 1, 1, 1], [0], [0]>} : vector<2x8x128xbf16>, vector<2x8x128xbf16>, vector<2x8x8xf32> -> vector<2x8x8xf32>
    %69 = arith.addf %68, %40 : vector<2x8x8xf32>
    %cst_32 = arith.constant dense<0xFF800000> : vector<2x8xf32>
    %70 = vector.multi_reduction <maximumf>, %69, %cst_32 [2] : vector<2x8x8xf32> to vector<2x8xf32>
    %71 = vector.shape_cast %70 : vector<2x8xf32> to vector<2x8x1xf32>
    %72 = vector.broadcast %71 : vector<2x8x1xf32> to vector<2x8x8xf32>
    %73 = arith.subf %69, %72 : vector<2x8x8xf32>
    %74 = math.exp %73 : vector<2x8x8xf32>
    %cst_33 = arith.constant dense<0.000000e+00> : vector<2x8xf32>
    %75 = vector.multi_reduction <add>, %74, %cst_33 [2] : vector<2x8x8xf32> to vector<2x8xf32>
    %76 = vector.shape_cast %75 : vector<2x8xf32> to vector<2x8x1xf32>
    %77 = tpu.reciprocal %76 {approx = true} : vector<2x8x1xf32> -> vector<2x8x1xf32>
    %78 = vector.broadcast %77 : vector<2x8x1xf32> to vector<2x8x8xf32>
    %79 = arith.mulf %74, %78 : vector<2x8x8xf32>
    %80 = arith.truncf %79 : vector<2x8x8xf32> to vector<2x8x8xbf16>
    %cst_34 = arith.constant dense<0.000000e+00> : vector<2x8x128xf32>
    %81 = tpu.matmul %80, %67, %cst_34 {dimension_numbers = #tpu.dot_dimension_numbers<[2], [1], [1], [2], [0, 0, 0, 1, 1, 2], [0], [0]>} : vector<2x8x8xbf16>, vector<2x8x128xbf16>, vector<2x8x128xf32> -> vector<2x8x128xf32>
    %82 = vector.shape_cast %81 : vector<2x8x128xf32> to vector<16x128xf32>
    %83 = arith.truncf %82 : vector<16x128xf32> to vector<16x128xbf16>
    %c0_35 = arith.constant 0 : index
    %c128 = arith.constant 128 : index
    %c0_36 = arith.constant 0 : index
    %84 = vector.load %arg11[%c0_35, %c128, %c0_36] : memref<1x256x128xbf16, #tpu.memory_space<vmem>>, vector<1x128x128xbf16>
    %85 = vector.shape_cast %84 : vector<1x128x128xbf16> to vector<128x128xbf16>
    %cst_37 = arith.constant dense<0.000000e+00> : vector<16x128xf32>
    %86 = tpu.matmul %83, %85, %cst_37 {dimension_numbers = #tpu.dot_dimension_numbers<[1], [0], [0], [1], [0, 0, 1, 1], [], []>} : vector<16x128xbf16>, vector<128x128xbf16>, vector<16x128xf32> -> vector<16x128xf32>
    %87 = arith.addf %64, %86 : vector<16x128xf32>
    %88 = arith.addf %3, %87 : vector<16x128xf32>
    %c0_38 = arith.constant 0 : index
    %c0_39 = arith.constant 0 : index
    %c0_40 = arith.constant 0 : index
    %89 = vector.load %arg12[%c0_38, %c0_39, %c0_40] : memref<1x1x128xf32, #tpu.memory_space<vmem>>, vector<1x1x128xf32>
    %90 = vector.shape_cast %89 : vector<1x1x128xf32> to vector<1x128xf32>
    %91 = vector.broadcast %90 : vector<1x128xf32> to vector<16x128xf32>
    %92 = arith.addf %88, %91 : vector<16x128xf32>
    %c0_41 = arith.constant 0 : index
    %c0_42 = arith.constant 0 : index
    %c0_43 = arith.constant 0 : index
    %93 = vector.load %arg13[%c0_41, %c0_42, %c0_43] : memref<1x1x128xf32, #tpu.memory_space<vmem>>, vector<1x1x128xf32>
    %94 = vector.shape_cast %93 : vector<1x1x128xf32> to vector<1x128xf32>
    %c0_44 = arith.constant 0 : index
    %c0_45 = arith.constant 0 : index
    %c0_46 = arith.constant 0 : index
    %95 = vector.load %arg14[%c0_44, %c0_45, %c0_46] : memref<1x1x128xf32, #tpu.memory_space<vmem>>, vector<1x1x128xf32>
    %96 = vector.shape_cast %95 : vector<1x1x128xf32> to vector<1x128xf32>
    %cst_47 = arith.constant dense<0.000000e+00> : vector<16xf32>
    %97 = vector.multi_reduction <add>, %92, %cst_47 [1] : vector<16x128xf32> to vector<16xf32>
    %98 = vector.shape_cast %97 : vector<16xf32> to vector<16x1xf32>
    %99 = arith.mulf %92, %92 : vector<16x128xf32>
    %cst_48 = arith.constant dense<0.000000e+00> : vector<16xf32>
    %100 = vector.multi_reduction <add>, %99, %cst_48 [1] : vector<16x128xf32> to vector<16xf32>
    %101 = vector.shape_cast %100 : vector<16xf32> to vector<16x1xf32>
    %cst_49 = arith.constant 3.125000e-02 : f32
    %102 = vector.broadcast %cst_49 : f32 to vector<16x1xf32>
    %103 = arith.mulf %98, %102 : vector<16x1xf32>
    %cst_50 = arith.constant 3.125000e-02 : f32
    %104 = vector.broadcast %cst_50 : f32 to vector<16x1xf32>
    %105 = arith.mulf %101, %104 : vector<16x1xf32>
    %106 = arith.mulf %103, %103 : vector<16x1xf32>
    %107 = arith.subf %105, %106 : vector<16x1xf32>
    %108 = vector.broadcast %103 : vector<16x1xf32> to vector<16x128xf32>
    %109 = arith.subf %92, %108 : vector<16x128xf32>
    %cst_51 = arith.constant 9.99999996E-13 : f32
    %110 = vector.broadcast %cst_51 : f32 to vector<16x1xf32>
    %111 = arith.addf %107, %110 : vector<16x1xf32>
    %112 = math.rsqrt %111 : vector<16x1xf32>
    %113 = vector.broadcast %112 : vector<16x1xf32> to vector<16x128xf32>
    %114 = arith.mulf %109, %113 : vector<16x128xf32>
    %115 = vector.broadcast %94 : vector<1x128xf32> to vector<16x128xf32>
    %116 = arith.mulf %114, %115 : vector<16x128xf32>
    %117 = vector.broadcast %96 : vector<1x128xf32> to vector<16x128xf32>
    %118 = arith.addf %116, %117 : vector<16x128xf32>
    %119 = arith.truncf %118 : vector<16x128xf32> to vector<16x128xbf16>
    %c0_52 = arith.constant 0 : index
    %c0_53 = arith.constant 0 : index
    %c0_54 = arith.constant 0 : index
    %120 = vector.load %arg15[%c0_52, %c0_53, %c0_54] : memref<1x128x128xbf16, #tpu.memory_space<vmem>>, vector<1x128x128xbf16>
    %121 = vector.shape_cast %120 : vector<1x128x128xbf16> to vector<128x128xbf16>
    %cst_55 = arith.constant dense<0.000000e+00> : vector<16x128xf32>
    %122 = tpu.matmul %119, %121, %cst_55 {dimension_numbers = #tpu.dot_dimension_numbers<[1], [0], [0], [1], [0, 0, 1, 1], [], []>} : vector<16x128xbf16>, vector<128x128xbf16>, vector<16x128xf32> -> vector<16x128xf32>
    %c0_56 = arith.constant 0 : index
    %c0_57 = arith.constant 0 : index
    %c0_58 = arith.constant 0 : index
    %123 = vector.load %arg16[%c0_56, %c0_57, %c0_58] : memref<1x1x128xf32, #tpu.memory_space<vmem>>, vector<1x1x128xf32>
    %124 = vector.shape_cast %123 : vector<1x1x128xf32> to vector<1x128xf32>
    %125 = vector.broadcast %124 : vector<1x128xf32> to vector<16x128xf32>
    %126 = arith.addf %122, %125 : vector<16x128xf32>
    %127 = arith.mulf %126, %126 : vector<16x128xf32>
    %128 = arith.mulf %126, %127 : vector<16x128xf32>
    %cst_59 = arith.constant 4.471500e-02 : f32
    %129 = vector.broadcast %cst_59 : f32 to vector<16x128xf32>
    %130 = arith.mulf %129, %128 : vector<16x128xf32>
    %131 = arith.addf %126, %130 : vector<16x128xf32>
    %cst_60 = arith.constant 0.797884583 : f32
    %132 = vector.broadcast %cst_60 : f32 to vector<16x128xf32>
    %133 = arith.mulf %132, %131 : vector<16x128xf32>
    %134 = math.tanh %133 : vector<16x128xf32>
    %cst_61 = arith.constant 1.000000e+00 : f32
    %135 = vector.broadcast %cst_61 : f32 to vector<16x128xf32>
    %136 = arith.addf %135, %134 : vector<16x128xf32>
    %cst_62 = arith.constant 5.000000e-01 : f32
    %137 = vector.broadcast %cst_62 : f32 to vector<16x128xf32>
    %138 = arith.mulf %137, %136 : vector<16x128xf32>
    %139 = arith.mulf %126, %138 : vector<16x128xf32>
    %140 = arith.truncf %139 : vector<16x128xf32> to vector<16x128xbf16>
    %c0_63 = arith.constant 0 : index
    %c0_64 = arith.constant 0 : index
    %c0_65 = arith.constant 0 : index
    %141 = vector.load %arg17[%c0_63, %c0_64, %c0_65] : memref<1x128x128xbf16, #tpu.memory_space<vmem>>, vector<1x128x128xbf16>
    %142 = vector.shape_cast %141 : vector<1x128x128xbf16> to vector<128x128xbf16>
    %cst_66 = arith.constant dense<0.000000e+00> : vector<16x128xf32>
    %143 = tpu.matmul %140, %142, %cst_66 {dimension_numbers = #tpu.dot_dimension_numbers<[1], [0], [0], [1], [0, 0, 1, 1], [], []>} : vector<16x128xbf16>, vector<128x128xbf16>, vector<16x128xf32> -> vector<16x128xf32>
    %c0_67 = arith.constant 0 : index
    %c0_68 = arith.constant 0 : index
    %c0_69 = arith.constant 0 : index
    %144 = vector.load %arg18[%c0_67, %c0_68, %c0_69] : memref<1x1x128xf32, #tpu.memory_space<vmem>>, vector<1x1x128xf32>
    %145 = vector.shape_cast %144 : vector<1x1x128xf32> to vector<1x128xf32>
    %146 = vector.broadcast %145 : vector<1x128xf32> to vector<16x128xf32>
    %147 = arith.addf %143, %146 : vector<16x128xf32>
    %148 = arith.addf %92, %147 : vector<16x128xf32>
    %c0_70 = arith.constant 0 : index
    %c0_71 = arith.constant 0 : index
    %149 = vector.load %arg22[%c0_70, %c0_71] : memref<16x128xf32, #tpu.memory_space<vmem>>, vector<16x128xf32>
    tpu.vector_store %arg22[%c0_70, %c0_71], %148 {strides = array<i32>} : memref<16x128xf32, #tpu.memory_space<vmem>>, vector<16x128xf32>,
    %c1_i32 = arith.constant 1 : i32
    %150 = arith.cmpi eq, %arg1, %c1_i32 : i32
    %151 = arith.extui %150 : i1 to i32
    %c0_i32_72 = arith.constant 0 : i32
    %152 = arith.cmpi ne, %151, %c0_i32_72 : i32
    scf.if %152 {
      %153 = vector.shape_cast %148 : vector<16x128xf32> to vector<2x8x128xf32>
      %154 = vector.extract_strided_slice %153 {offsets = [0, 7, 0], sizes = [2, 1, 128], strides = [1, 1, 1]} : vector<2x8x128xf32> to vector<2x1x128xf32>
      %c0_73 = arith.constant 0 : index
      %c0_74 = arith.constant 0 : index
      %c0_75 = arith.constant 0 : index
      %155 = vector.load %arg19[%c0_73, %c0_74, %c0_75] : memref<2x1x128xf32, #tpu.memory_space<vmem>>, vector<2x1x128xf32>
      %156 = arith.mulf %154, %155 : vector<2x1x128xf32>
      %cst_76 = arith.constant dense<0.000000e+00> : vector<2x1xf32>
      %157 = vector.multi_reduction <add>, %156, %cst_76 [2] : vector<2x1x128xf32> to vector<2x1xf32>
      %c0_77 = arith.constant 0 : index
      %c0_78 = arith.constant 0 : index
      %c0_79 = arith.constant 0 : index
      %158 = vector.load %arg20[%c0_77, %c0_78, %c0_79] : memref<2x1x128xf32, #tpu.memory_space<vmem>>, vector<2x1x128xf32>
      %159 = arith.mulf %154, %158 : vector<2x1x128xf32>
      %cst_80 = arith.constant dense<0.000000e+00> : vector<2x1xf32>
      %160 = vector.multi_reduction <add>, %159, %cst_80 [2] : vector<2x1x128xf32> to vector<2x1xf32>
      %cst_81 = arith.constant 0.000000e+00 : f32
      %161 = vector.broadcast %cst_81 : f32 to vector<2x1xf32>
      %162 = arith.subf %161, %157 : vector<2x1xf32>
      %cst_82 = arith.constant 0.000000e+00 : f32
      %163 = vector.broadcast %cst_82 : f32 to vector<2x1xf32>
      %164 = arith.maximumf %162, %163 : vector<2x1xf32>
      %165 = math.absf %162 : vector<2x1xf32>
      %cst_83 = arith.constant 0.000000e+00 : f32
      %166 = vector.broadcast %cst_83 : f32 to vector<2x1xf32>
      %167 = arith.subf %166, %165 : vector<2x1xf32>
      %168 = math.exp %167 : vector<2x1xf32>
      %cst_84 = arith.constant 1.000000e+00 : f32
      %169 = vector.broadcast %cst_84 : f32 to vector<2x1xf32>
      %170 = arith.addf %169, %168 : vector<2x1xf32>
      %171 = math.log %170 : vector<2x1xf32>
      %172 = arith.addf %164, %171 : vector<2x1xf32>
      %cst_85 = arith.constant 0.000000e+00 : f32
      %173 = vector.broadcast %cst_85 : f32 to vector<2x1xf32>
      %174 = arith.maximumf %160, %173 : vector<2x1xf32>
      %175 = math.absf %160 : vector<2x1xf32>
      %cst_86 = arith.constant 0.000000e+00 : f32
      %176 = vector.broadcast %cst_86 : f32 to vector<2x1xf32>
      %177 = arith.subf %176, %175 : vector<2x1xf32>
      %178 = math.exp %177 : vector<2x1xf32>
      %cst_87 = arith.constant 1.000000e+00 : f32
      %179 = vector.broadcast %cst_87 : f32 to vector<2x1xf32>
      %180 = arith.addf %179, %178 : vector<2x1xf32>
      %181 = math.log %180 : vector<2x1xf32>
      %182 = arith.addf %174, %181 : vector<2x1xf32>
      %183 = arith.addf %172, %182 : vector<2x1xf32>
      %c0_88 = arith.constant 0 : index
      %c0_89 = arith.constant 0 : index
      %c0_90 = arith.constant 0 : index
      %184 = vector.load %arg21[%c0_88, %c0_89, %c0_90] : memref<1x2x1xf32, #tpu.memory_space<vmem>>, vector<1x2x1xf32>
      %185 = vector.shape_cast %184 : vector<1x2x1xf32> to vector<2x1xf32>
      %186 = vector.shape_cast %183 : vector<2x1xf32> to vector<1x2x1xf32>
      tpu.vector_store %arg21[%c0_88, %c0_89, %c0_90], %186 {strides = array<i32>} : memref<1x2x1xf32, #tpu.memory_space<vmem>>, vector<1x2x1xf32>,
    } else {
    }
    return
  }
  func.func @transform_0(%arg0: i32, %arg1: i32) -> (i32, i32, i32) {
    %c0_i32 = arith.constant 0 : i32
    %c0_i32_0 = arith.constant 0 : i32
    %c0_i32_1 = arith.constant 0 : i32
    return %arg0, %c0_i32, %c0_i32_0 : i32, i32, i32
  }
  func.func @transform_1(%arg0: i32, %arg1: i32) -> (i32, i32) {
    %c0_i32 = arith.constant 0 : i32
    %c0_i32_0 = arith.constant 0 : i32
    %c0_i32_1 = arith.constant 0 : i32
    return %c0_i32, %c0_i32_0 : i32, i32
  }
  func.func @transform_2(%arg0: i32, %arg1: i32) -> (i32, i32, i32) {
    %c0_i32 = arith.constant 0 : i32
    %c0_i32_0 = arith.constant 0 : i32
    %c0_i32_1 = arith.constant 0 : i32
    return %arg0, %c0_i32, %c0_i32_0 : i32, i32, i32
  }
  func.func @transform_3(%arg0: i32, %arg1: i32) -> (i32, i32) {
    %c0_i32 = arith.constant 0 : i32
    %c0_i32_0 = arith.constant 0 : i32
    %c0_i32_1 = arith.constant 0 : i32
    return %c0_i32, %c0_i32_0 : i32, i32
  }
  func.func @transform_4(%arg0: i32, %arg1: i32) -> (i32, i32) {
    %c0_i32 = arith.constant 0 : i32
    %c0_i32_0 = arith.constant 0 : i32
    %c0_i32_1 = arith.constant 0 : i32
    return %c0_i32, %c0_i32_0 : i32, i32
  }
  func.func @transform_5(%arg0: i32, %arg1: i32) -> (i32, i32, i32) {
    %c0_i32 = arith.constant 0 : i32
    %c0_i32_0 = arith.constant 0 : i32
    %c0_i32_1 = arith.constant 0 : i32
    return %arg1, %c0_i32, %c0_i32_0 : i32, i32, i32
  }
  func.func @transform_6(%arg0: i32, %arg1: i32) -> (i32, i32, i32) {
    %c0_i32 = arith.constant 0 : i32
    %c0_i32_0 = arith.constant 0 : i32
    %c0_i32_1 = arith.constant 0 : i32
    return %arg1, %c0_i32, %c0_i32_0 : i32, i32, i32
  }
  func.func @transform_7(%arg0: i32, %arg1: i32) -> (i32, i32, i32) {
    %c0_i32 = arith.constant 0 : i32
    %c0_i32_0 = arith.constant 0 : i32
    %c0_i32_1 = arith.constant 0 : i32
    return %arg1, %c0_i32, %c0_i32_0 : i32, i32, i32
  }
  func.func @transform_8(%arg0: i32, %arg1: i32) -> (i32, i32, i32) {
    %c0_i32 = arith.constant 0 : i32
    %c0_i32_0 = arith.constant 0 : i32
    %c0_i32_1 = arith.constant 0 : i32
    return %arg1, %c0_i32, %c0_i32_0 : i32, i32, i32
  }
  func.func @transform_9(%arg0: i32, %arg1: i32) -> (i32, i32, i32) {
    %c0_i32 = arith.constant 0 : i32
    %c0_i32_0 = arith.constant 0 : i32
    %c0_i32_1 = arith.constant 0 : i32
    return %arg1, %c0_i32, %c0_i32_0 : i32, i32, i32
  }
  func.func @transform_10(%arg0: i32, %arg1: i32) -> (i32, i32, i32) {
    %c0_i32 = arith.constant 0 : i32
    %c0_i32_0 = arith.constant 0 : i32
    %c0_i32_1 = arith.constant 0 : i32
    return %arg1, %c0_i32, %c0_i32_0 : i32, i32, i32
  }
  func.func @transform_11(%arg0: i32, %arg1: i32) -> (i32, i32, i32) {
    %c0_i32 = arith.constant 0 : i32
    %c0_i32_0 = arith.constant 0 : i32
    %c0_i32_1 = arith.constant 0 : i32
    return %arg1, %c0_i32, %c0_i32_0 : i32, i32, i32
  }
  func.func @transform_12(%arg0: i32, %arg1: i32) -> (i32, i32, i32) {
    %c0_i32 = arith.constant 0 : i32
    %c0_i32_0 = arith.constant 0 : i32
    %c0_i32_1 = arith.constant 0 : i32
    return %arg1, %c0_i32, %c0_i32_0 : i32, i32, i32
  }
  func.func @transform_13(%arg0: i32, %arg1: i32) -> (i32, i32, i32) {
    %c0_i32 = arith.constant 0 : i32
    %c0_i32_0 = arith.constant 0 : i32
    %c0_i32_1 = arith.constant 0 : i32
    return %arg1, %c0_i32, %c0_i32_0 : i32, i32, i32
  }
  func.func @transform_14(%arg0: i32, %arg1: i32) -> (i32, i32, i32) {
    %c0_i32 = arith.constant 0 : i32
    %c0_i32_0 = arith.constant 0 : i32
    %c0_i32_1 = arith.constant 0 : i32
    return %arg1, %c0_i32, %c0_i32_0 : i32, i32, i32
  }
  func.func @transform_15(%arg0: i32, %arg1: i32) -> (i32, i32, i32) {
    %c0_i32 = arith.constant 0 : i32
    %c0_i32_0 = arith.constant 0 : i32
    %c0_i32_1 = arith.constant 0 : i32
    return %arg1, %c0_i32, %c0_i32_0 : i32, i32, i32
  }
  func.func @transform_16(%arg0: i32, %arg1: i32) -> (i32, i32, i32) {
    %c0_i32 = arith.constant 0 : i32
    %c0_i32_0 = arith.constant 0 : i32
    %c0_i32_1 = arith.constant 0 : i32
    return %arg1, %c0_i32, %c0_i32_0 : i32, i32, i32
  }
  func.func @transform_17(%arg0: i32, %arg1: i32) -> (i32, i32, i32) {
    %c0_i32 = arith.constant 0 : i32
    %c0_i32_0 = arith.constant 0 : i32
    %c0_i32_1 = arith.constant 0 : i32
    return %arg0, %c0_i32, %c0_i32_0 : i32, i32, i32
  }
  func.func @transform_18(%arg0: i32, %arg1: i32) -> (i32, i32, i32) {
    %c0_i32 = arith.constant 0 : i32
    %c0_i32_0 = arith.constant 0 : i32
    %c0_i32_1 = arith.constant 0 : i32
    return %arg0, %c0_i32, %c0_i32_0 : i32, i32, i32
  }
  func.func @transform_19(%arg0: i32, %arg1: i32) -> (i32, i32, i32) {
    %c0_i32 = arith.constant 0 : i32
    %c0_i32_0 = arith.constant 0 : i32
    %c0_i32_1 = arith.constant 0 : i32
    return %arg0, %c0_i32, %c0_i32_0 : i32, i32, i32
  }
}

</mosaic_0001>

<llo_original>
// kernel: tpu_custom_call.1
$region0: #{tpu_custom_call.1}
  #allocation0 [shape = 'u32[]', space=smem, size = 0x4, offset = 0x4, fixed_abs, tag = 'smem constant byte address 0x4 - core index']
  #allocation1 [shape = 'u32[144,128]{1,0:T(1,128)}', space=vmem, size = 0x12000, scoped, tag = 'internal scratch']
  #allocation2 [shape = 'f32[16,128]{1,0:T(8,128)}', space=vmem, size = 0x2000, scoped, tag = 'scratch operand']
  #allocation3 [shape = 'f32[2,8,8]{2,1,0:T(8,128)}', space=vmem, size = 0x2000, scoped, tag = 'scratch operand']
  %s0 = inlined_call_operand.hbm [shape: f32[2,8,128], index: 0, kind: input, shape index: {}]
  %s1 = inlined_call_operand.hbm [shape: f32[8,128], index: 1, kind: input, shape index: {}]
  %s2 = inlined_call_operand.vmem [shape: f32[2,1,8], index: 2, kind: input, shape index: {}]
  %s3 = inlined_call_operand.hbm [shape: f32[1,128], index: 3, kind: input, shape index: {}]
  %s4 = inlined_call_operand.hbm [shape: f32[1,128], index: 4, kind: input, shape index: {}]
  %s5 = inlined_call_operand.vmem [shape: f32[2,1,128], index: 5, kind: input, shape index: {}]
  %s6 = inlined_call_operand.vmem [shape: f32[2,1,128], index: 6, kind: input, shape index: {}]
  %s7 = inlined_call_operand.hbm [shape: bf16[2,128,768], index: 7, kind: input, shape index: {}]
  %s8 = inlined_call_operand.vmem [shape: f32[2,1,768], index: 8, kind: input, shape index: {}]
  %s9 = inlined_call_operand.hbm [shape: bf16[2,256,128], index: 9, kind: input, shape index: {}]
  %s10 = inlined_call_operand.vmem [shape: f32[2,1,128], index: 10, kind: input, shape index: {}]
  %s11 = inlined_call_operand.vmem [shape: f32[2,1,128], index: 11, kind: input, shape index: {}]
  %s12 = inlined_call_operand.vmem [shape: f32[2,1,128], index: 12, kind: input, shape index: {}]
  %s13 = inlined_call_operand.hbm [shape: bf16[2,128,128], index: 13, kind: input, shape index: {}]
  %s14 = inlined_call_operand.vmem [shape: f32[2,1,128], index: 14, kind: input, shape index: {}]
  %s15 = inlined_call_operand.hbm [shape: bf16[2,128,128], index: 15, kind: input, shape index: {}]
  %s16 = inlined_call_operand.vmem [shape: f32[2,1,128], index: 16, kind: input, shape index: {}]
  %s17 = inlined_call_operand.vmem [shape: f32[2,1,128], index: 17, kind: input, shape index: {}]
  %s18 = inlined_call_operand.vmem [shape: f32[2,1,128], index: 18, kind: input, shape index: {}]
  %s19 = inlined_call_operand.vmem [shape: f32[1,2,1], index: 19, kind: output, shape index: {}]
  %s20 = sld [smem:[#allocation0]]
  $region149: #{tpu_custom_call.1} parent=0
    _
  %s22 = ssub.s32 1, %s20
  %s23 = scalar_select 0, %s22, %s20
  $region1: #{tpu_custom_call.1} parent=0
    #allocation4 [shape = 'u8[8192]{0}', space=vmem, size = 0x2000, scoped, tag = 'input window, operand 0, single buffered']
    #allocation5 [shape = 's32[2]{0}', space=sflag, size = 0x8, scoped, tag = 'scoped memory for tpu_custom_call.1']
    #allocation6 [shape = 'u8[4096]{0}', space=vmem, size = 0x1000, scoped, tag = 'input window, operand 1, single buffered']
    #allocation7 [shape = 's32[1]{0}', space=sflag, size = 0x4, scoped, tag = 'scoped memory for tpu_custom_call.1']
    #allocation8 [shape = 'u8[512]{0}', space=vmem, size = 0x400, scoped, tag = 'input window, operand 3, single buffered']
    #allocation9 [shape = 'u8[512]{0}', space=vmem, size = 0x400, scoped, tag = 'input window, operand 4, single buffered']
    #allocation10 [shape = 's32[1]{0}', space=sflag, size = 0x4, scoped, tag = 'scoped memory for tpu_custom_call.1']
    #allocation11 [shape = 'u8[393216]{0}', space=vmem, size = 0x60000, scoped, tag = 'input window, operand 7']
    #allocation12 [shape = 'u8[131072]{0}', space=vmem, size = 0x20000, scoped, tag = 'input window, operand 9']
    #allocation13 [shape = 'u8[65536]{0}', space=vmem, size = 0x10000, scoped, tag = 'input window, operand 13']
    #allocation14 [shape = 'u8[65536]{0}', space=vmem, size = 0x10000, scoped, tag = 'input window, operand 15']
    %24 = vsyncpa [#allocation5], 0
    %25 = vsyncpa [#allocation7], 0
    %26 = vsyncpa [#allocation10], 0
    loop: start=0, step=1, limit=4
    $region2: #{tpu_custom_call.1} parent=1 // loop_pre_header
      _
    $region3: #{tpu_custom_call.1} parent=1 // loop_header
      %s28 = sphi 0, %s32
      %p29 = scmp.ge.s32.totalorder %s28, 4
      %s35 = sphi 0, %s47
      %s36 = sphi 0, %s43
      %s37 = sphi 0, %s35
      %s38 = sphi 0, %s36
      %s39 = sphi 0, %s37
      %s40 = sphi 0, %s38
      %s50 = sphi 0, %s52
      %s53 = sphi 0, %s50
      %s54 = sphi 0, %s53
      %s70 = sphi 0, %s54
      %s74 = sphi 0, %s74
      %s76 = sphi 0, %s74
      %s77 = sphi 0, %s76
      %s91 = sphi 0, %s77
      %s97 = sphi 0, %s99
      %s100 = sphi 0, %s97
      %s101 = sphi 0, %s100
      %s117 = sphi 0, %s101
      %s121 = sphi 0, %s121
      %s123 = sphi 0, %s121
      %s124 = sphi 0, %s123
      %s138 = sphi 0, %s124
      %s142 = sphi 0, %s142
      %s144 = sphi 0, %s142
      %s145 = sphi 0, %s144
      %s159 = sphi 0, %s145
      %s165 = sphi 0, %s167
      %s168 = sphi 0, %s165
      %s169 = sphi 0, %s168
      %s185 = sphi 0, %s169
      %s191 = sphi 0, %s193
      %s194 = sphi 0, %s191
      %s195 = sphi 0, %s194
      %s211 = sphi 0, %s195
      %s217 = sphi 0, %s219
      %s220 = sphi 0, %s217
      %s221 = sphi 0, %s220
      %s237 = sphi 0, %s221
      %s243 = sphi 0, %s245
      %s246 = sphi 0, %s243
      %s247 = sphi 0, %s246
      %s263 = sphi 0, %s247
      %s269 = sphi 0, %s271
      %s272 = sphi 0, %s269
      %s273 = sphi 0, %s272
      %s289 = sphi 0, %s273
      %s295 = sphi 0, %s297
      %s298 = sphi 0, %s295
      %s299 = sphi 0, %s298
      %s315 = sphi 0, %s299
      %s321 = sphi 0, %s323
      %s324 = sphi 0, %s321
      %s325 = sphi 0, %s324
      %s341 = sphi 0, %s325
      %s347 = sphi 0, %s349
      %s350 = sphi 0, %s347
      %s351 = sphi 0, %s350
      %s367 = sphi 0, %s351
      %s373 = sphi 0, %s375
      %s376 = sphi 0, %s373
      %s377 = sphi 0, %s376
      %s393 = sphi 0, %s377
      %s399 = sphi 0, %s401
      %s402 = sphi 0, %s399
      %s403 = sphi 0, %s402
      %s419 = sphi 0, %s403
      %s425 = sphi 0, %s427
      %s428 = sphi 0, %s425
      %s429 = sphi 0, %s428
      %s445 = sphi 0, %s429
      %s451 = sphi 0, %s453
      %s454 = sphi 0, %s451
      %s455 = sphi 0, %s454
      %s471 = sphi 0, %s455
      %s477 = sphi 0, %s479
      %s480 = sphi 0, %s477
      %s481 = sphi 0, %s480
      %s497 = sphi 0, %s481
      %s503 = sphi 0, %s505
      %s506 = sphi 0, %s503
      %s507 = sphi 0, %s506
      %s523 = sphi 0, %s507
      %s529 = sphi 0, %s531
      %s532 = sphi 0, %s529
      %s533 = sphi 0, %s532
      %s549 = sphi 0, %s533
    $region4: #{tpu_custom_call.1} parent=1 // loop_header_branch
      %31 = sbr.rel (%p29) target = $region8
    $region5: #{tpu_custom_call.1} parent=1 // loop_body
      %s33 = ssub.s32 %s28, 1
      %s34 = ssub.s32 %s28, 2
      %s41 = sadd.s32 1, %s36
      %p42 = scmp.ge.s32.totalorder %s41, 2
      %s43 = scalar_select %p42, 0, %s41
      %s44 = sadd.s32 1, %s35
      %s45 = scalar_select %p42, %s44, %s35
      %p46 = scmp.ge.s32.totalorder %s45, 1
      %s47 = scalar_select %p46, 0, %s45
      %s48 = ssub.s32 %s35, %s47
      %p49 = scmp.eq.s32.totalorder %s48, 0
      %s51 = sadd.s32 %s50, 1
      %s52 = scalar_select %p49, %s50, %s51
      %p55 = pneg %p49
      %p56 = scmp.eq.s32.totalorder %s28, 1
      %p57 = por %p55, %p56
      %p58 = scmp.ne.s32.totalorder %s50, %s53
      %p59 = scmp.eq.s32.totalorder %s28, 0
      %p60 = por %p58, %p59
      %p61 = scmp.ne.s32.totalorder %s50, %s53
      %p62 = scmp.eq.s32.totalorder %s33, 1
      %p63 = por %p61, %p62
      %p64 = scmp.ne.s32.totalorder %s53, %s54
      %p65 = scmp.eq.s32.totalorder %s33, 0
      %p66 = por %p64, %p65
      %p67 = scmp.ne.s32.totalorder %s53, %s54
      %p68 = scmp.eq.s32.totalorder %s34, 1
      %p69 = por %p67, %p68
      %p71 = scmp.ne.s32.totalorder %s54, %s70
      %p72 = scmp.eq.s32.totalorder %s34, 0
      %p73 = por %p71, %p72
      %s75 = sadd.s32 %s74, 1
      %p78 = scmp.eq.s32.totalorder %s28, 1
      %p79 = scmp.ne.s32.totalorder %s74, %s76
      %p80 = scmp.eq.s32.totalorder %s28, 0
      %p81 = por %p79, %p80
      %p82 = scmp.ne.s32.totalorder %s74, %s76
      %p83 = scmp.eq.s32.totalorder %s33, 1
      %p84 = por %p82, %p83
      %p85 = scmp.ne.s32.totalorder %s76, %s77
      %p86 = scmp.eq.s32.totalorder %s33, 0
      %p87 = por %p85, %p86
      %p88 = scmp.ne.s32.totalorder %s76, %s77
      %p89 = scmp.eq.s32.totalorder %s34, 1
      %p90 = por %p88, %p89
      %p92 = scmp.ne.s32.totalorder %s77, %s91
      %p93 = scmp.eq.s32.totalorder %s34, 0
      %p94 = por %p92, %p93
      %s95 = ssub.s32 %s35, %s47
      %p96 = scmp.eq.s32.totalorder %s95, 0
      %s98 = sadd.s32 %s97, 1
      %s99 = scalar_select %p96, %s97, %s98
      %p102 = pneg %p96
      %p103 = scmp.eq.s32.totalorder %s28, 1
      %p104 = por %p102, %p103
      %p105 = scmp.ne.s32.totalorder %s97, %s100
      %p106 = scmp.eq.s32.totalorder %s28, 0
      %p107 = por %p105, %p106
      %p108 = scmp.ne.s32.totalorder %s97, %s100
      %p109 = scmp.eq.s32.totalorder %s33, 1
      %p110 = por %p108, %p109
      %p111 = scmp.ne.s32.totalorder %s100, %s101
      %p112 = scmp.eq.s32.totalorder %s33, 0
      %p113 = por %p111, %p112
      %p114 = scmp.ne.s32.totalorder %s100, %s101
      %p115 = scmp.eq.s32.totalorder %s34, 1
      %p116 = por %p114, %p115
      %p118 = scmp.ne.s32.totalorder %s101, %s117
      %p119 = scmp.eq.s32.totalorder %s34, 0
      %p120 = por %p118, %p119
      %s122 = sadd.s32 %s121, 1
      %p125 = scmp.eq.s32.totalorder %s28, 1
      %p126 = scmp.ne.s32.totalorder %s121, %s123
      %p127 = scmp.eq.s32.totalorder %s28, 0
      %p128 = por %p126, %p127
      %p129 = scmp.ne.s32.totalorder %s121, %s123
      %p130 = scmp.eq.s32.totalorder %s33, 1
      %p131 = por %p129, %p130
      %p132 = scmp.ne.s32.totalorder %s123, %s124
      %p133 = scmp.eq.s32.totalorder %s33, 0
      %p134 = por %p132, %p133
      %p135 = scmp.ne.s32.totalorder %s123, %s124
      %p136 = scmp.eq.s32.totalorder %s34, 1
      %p137 = por %p135, %p136
      %p139 = scmp.ne.s32.totalorder %s124, %s138
      %p140 = scmp.eq.s32.totalorder %s34, 0
      %p141 = por %p139, %p140
      %s143 = sadd.s32 %s142, 1
      %p146 = scmp.eq.s32.totalorder %s28, 1
      %p147 = scmp.ne.s32.totalorder %s142, %s144
      %p148 = scmp.eq.s32.totalorder %s28, 0
      %p149 = por %p147, %p148
      %p150 = scmp.ne.s32.totalorder %s142, %s144
      %p151 = scmp.eq.s32.totalorder %s33, 1
      %p152 = por %p150, %p151
      %p153 = scmp.ne.s32.totalorder %s144, %s145
      %p154 = scmp.eq.s32.totalorder %s33, 0
      %p155 = por %p153, %p154
      %p156 = scmp.ne.s32.totalorder %s144, %s145
      %p157 = scmp.eq.s32.totalorder %s34, 1
      %p158 = por %p156, %p157
      %p160 = scmp.ne.s32.totalorder %s145, %s159
      %p161 = scmp.eq.s32.totalorder %s34, 0
      %p162 = por %p160, %p161
      %s163 = ssub.s32 %s36, %s43
      %p164 = scmp.eq.s32.totalorder %s163, 0
      %s166 = sadd.s32 %s165, 1
      %s167 = scalar_select %p164, %s165, %s166
      %p170 = pneg %p164
      %p171 = scmp.eq.s32.totalorder %s28, 1
      %p172 = por %p170, %p171
      %p173 = scmp.ne.s32.totalorder %s165, %s168
      %p174 = scmp.eq.s32.totalorder %s28, 0
      %p175 = por %p173, %p174
      %p176 = scmp.ne.s32.totalorder %s165, %s168
      %p177 = scmp.eq.s32.totalorder %s33, 1
      %p178 = por %p176, %p177
      %p179 = scmp.ne.s32.totalorder %s168, %s169
      %p180 = scmp.eq.s32.totalorder %s33, 0
      %p181 = por %p179, %p180
      %p182 = scmp.ne.s32.totalorder %s168, %s169
      %p183 = scmp.eq.s32.totalorder %s34, 1
      %p184 = por %p182, %p183
      %p186 = scmp.ne.s32.totalorder %s169, %s185
      %p187 = scmp.eq.s32.totalorder %s34, 0
      %p188 = por %p186, %p187
      %s189 = ssub.s32 %s36, %s43
      %p190 = scmp.eq.s32.totalorder %s189, 0
      %s192 = sadd.s32 %s191, 1
      %s193 = scalar_select %p190, %s191, %s192
      %p196 = pneg %p190
      %p197 = scmp.eq.s32.totalorder %s28, 1
      %p198 = por %p196, %p197
      %p199 = scmp.ne.s32.totalorder %s191, %s194
      %p200 = scmp.eq.s32.totalorder %s28, 0
      %p201 = por %p199, %p200
      %p202 = scmp.ne.s32.totalorder %s191, %s194
      %p203 = scmp.eq.s32.totalorder %s33, 1
      %p204 = por %p202, %p203
      %p205 = scmp.ne.s32.totalorder %s194, %s195
      %p206 = scmp.eq.s32.totalorder %s33, 0
      %p207 = por %p205, %p206
      %p208 = scmp.ne.s32.totalorder %s194, %s195
      %p209 = scmp.eq.s32.totalorder %s34, 1
      %p210 = por %p208, %p209
      %p212 = scmp.ne.s32.totalorder %s195, %s211
      %p213 = scmp.eq.s32.totalorder %s34, 0
      %p214 = por %p212, %p213
      %s215 = ssub.s32 %s36, %s43
      %p216 = scmp.eq.s32.totalorder %s215, 0
      %s218 = sadd.s32 %s217, 1
      %s219 = scalar_select %p216, %s217, %s218
      %p222 = pneg %p216
      %p223 = scmp.eq.s32.totalorder %s28, 1
      %p224 = por %p222, %p223
      %p225 = scmp.ne.s32.totalorder %s217, %s220
      %p226 = scmp.eq.s32.totalorder %s28, 0
      %p227 = por %p225, %p226
      %p228 = scmp.ne.s32.totalorder %s217, %s220
      %p229 = scmp.eq.s32.totalorder %s33, 1
      %p230 = por %p228, %p229
      %p231 = scmp.ne.s32.totalorder %s220, %s221
      %p232 = scmp.eq.s32.totalorder %s33, 0
      %p233 = por %p231, %p232
      %p234 = scmp.ne.s32.totalorder %s220, %s221
      %p235 = scmp.eq.s32.totalorder %s34, 1
      %p236 = por %p234, %p235
      %p238 = scmp.ne.s32.totalorder %s221, %s237
      %p239 = scmp.eq.s32.totalorder %s34, 0
      %p240 = por %p238, %p239
      %s241 = ssub.s32 %s36, %s43
      %p242 = scmp.eq.s32.totalorder %s241, 0
      %s244 = sadd.s32 %s243, 1
      %s245 = scalar_select %p242, %s243, %s244
      %p248 = pneg %p242
      %p249 = scmp.eq.s32.totalorder %s28, 1
      %p250 = por %p248, %p249
      %p251 = scmp.ne.s32.totalorder %s243, %s246
      %p252 = scmp.eq.s32.totalorder %s28, 0
      %p253 = por %p251, %p252
      %p254 = scmp.ne.s32.totalorder %s243, %s246
      %p255 = scmp.eq.s32.totalorder %s33, 1
      %p256 = por %p254, %p255
      %p257 = scmp.ne.s32.totalorder %s246, %s247
      %p258 = scmp.eq.s32.totalorder %s33, 0
      %p259 = por %p257, %p258
      %p260 = scmp.ne.s32.totalorder %s246, %s247
      %p261 = scmp.eq.s32.totalorder %s34, 1
      %p262 = por %p260, %p261
      %p264 = scmp.ne.s32.totalorder %s247, %s263
      %p265 = scmp.eq.s32.totalorder %s34, 0
      %p266 = por %p264, %p265
      %s267 = ssub.s32 %s36, %s43
      %p268 = scmp.eq.s32.totalorder %s267, 0
      %s270 = sadd.s32 %s269, 1
      %s271 = scalar_select %p268, %s269, %s270
      %p274 = pneg %p268
      %p275 = scmp.eq.s32.totalorder %s28, 1
      %p276 = por %p274, %p275
      %p277 = scmp.ne.s32.totalorder %s269, %s272
      %p278 = scmp.eq.s32.totalorder %s28, 0
      %p279 = por %p277, %p278
      %p280 = scmp.ne.s32.totalorder %s269, %s272
      %p281 = scmp.eq.s32.totalorder %s33, 1
      %p282 = por %p280, %p281
      %p283 = scmp.ne.s32.totalorder %s272, %s273
      %p284 = scmp.eq.s32.totalorder %s33, 0
      %p285 = por %p283, %p284
      %p286 = scmp.ne.s32.totalorder %s272, %s273
      %p287 = scmp.eq.s32.totalorder %s34, 1
      %p288 = por %p286, %p287
      %p290 = scmp.ne.s32.totalorder %s273, %s289
      %p291 = scmp.eq.s32.totalorder %s34, 0
      %p292 = por %p290, %p291
      %s293 = ssub.s32 %s36, %s43
      %p294 = scmp.eq.s32.totalorder %s293, 0
      %s296 = sadd.s32 %s295, 1
      %s297 = scalar_select %p294, %s295, %s296
      %p300 = pneg %p294
      %p301 = scmp.eq.s32.totalorder %s28, 1
      %p302 = por %p300, %p301
      %p303 = scmp.ne.s32.totalorder %s295, %s298
      %p304 = scmp.eq.s32.totalorder %s28, 0
      %p305 = por %p303, %p304
      %p306 = scmp.ne.s32.totalorder %s295, %s298
      %p307 = scmp.eq.s32.totalorder %s33, 1
      %p308 = por %p306, %p307
      %p309 = scmp.ne.s32.totalorder %s298, %s299
      %p310 = scmp.eq.s32.totalorder %s33, 0
      %p311 = por %p309, %p310
      %p312 = scmp.ne.s32.totalorder %s298, %s299
      %p313 = scmp.eq.s32.totalorder %s34, 1
      %p314 = por %p312, %p313
      %p316 = scmp.ne.s32.totalorder %s299, %s315
      %p317 = scmp.eq.s32.totalorder %s34, 0
      %p318 = por %p316, %p317
      %s319 = ssub.s32 %s36, %s43
      %p320 = scmp.eq.s32.totalorder %s319, 0
      %s322 = sadd.s32 %s321, 1
      %s323 = scalar_select %p320, %s321, %s322
      %p326 = pneg %p320
      %p327 = scmp.eq.s32.totalorder %s28, 1
      %p328 = por %p326, %p327
      %p329 = scmp.ne.s32.totalorder %s321, %s324
      %p330 = scmp.eq.s32.totalorder %s28, 0
      %p331 = por %p329, %p330
      %p332 = scmp.ne.s32.totalorder %s321, %s324
      %p333 = scmp.eq.s32.totalorder %s33, 1
      %p334 = por %p332, %p333
      %p335 = scmp.ne.s32.totalorder %s324, %s325
      %p336 = scmp.eq.s32.totalorder %s33, 0
      %p337 = por %p335, %p336
      %p338 = scmp.ne.s32.totalorder %s324, %s325
      %p339 = scmp.eq.s32.totalorder %s34, 1
      %p340 = por %p338, %p339
      %p342 = scmp.ne.s32.totalorder %s325, %s341
      %p343 = scmp.eq.s32.totalorder %s34, 0
      %p344 = por %p342, %p343
      %s345 = ssub.s32 %s36, %s43
      %p346 = scmp.eq.s32.totalorder %s345, 0
      %s348 = sadd.s32 %s347, 1
      %s349 = scalar_select %p346, %s347, %s348
      %p352 = pneg %p346
      %p353 = scmp.eq.s32.totalorder %s28, 1
      %p354 = por %p352, %p353
      %p355 = scmp.ne.s32.totalorder %s347, %s350
      %p356 = scmp.eq.s32.totalorder %s28, 0
      %p357 = por %p355, %p356
      %p358 = scmp.ne.s32.totalorder %s347, %s350
      %p359 = scmp.eq.s32.totalorder %s33, 1
      %p360 = por %p358, %p359
      %p361 = scmp.ne.s32.totalorder %s350, %s351
      %p362 = scmp.eq.s32.totalorder %s33, 0
      %p363 = por %p361, %p362
      %p364 = scmp.ne.s32.totalorder %s350, %s351
      %p365 = scmp.eq.s32.totalorder %s34, 1
      %p366 = por %p364, %p365
      %p368 = scmp.ne.s32.totalorder %s351, %s367
      %p369 = scmp.eq.s32.totalorder %s34, 0
      %p370 = por %p368, %p369
      %s371 = ssub.s32 %s36, %s43
      %p372 = scmp.eq.s32.totalorder %s371, 0
      %s374 = sadd.s32 %s373, 1
      %s375 = scalar_select %p372, %s373, %s374
      %p378 = pneg %p372
      %p379 = scmp.eq.s32.totalorder %s28, 1
      %p380 = por %p378, %p379
      %p381 = scmp.ne.s32.totalorder %s373, %s376
      %p382 = scmp.eq.s32.totalorder %s28, 0
      %p383 = por %p381, %p382
      %p384 = scmp.ne.s32.totalorder %s373, %s376
      %p385 = scmp.eq.s32.totalorder %s33, 1
      %p386 = por %p384, %p385
      %p387 = scmp.ne.s32.totalorder %s376, %s377
      %p388 = scmp.eq.s32.totalorder %s33, 0
      %p389 = por %p387, %p388
      %p390 = scmp.ne.s32.totalorder %s376, %s377
      %p391 = scmp.eq.s32.totalorder %s34, 1
      %p392 = por %p390, %p391
      %p394 = scmp.ne.s32.totalorder %s377, %s393
      %p395 = scmp.eq.s32.totalorder %s34, 0
      %p396 = por %p394, %p395
      %s397 = ssub.s32 %s36, %s43
      %p398 = scmp.eq.s32.totalorder %s397, 0
      %s400 = sadd.s32 %s399, 1
      %s401 = scalar_select %p398, %s399, %s400
      %p404 = pneg %p398
      %p405 = scmp.eq.s32.totalorder %s28, 1
      %p406 = por %p404, %p405
      %p407 = scmp.ne.s32.totalorder %s399, %s402
      %p408 = scmp.eq.s32.totalorder %s28, 0
      %p409 = por %p407, %p408
      %p410 = scmp.ne.s32.totalorder %s399, %s402
      %p411 = scmp.eq.s32.totalorder %s33, 1
      %p412 = por %p410, %p411
      %p413 = scmp.ne.s32.totalorder %s402, %s403
      %p414 = scmp.eq.s32.totalorder %s33, 0
      %p415 = por %p413, %p414
      %p416 = scmp.ne.s32.totalorder %s402, %s403
      %p417 = scmp.eq.s32.totalorder %s34, 1
      %p418 = por %p416, %p417
      %p420 = scmp.ne.s32.totalorder %s403, %s419
      %p421 = scmp.eq.s32.totalorder %s34, 0
      %p422 = por %p420, %p421
      %s423 = ssub.s32 %s36, %s43
      %p424 = scmp.eq.s32.totalorder %s423, 0
      %s426 = sadd.s32 %s425, 1
      %s427 = scalar_select %p424, %s425, %s426
      %p430 = pneg %p424
      %p431 = scmp.eq.s32.totalorder %s28, 1
      %p432 = por %p430, %p431
      %p433 = scmp.ne.s32.totalorder %s425, %s428
      %p434 = scmp.eq.s32.totalorder %s28, 0
      %p435 = por %p433, %p434
      %p436 = scmp.ne.s32.totalorder %s425, %s428
      %p437 = scmp.eq.s32.totalorder %s33, 1
      %p438 = por %p436, %p437
      %p439 = scmp.ne.s32.totalorder %s428, %s429
      %p440 = scmp.eq.s32.totalorder %s33, 0
      %p441 = por %p439, %p440
      %p442 = scmp.ne.s32.totalorder %s428, %s429
      %p443 = scmp.eq.s32.totalorder %s34, 1
      %p444 = por %p442, %p443
      %p446 = scmp.ne.s32.totalorder %s429, %s445
      %p447 = scmp.eq.s32.totalorder %s34, 0
      %p448 = por %p446, %p447
      %s449 = ssub.s32 %s36, %s43
      %p450 = scmp.eq.s32.totalorder %s449, 0
      %s452 = sadd.s32 %s451, 1
      %s453 = scalar_select %p450, %s451, %s452
      %p456 = pneg %p450
      %p457 = scmp.eq.s32.totalorder %s28, 1
      %p458 = por %p456, %p457
      %p459 = scmp.ne.s32.totalorder %s451, %s454
      %p460 = scmp.eq.s32.totalorder %s28, 0
      %p461 = por %p459, %p460
      %p462 = scmp.ne.s32.totalorder %s451, %s454
      %p463 = scmp.eq.s32.totalorder %s33, 1
      %p464 = por %p462, %p463
      %p465 = scmp.ne.s32.totalorder %s454, %s455
      %p466 = scmp.eq.s32.totalorder %s33, 0
      %p467 = por %p465, %p466
      %p468 = scmp.ne.s32.totalorder %s454, %s455
      %p469 = scmp.eq.s32.totalorder %s34, 1
      %p470 = por %p468, %p469
      %p472 = scmp.ne.s32.totalorder %s455, %s471
      %p473 = scmp.eq.s32.totalorder %s34, 0
      %p474 = por %p472, %p473
      %s475 = ssub.s32 %s35, %s47
      %p476 = scmp.eq.s32.totalorder %s475, 0
      %s478 = sadd.s32 %s477, 1
      %s479 = scalar_select %p476, %s477, %s478
      %p482 = pneg %p476
      %p483 = scmp.eq.s32.totalorder %s28, 1
      %p484 = por %p482, %p483
      %p485 = scmp.ne.s32.totalorder %s477, %s480
      %p486 = scmp.eq.s32.totalorder %s28, 0
      %p487 = por %p485, %p486
      %p488 = scmp.ne.s32.totalorder %s477, %s480
      %p489 = scmp.eq.s32.totalorder %s33, 1
      %p490 = por %p488, %p489
      %p491 = scmp.ne.s32.totalorder %s480, %s481
      %p492 = scmp.eq.s32.totalorder %s33, 0
      %p493 = por %p491, %p492
      %p494 = scmp.ne.s32.totalorder %s480, %s481
      %p495 = scmp.eq.s32.totalorder %s34, 1
      %p496 = por %p494, %p495
      %p498 = scmp.ne.s32.totalorder %s481, %s497
      %p499 = scmp.eq.s32.totalorder %s34, 0
      %p500 = por %p498, %p499
      %s501 = ssub.s32 %s35, %s47
      %p502 = scmp.eq.s32.totalorder %s501, 0
      %s504 = sadd.s32 %s503, 1
      %s505 = scalar_select %p502, %s503, %s504
      %p508 = pneg %p502
      %p509 = scmp.eq.s32.totalorder %s28, 1
      %p510 = por %p508, %p509
      %p511 = scmp.ne.s32.totalorder %s503, %s506
      %p512 = scmp.eq.s32.totalorder %s28, 0
      %p513 = por %p511, %p512
      %p514 = scmp.ne.s32.totalorder %s503, %s506
      %p515 = scmp.eq.s32.totalorder %s33, 1
      %p516 = por %p514, %p515
      %p517 = scmp.ne.s32.totalorder %s506, %s507
      %p518 = scmp.eq.s32.totalorder %s33, 0
      %p519 = por %p517, %p518
      %p520 = scmp.ne.s32.totalorder %s506, %s507
      %p521 = scmp.eq.s32.totalorder %s34, 1
      %p522 = por %p520, %p521
      %p524 = scmp.ne.s32.totalorder %s507, %s523
      %p525 = scmp.eq.s32.totalorder %s34, 0
      %p526 = por %p524, %p525
      %s527 = ssub.s32 %s35, %s47
      %p528 = scmp.eq.s32.totalorder %s527, 0
      %s530 = sadd.s32 %s529, 1
      %s531 = scalar_select %p528, %s529, %s530
      %p534 = pneg %p528
      %p535 = scmp.eq.s32.totalorder %s28, 1
      %p536 = por %p534, %p535
      %p537 = scmp.ne.s32.totalorder %s529, %s532
      %p538 = scmp.eq.s32.totalorder %s28, 0
      %p539 = por %p537, %p538
      %p540 = scmp.ne.s32.totalorder %s529, %s532
      %p541 = scmp.eq.s32.totalorder %s33, 1
      %p542 = por %p540, %p541
      %p543 = scmp.ne.s32.totalorder %s532, %s533
      %p544 = scmp.eq.s32.totalorder %s33, 0
      %p545 = por %p543, %p544
      %p546 = scmp.ne.s32.totalorder %s532, %s533
      %p547 = scmp.eq.s32.totalorder %s34, 1
      %p548 = por %p546, %p547
      %p550 = scmp.ne.s32.totalorder %s533, %s549
      %p551 = scmp.eq.s32.totalorder %s34, 0
      %p552 = por %p550, %p551
      %p553 = scmp.le.s32.totalorder 1, %s28
      %p554 = scmp.lt.s32.totalorder %s28, 3
      %p555 = pnand %p553, %p554
      %p556 = pneg %p555
      // Predicated region
      $region9: #{tpu_custom_call.1} parent=5 // pred_check
        _
      $region10: #{tpu_custom_call.1} parent=5 // pred_check_branch
        %558 = sbr.rel (%p555) target = $region12
      $region11: #{tpu_custom_call.1} parent=5 // pred_region
        %s559 = ssub.s32 %s28, 1
        // Predicated region
        $region13: #{tpu_custom_call.1} parent=11 // pred_check
          %p560 = pneg %p66
        $region14: #{tpu_custom_call.1} parent=11 // pred_check_branch
          %562 = sbr.rel (%p560) target = $region16
        $region15: #{tpu_custom_call.1} parent=11 // pred_region
          %s563 = smul.u32 2, %s37
          %s565 = ssub.s32 256, 256
          %566 = vsyncadd [#allocation5], %s565
          %s567 = smul.addr %s563, 128
          %s568 = scalar_lea.hbm %s0, %s567
          %s569 = sshll.u32 [#allocation4], 4
          %s570 = int_to_ptr.vmem [resolvable:$true] %s569
          %575 = dma.hbm_to_vmem [thread:$0]  %s568, 256, %s570, [#allocation5], 128, 128, 8
        $region16: #{tpu_custom_call.1} parent=11 // pred_fallthru
          _
        // Predicated region
        $region17: #{tpu_custom_call.1} parent=11 // pred_check
          %p576 = pneg %p87
        $region18: #{tpu_custom_call.1} parent=11 // pred_check_branch
          %578 = sbr.rel (%p576) target = $region20
        $region19: #{tpu_custom_call.1} parent=11 // pred_region
          %s580 = ssub.s32 128, 128
          %581 = vsyncadd [#allocation7], %s580
          %s583 = sshll.u32 [#allocation6], 4
          %s584 = int_to_ptr.vmem [resolvable:$true] %s583
          %586 = dma.hbm_to_vmem [thread:$0]  %s1, 128, %s584, [#allocation7]
        $region20: #{tpu_custom_call.1} parent=11 // pred_fallthru
          _
        // Predicated region
        $region21: #{tpu_custom_call.1} parent=11 // pred_check
          %p587 = pneg %p113
        $region22: #{tpu_custom_call.1} parent=11 // pred_check_branch
          %589 = sbr.rel (%p587) target = $region24
        $region23: #{tpu_custom_call.1} parent=11 // pred_region
          %s590 = smul.u32 2, %s37
          %p591 = scmp.lt.s32.totalorder %s590, 1
          %s592 = scalar_select %p591, %s590, 1
          %s593 = scalar_lea.vmem %s2, %s592
          %s594 = smul.u32 2, %s37
        $region24: #{tpu_custom_call.1} parent=11 // pred_fallthru
          _
        // Predicated region
        $region25: #{tpu_custom_call.1} parent=11 // pred_check
          %p595 = pneg %p134
        $region26: #{tpu_custom_call.1} parent=11 // pred_check_branch
          %597 = sbr.rel (%p595) target = $region28
        $region27: #{tpu_custom_call.1} parent=11 // pred_region
          %s599 = ssub.s32 16, 16
          %600 = vsyncadd [#allocation7], %s599
          %s602 = sshll.u32 [#allocation8], 4
          %s603 = int_to_ptr.vmem [resolvable:$true] %s602
          %605 = dma.hbm_to_vmem [thread:$0]  %s3, 16, %s603, [#allocation7]
        $region28: #{tpu_custom_call.1} parent=11 // pred_fallthru
          _
        // Predicated region
        $region29: #{tpu_custom_call.1} parent=11 // pred_check
          %p606 = pneg %p155
        $region30: #{tpu_custom_call.1} parent=11 // pred_check_branch
          %608 = sbr.rel (%p606) target = $region32
        $region31: #{tpu_custom_call.1} parent=11 // pred_region
          %s610 = ssub.s32 16, 16
          %611 = vsyncadd [#allocation10], %s610
          %s613 = sshll.u32 [#allocation9], 4
          %s614 = int_to_ptr.vmem [resolvable:$true] %s613
          %616 = dma.hbm_to_vmem [thread:$0]  %s4, 16, %s614, [#allocation10]
        $region32: #{tpu_custom_call.1} parent=11 // pred_fallthru
          _
        // Predicated region
        $region33: #{tpu_custom_call.1} parent=11 // pred_check
          %p617 = pneg %p493
        $region34: #{tpu_custom_call.1} parent=11 // pred_check_branch
          %619 = sbr.rel (%p617) target = $region36
        $region35: #{tpu_custom_call.1} parent=11 // pred_region
          %s620 = smul.u32 2, %s37
          %p621 = scmp.lt.s32.totalorder %s620, 1
          %s622 = scalar_select %p621, %s620, 1
          %s623 = scalar_lea.vmem %s17, %s622
          %s624 = smul.u32 2, %s37
        $region36: #{tpu_custom_call.1} parent=11 // pred_fallthru
          _
        // Predicated region
        $region37: #{tpu_custom_call.1} parent=11 // pred_check
          %p625 = pneg %p519
        $region38: #{tpu_custom_call.1} parent=11 // pred_check_branch
          %627 = sbr.rel (%p625) target = $region40
        $region39: #{tpu_custom_call.1} parent=11 // pred_region
          %s628 = smul.u32 2, %s37
          %p629 = scmp.lt.s32.totalorder %s628, 1
          %s630 = scalar_select %p629, %s628, 1
          %s631 = scalar_lea.vmem %s18, %s630
          %s632 = smul.u32 2, %s37
        $region40: #{tpu_custom_call.1} parent=11 // pred_fallthru
          _
      $region12: #{tpu_custom_call.1} parent=5 // pred_fallthru
        _
      %p633 = scmp.lt.s32.totalorder %s28, 2
      // Predicated region
      $region41: #{tpu_custom_call.1} parent=5 // pred_check
        %p634 = pneg %p633
      $region42: #{tpu_custom_call.1} parent=5 // pred_check_branch
        %636 = sbr.rel (%p634) target = $region44
      $region43: #{tpu_custom_call.1} parent=5 // pred_region
        // Predicated region
        $region45: #{tpu_custom_call.1} parent=43 // pred_check
          %p637 = pneg %p175
        $region46: #{tpu_custom_call.1} parent=43 // pred_check_branch
          %639 = sbr.rel (%p637) target = $region48
        $region47: #{tpu_custom_call.1} parent=43 // pred_region
          %p640 = scmp.lt.s32.totalorder %s36, 1
          %s641 = scalar_select %p640, %s36, 1
          %s642 = scalar_lea.vmem %s5, %s641
        $region48: #{tpu_custom_call.1} parent=43 // pred_fallthru
          _
        // Predicated region
        $region49: #{tpu_custom_call.1} parent=43 // pred_check
          %p643 = pneg %p201
        $region50: #{tpu_custom_call.1} parent=43 // pred_check_branch
          %645 = sbr.rel (%p643) target = $region52
        $region51: #{tpu_custom_call.1} parent=43 // pred_region
          %p646 = scmp.lt.s32.totalorder %s36, 1
          %s647 = scalar_select %p646, %s36, 1
          %s648 = scalar_lea.vmem %s6, %s647
        $region52: #{tpu_custom_call.1} parent=43 // pred_fallthru
          _
        // Predicated region
        $region53: #{tpu_custom_call.1} parent=43 // pred_check
          %p649 = pneg %p227
        $region54: #{tpu_custom_call.1} parent=43 // pred_check_branch
          %651 = sbr.rel (%p649) target = $region56
        $region55: #{tpu_custom_call.1} parent=43 // pred_region
          %s652 = sand.u32 %s28, 1
          %s653 = scalar_lea.sflag [#allocation5], %s652
          %s654 = sand.u32 %s217, 1
          %s655 = smul.addr %s654, 384
          %s656 = scalar_lea.vmem [#allocation11], %s655
          %s658 = ssub.s32 6144, 6144
          %659 = vsyncadd %s653, %s658
          %s660 = smul.addr %s36, 96
          %s661 = smul.addr %s660, 64
          %s662 = scalar_lea.hbm %s7, %s661
          %s663 = sshll.u32 %s656, 4
          %s664 = int_to_ptr.vmem [resolvable:$true] %s663
          %669 = dma.hbm_to_vmem [thread:$0]  %s662, 6144, %s664, %s653, 384, 384, 24
        $region56: #{tpu_custom_call.1} parent=43 // pred_fallthru
          _
        // Predicated region
        $region57: #{tpu_custom_call.1} parent=43 // pred_check
          %p670 = pneg %p253
        $region58: #{tpu_custom_call.1} parent=43 // pred_check_branch
          %672 = sbr.rel (%p670) target = $region60
        $region59: #{tpu_custom_call.1} parent=43 // pred_region
          %p673 = scmp.lt.s32.totalorder %s36, 1
          %s674 = scalar_select %p673, %s36, 1
          %s675 = smul.addr %s674, 6
          %s676 = scalar_lea.vmem %s8, %s675
        $region60: #{tpu_custom_call.1} parent=43 // pred_fallthru
          _
        // Predicated region
        $region61: #{tpu_custom_call.1} parent=43 // pred_check
          %p677 = pneg %p279
        $region62: #{tpu_custom_call.1} parent=43 // pred_check_branch
          %679 = sbr.rel (%p677) target = $region64
        $region63: #{tpu_custom_call.1} parent=43 // pred_region
          %s680 = sand.u32 %s28, 1
          %s681 = scalar_lea.sflag [#allocation5], %s680
          %s682 = sand.u32 %s269, 1
          %s683 = smul.addr %s682, 128
          %s684 = scalar_lea.vmem [#allocation12], %s683
          %s686 = ssub.s32 2048, 2048
          %687 = vsyncadd %s681, %s686
          %s688 = smul.addr %s36, 32
          %s689 = smul.addr %s688, 64
          %s690 = scalar_lea.hbm %s9, %s689
          %s691 = sshll.u32 %s684, 4
          %s692 = int_to_ptr.vmem [resolvable:$true] %s691
          %697 = dma.hbm_to_vmem [thread:$0]  %s690, 2048, %s692, %s681, 64, 64, 4
        $region64: #{tpu_custom_call.1} parent=43 // pred_fallthru
          _
        // Predicated region
        $region65: #{tpu_custom_call.1} parent=43 // pred_check
          %p698 = pneg %p305
        $region66: #{tpu_custom_call.1} parent=43 // pred_check_branch
          %700 = sbr.rel (%p698) target = $region68
        $region67: #{tpu_custom_call.1} parent=43 // pred_region
          %p701 = scmp.lt.s32.totalorder %s36, 1
          %s702 = scalar_select %p701, %s36, 1
          %s703 = scalar_lea.vmem %s10, %s702
        $region68: #{tpu_custom_call.1} parent=43 // pred_fallthru
          _
        // Predicated region
        $region69: #{tpu_custom_call.1} parent=43 // pred_check
          %p704 = pneg %p331
        $region70: #{tpu_custom_call.1} parent=43 // pred_check_branch
          %706 = sbr.rel (%p704) target = $region72
        $region71: #{tpu_custom_call.1} parent=43 // pred_region
          %p707 = scmp.lt.s32.totalorder %s36, 1
          %s708 = scalar_select %p707, %s36, 1
          %s709 = scalar_lea.vmem %s11, %s708
        $region72: #{tpu_custom_call.1} parent=43 // pred_fallthru
          _
        // Predicated region
        $region73: #{tpu_custom_call.1} parent=43 // pred_check
          %p710 = pneg %p357
        $region74: #{tpu_custom_call.1} parent=43 // pred_check_branch
          %712 = sbr.rel (%p710) target = $region76
        $region75: #{tpu_custom_call.1} parent=43 // pred_region
          %p713 = scmp.lt.s32.totalorder %s36, 1
          %s714 = scalar_select %p713, %s36, 1
          %s715 = scalar_lea.vmem %s12, %s714
        $region76: #{tpu_custom_call.1} parent=43 // pred_fallthru
          _
        // Predicated region
        $region77: #{tpu_custom_call.1} parent=43 // pred_check
          %p716 = pneg %p383
        $region78: #{tpu_custom_call.1} parent=43 // pred_check_branch
          %718 = sbr.rel (%p716) target = $region80
        $region79: #{tpu_custom_call.1} parent=43 // pred_region
          %s719 = sand.u32 %s28, 1
          %s720 = scalar_lea.sflag [#allocation5], %s719
          %s721 = sand.u32 %s373, 1
          %s722 = smul.addr %s721, 64
          %s723 = scalar_lea.vmem [#allocation13], %s722
          %s725 = ssub.s32 1024, 1024
          %726 = vsyncadd %s720, %s725
          %s727 = smul.addr %s36, 16
          %s728 = smul.addr %s727, 64
          %s729 = scalar_lea.hbm %s13, %s728
          %s730 = sshll.u32 %s723, 4
          %s731 = int_to_ptr.vmem [resolvable:$true] %s730
          %736 = dma.hbm_to_vmem [thread:$0]  %s729, 1024, %s731, %s720, 64, 64, 4
        $region80: #{tpu_custom_call.1} parent=43 // pred_fallthru
          _
        // Predicated region
        $region81: #{tpu_custom_call.1} parent=43 // pred_check
          %p737 = pneg %p409
        $region82: #{tpu_custom_call.1} parent=43 // pred_check_branch
          %739 = sbr.rel (%p737) target = $region84
        $region83: #{tpu_custom_call.1} parent=43 // pred_region
          %p740 = scmp.lt.s32.totalorder %s36, 1
          %s741 = scalar_select %p740, %s36, 1
          %s742 = scalar_lea.vmem %s14, %s741
        $region84: #{tpu_custom_call.1} parent=43 // pred_fallthru
          _
        // Predicated region
        $region85: #{tpu_custom_call.1} parent=43 // pred_check
          %p743 = pneg %p435
        $region86: #{tpu_custom_call.1} parent=43 // pred_check_branch
          %745 = sbr.rel (%p743) target = $region88
        $region87: #{tpu_custom_call.1} parent=43 // pred_region
          %s746 = sand.u32 %s28, 1
          %s747 = scalar_lea.sflag [#allocation5], %s746
          %s748 = sand.u32 %s425, 1
          %s749 = smul.addr %s748, 64
          %s750 = scalar_lea.vmem [#allocation14], %s749
          %s752 = ssub.s32 1024, 1024
          %753 = vsyncadd %s747, %s752
          %s754 = smul.addr %s36, 16
          %s755 = smul.addr %s754, 64
          %s756 = scalar_lea.hbm %s15, %s755
          %s757 = sshll.u32 %s750, 4
          %s758 = int_to_ptr.vmem [resolvable:$true] %s757
          %763 = dma.hbm_to_vmem [thread:$0]  %s756, 1024, %s758, %s747, 64, 64, 4
        $region88: #{tpu_custom_call.1} parent=43 // pred_fallthru
          _
        // Predicated region
        $region89: #{tpu_custom_call.1} parent=43 // pred_check
          %p764 = pneg %p461
        $region90: #{tpu_custom_call.1} parent=43 // pred_check_branch
          %766 = sbr.rel (%p764) target = $region92
        $region91: #{tpu_custom_call.1} parent=43 // pred_region
          %p767 = scmp.lt.s32.totalorder %s36, 1
          %s768 = scalar_select %p767, %s36, 1
          %s769 = scalar_lea.vmem %s16, %s768
        $region92: #{tpu_custom_call.1} parent=43 // pred_fallthru
          _
      $region44: #{tpu_custom_call.1} parent=5 // pred_fallthru
        _
      %p770 = scmp.le.s32.totalorder 1, %s28
      %p771 = scmp.lt.s32.totalorder %s28, 3
      %p772 = pnand %p770, %p771
      %p773 = pneg %p772
      // Predicated region
      $region93: #{tpu_custom_call.1} parent=5 // pred_check
        _
      $region94: #{tpu_custom_call.1} parent=5 // pred_check_branch
        %775 = sbr.rel (%p772) target = $region96
      $region95: #{tpu_custom_call.1} parent=5 // pred_region
        %s776 = ssub.s32 %s28, 1
        // Predicated region
        $region97: #{tpu_custom_call.1} parent=95 // pred_check
          %p777 = pneg %p66
        $region98: #{tpu_custom_call.1} parent=95 // pred_check_branch
          %779 = sbr.rel (%p777) target = $region100
        $region99: #{tpu_custom_call.1} parent=95 // pred_region
          %780 = dma.done [#allocation5], 256
        $region100: #{tpu_custom_call.1} parent=95 // pred_fallthru
          _
        // Predicated region
        $region101: #{tpu_custom_call.1} parent=95 // pred_check
          %p781 = pneg %p87
        $region102: #{tpu_custom_call.1} parent=95 // pred_check_branch
          %783 = sbr.rel (%p781) target = $region104
        $region103: #{tpu_custom_call.1} parent=95 // pred_region
          %784 = dma.done [#allocation7], 128
        $region104: #{tpu_custom_call.1} parent=95 // pred_fallthru
          _
        // Predicated region
        $region105: #{tpu_custom_call.1} parent=95 // pred_check
          %p785 = pneg %p134
        $region106: #{tpu_custom_call.1} parent=95 // pred_check_branch
          %787 = sbr.rel (%p785) target = $region108
        $region107: #{tpu_custom_call.1} parent=95 // pred_region
          %788 = dma.done [#allocation7], 16
        $region108: #{tpu_custom_call.1} parent=95 // pred_fallthru
          _
        // Predicated region
        $region109: #{tpu_custom_call.1} parent=95 // pred_check
          %p789 = pneg %p155
        $region110: #{tpu_custom_call.1} parent=95 // pred_check_branch
          %791 = sbr.rel (%p789) target = $region112
        $region111: #{tpu_custom_call.1} parent=95 // pred_region
          %792 = dma.done [#allocation10], 16
        $region112: #{tpu_custom_call.1} parent=95 // pred_fallthru
          _
        %s793 = sand.u32 %s33, 1
        %s794 = scalar_lea.sflag [#allocation5], %s793
        %s795 = sand.u32 %s220, 1
        %s796 = smul.addr %s795, 384
        %s797 = scalar_lea.vmem [#allocation11], %s796
        // Predicated region
        $region113: #{tpu_custom_call.1} parent=95 // pred_check
          %p798 = pneg %p233
        $region114: #{tpu_custom_call.1} parent=95 // pred_check_branch
          %800 = sbr.rel (%p798) target = $region116
        $region115: #{tpu_custom_call.1} parent=95 // pred_region
          %801 = dma.done %s794, 6144
        $region116: #{tpu_custom_call.1} parent=95 // pred_fallthru
          _
        %s802 = sand.u32 %s33, 1
        %s803 = scalar_lea.sflag [#allocation5], %s802
        %s804 = sand.u32 %s272, 1
        %s805 = smul.addr %s804, 128
        %s806 = scalar_lea.vmem [#allocation12], %s805
        // Predicated region
        $region117: #{tpu_custom_call.1} parent=95 // pred_check
          %p807 = pneg %p285
        $region118: #{tpu_custom_call.1} parent=95 // pred_check_branch
          %809 = sbr.rel (%p807) target = $region120
        $region119: #{tpu_custom_call.1} parent=95 // pred_region
          %810 = dma.done %s803, 2048
        $region120: #{tpu_custom_call.1} parent=95 // pred_fallthru
          _
        %s811 = sand.u32 %s33, 1
        %s812 = scalar_lea.sflag [#allocation5], %s811
        %s813 = sand.u32 %s376, 1
        %s814 = smul.addr %s813, 64
        %s815 = scalar_lea.vmem [#allocation13], %s814
        // Predicated region
        $region121: #{tpu_custom_call.1} parent=95 // pred_check
          %p816 = pneg %p389
        $region122: #{tpu_custom_call.1} parent=95 // pred_check_branch
          %818 = sbr.rel (%p816) target = $region124
        $region123: #{tpu_custom_call.1} parent=95 // pred_region
          %819 = dma.done %s812, 1024
        $region124: #{tpu_custom_call.1} parent=95 // pred_fallthru
          _
        %s820 = sand.u32 %s33, 1
        %s821 = scalar_lea.sflag [#allocation5], %s820
        %s822 = sand.u32 %s428, 1
        %s823 = smul.addr %s822, 64
        %s824 = scalar_lea.vmem [#allocation14], %s823
        // Predicated region
        $region125: #{tpu_custom_call.1} parent=95 // pred_check
          %p825 = pneg %p441
        $region126: #{tpu_custom_call.1} parent=95 // pred_check_branch
          %827 = sbr.rel (%p825) target = $region128
        $region127: #{tpu_custom_call.1} parent=95 // pred_region
          %828 = dma.done %s821, 1024
        $region128: #{tpu_custom_call.1} parent=95 // pred_fallthru
          _
        %p829 = pneg %p66
        %p830 = pneg %p63
        %p831 = pneg %p87
        %p832 = pneg %p84
        %s833 = smul.u32 2, %s37
        %p834 = scmp.lt.s32.totalorder %s833, 1
        %s835 = scalar_select %p834, %s833, 1
        %s836 = scalar_lea.vmem %s2, %s835
        %p837 = pneg %p113
        %p838 = pneg %p110
        %p839 = pneg %p134
        %p840 = pneg %p131
        %p841 = pneg %p155
        %p842 = pneg %p152
        %p843 = scmp.lt.s32.totalorder %s38, 1
        %s844 = scalar_select %p843, %s38, 1
        %s845 = scalar_lea.vmem %s5, %s844
        %p846 = pneg %p181
        %p847 = pneg %p178
        %p848 = scmp.lt.s32.totalorder %s38, 1
        %s849 = scalar_select %p848, %s38, 1
        %s850 = scalar_lea.vmem %s6, %s849
        %p851 = pneg %p207
        %p852 = pneg %p204
        %s853 = sand.u32 %s33, 1
        %s854 = scalar_lea.sflag [#allocation5], %s853
        %s855 = sand.u32 %s220, 1
        %s856 = smul.addr %s855, 384
        %s857 = scalar_lea.vmem [#allocation11], %s856
        %p858 = pneg %p233
        %p859 = pneg %p230
        %p860 = scmp.lt.s32.totalorder %s38, 1
        %s861 = scalar_select %p860, %s38, 1
        %s862 = smul.addr %s861, 6
        %s863 = scalar_lea.vmem %s8, %s862
        %p864 = pneg %p259
        %p865 = pneg %p256
        %s866 = sand.u32 %s33, 1
        %s867 = scalar_lea.sflag [#allocation5], %s866
        %s868 = sand.u32 %s272, 1
        %s869 = smul.addr %s868, 128
        %s870 = scalar_lea.vmem [#allocation12], %s869
        %p871 = pneg %p285
        %p872 = pneg %p282
        %p873 = scmp.lt.s32.totalorder %s38, 1
        %s874 = scalar_select %p873, %s38, 1
        %s875 = scalar_lea.vmem %s10, %s874
        %p876 = pneg %p311
        %p877 = pneg %p308
        %p878 = scmp.lt.s32.totalorder %s38, 1
        %s879 = scalar_select %p878, %s38, 1
        %s880 = scalar_lea.vmem %s11, %s879
        %p881 = pneg %p337
        %p882 = pneg %p334
        %p883 = scmp.lt.s32.totalorder %s38, 1
        %s884 = scalar_select %p883, %s38, 1
        %s885 = scalar_lea.vmem %s12, %s884
        %p886 = pneg %p363
        %p887 = pneg %p360
        %s888 = sand.u32 %s33, 1
        %s889 = scalar_lea.sflag [#allocation5], %s888
        %s890 = sand.u32 %s376, 1
        %s891 = smul.addr %s890, 64
        %s892 = scalar_lea.vmem [#allocation13], %s891
        %p893 = pneg %p389
        %p894 = pneg %p386
        %p895 = scmp.lt.s32.totalorder %s38, 1
        %s896 = scalar_select %p895, %s38, 1
        %s897 = scalar_lea.vmem %s14, %s896
        %p898 = pneg %p415
        %p899 = pneg %p412
        %s900 = sand.u32 %s33, 1
        %s901 = scalar_lea.sflag [#allocation5], %s900
        %s902 = sand.u32 %s428, 1
        %s903 = smul.addr %s902, 64
        %s904 = scalar_lea.vmem [#allocation14], %s903
        %p905 = pneg %p441
        %p906 = pneg %p438
        %p907 = scmp.lt.s32.totalorder %s38, 1
        %s908 = scalar_select %p907, %s38, 1
        %s909 = scalar_lea.vmem %s16, %s908
        %p910 = pneg %p467
        %p911 = pneg %p464
        %s912 = smul.u32 2, %s37
        %p913 = scmp.lt.s32.totalorder %s912, 1
        %s914 = scalar_select %p913, %s912, 1
        %s915 = scalar_lea.vmem %s17, %s914
        %p916 = pneg %p493
        %p917 = pneg %p490
        %s918 = smul.u32 2, %s37
        %p919 = scmp.lt.s32.totalorder %s918, 1
        %s920 = scalar_select %p919, %s918, 1
        %s921 = scalar_lea.vmem %s18, %s920
        %p922 = pneg %p519
        %p923 = pneg %p516
        %p924 = pneg %p545
        %p925 = pneg %p542
        %p926 = scmp.lt.s32.totalorder %s37, 0
        %s927 = scalar_select %p926, %s37, 0
        %s928 = smul.addr %s927, 2
        %s929 = scalar_lea.vmem %s19, %s928
        %s930 = smul.u32 2, %s37
        %s931 = smul.u32 2, %s37
        %p932 = scmp.lt.s32.totalorder %s931, 1
        %s933 = scalar_select %p932, %s931, 1
        %s934 = scalar_lea.vmem %s2, %s933
        %s935 = smul.u32 2, %s37
        %p936 = scmp.lt.s32.totalorder %s38, 1
        %s937 = scalar_select %p936, %s38, 1
        %s938 = scalar_lea.vmem %s5, %s937
        %p939 = scmp.lt.s32.totalorder %s38, 1
        %s940 = scalar_select %p939, %s38, 1
        %s941 = scalar_lea.vmem %s6, %s940
        %p942 = scmp.lt.s32.totalorder %s38, 1
        %s943 = scalar_select %p942, %s38, 1
        %s944 = smul.addr %s943, 6
        %s945 = scalar_lea.vmem %s8, %s944
        %p946 = scmp.lt.s32.totalorder %s38, 1
        %s947 = scalar_select %p946, %s38, 1
        %s948 = scalar_lea.vmem %s10, %s947
        %p949 = scmp.lt.s32.totalorder %s38, 1
        %s950 = scalar_select %p949, %s38, 1
        %s951 = scalar_lea.vmem %s11, %s950
        %p952 = scmp.lt.s32.totalorder %s38, 1
        %s953 = scalar_select %p952, %s38, 1
        %s954 = scalar_lea.vmem %s12, %s953
        %p955 = scmp.lt.s32.totalorder %s38, 1
        %s956 = scalar_select %p955, %s38, 1
        %s957 = scalar_lea.vmem %s14, %s956
        %p958 = scmp.lt.s32.totalorder %s38, 1
        %s959 = scalar_select %p958, %s38, 1
        %s960 = scalar_lea.vmem %s16, %s959
        %s961 = smul.u32 2, %s37
        %p962 = scmp.lt.s32.totalorder %s961, 1
        %s963 = scalar_select %p962, %s961, 1
        %s964 = scalar_lea.vmem %s17, %s963
        %s965 = smul.u32 2, %s37
        %s966 = smul.u32 2, %s37
        %p967 = scmp.lt.s32.totalorder %s966, 1
        %s968 = scalar_select %p967, %s966, 1
        %s969 = scalar_lea.vmem %s18, %s968
        %s970 = smul.u32 2, %s37
        %p971 = scmp.lt.s32.totalorder %s37, 0
        %s972 = scalar_select %p971, %s37, 0
        %s973 = smul.addr %s972, 2
        %s974 = scalar_lea.vmem %s19, %s973
        %p976 = scmp.eq.s32.totalorder %s38, 0
        // Predicated region
        $region129: #{tpu_custom_call.1} parent=95 // pred_check
          %p977 = pneg %p976
        $region130: #{tpu_custom_call.1} parent=95 // pred_check_branch
          %979 = sbr.rel (%p977) target = $region132
        $region131: #{tpu_custom_call.1} parent=95 // pred_region
          %v980 = vld [vmem:[#allocation4] sm:$0xff]
          %v981 = vld [vmem:[#allocation4 + $0x8] sm:$0xff]
          %v982 = vld [vmem:[#allocation6] sm:$0xff]
          %v983 = vadd.f32 %v980, %v982
          %v984 = vadd.f32 %v981, %v982
          %v985 = vld [vmem:[#allocation8] sm:$0x1]
          %v986 = vld [vmem:[#allocation9] sm:$0x1]
          %987 = vadd.xlane.f32.xlu0 %v983
          %v988 = vpop.xlane.xlu0 %987
          %989 = vadd.xlane.f32.xlu0 %v984
          %v990 = vpop.xlane.xlu0 %989
          %v991 = vmul.f32 %v983, %v983
          %v992 = vmul.f32 %v984, %v984
          %993 = vadd.xlane.f32.xlu0 %v991
          %v994 = vpop.xlane.xlu0 %993
          %995 = vadd.xlane.f32.xlu0 %v992
          %v996 = vpop.xlane.xlu0 %995
          %v997 = vmul.f32 %v988, 0.03125
          %v998 = vmul.f32 %v990, 0.03125
          %v999 = vmul.f32 %v994, 0.03125
          %v1000 = vmul.f32 %v996, 0.03125
          %v1001 = vmul.f32 %v997, %v997
          %v1002 = vmul.f32 %v998, %v998
          %v1003 = vsub.f32 %v999, %v1001
          %v1004 = vsub.f32 %v1000, %v1002
          %v1005 = vsub.f32 %v983, %v997
          %v1006 = vsub.f32 %v984, %v998
          %v1007 = vadd.f32 %v1003, 1e-12
          %v1008 = vadd.f32 %v1004, 1e-12
          %v1009 = vrsqrt.pop %v1007
          %v1010 = vrsqrt.pop %v1008
          %v1011 = vmul.f32 %v1005, %v1009
          %v1012 = vmul.f32 %v1006, %v1010
          %v1014 = vlaneseq
          %v1015 = vshrl.u32 %v1014, 7
          %v1016 = vsub.s32 0, %v1015
          %v1017 = vrot.slane %v985, %v1016
          %v1019 = vmul.f32 %v1011, %v1017
          %v1020 = vmul.f32 %v1012, %v1017
          %v1022 = vlaneseq
          %v1023 = vshrl.u32 %v1022, 7
          %v1024 = vsub.s32 0, %v1023
          %v1025 = vrot.slane %v986, %v1024
          %v1027 = vadd.f32 %v1019, %v1025
          %v1028 = vadd.f32 %v1020, %v1025
          %1029 = vst [vmem:[#allocation2] sm:$0xff] %v1027
          %1030 = vst [vmem:[#allocation2 + $0x8] sm:$0xff] %v1028
          %v1031 = vlaneseq
          %v1032 = vshrl.u32 %v1031, 7
          %v1033 = vlaneseq
          %v1034 = vand.u32 %v1033, 127
          %vm1035 = vcmp.le.s32.totalorder %v1034, %v1032
          %v1036 = vld [vmem:[%s934] sm:$0x1]
          %v1037 = vld [vmem:[%s934 + $0x1] sm:$0x1]
          %vm1038 = vcmp.ne.f32.partialorder %v1036, 0.0
          %vm1039 = vcmp.ne.f32.partialorder %v1037, 0.0
          %v1040 = vsel %vm1035, 1, 0
          %vm1041 = vcmp.eq.s32.totalorder %v1040, 1
          %v1042 = vsel %vm1038, 1, 0
          %v1043 = vsel %vm1039, 1, 0
          %v1044 = vlaneseq
          %v1045 = vshrl.u32 %v1044, 7
          %v1046 = vsub.s32 0, %v1045
          %v1047 = vrot.slane %v1042, %v1046
          %v1048 = vlaneseq
          %v1049 = vshrl.u32 %v1048, 7
          %v1050 = vsub.s32 0, %v1049
          %v1051 = vrot.slane %v1043, %v1050
          %vm1052 = vcmp.eq.s32.totalorder %v1047, 1
          %vm1053 = vcmp.eq.s32.totalorder %v1051, 1
          %vm1054 = vmand %vm1041, %vm1052
          %vm1055 = vmand %vm1041, %vm1053
          %v1056 = vsel %vm1054, 0.0, -1e+09
          %v1057 = vsel %vm1055, 0.0, -1e+09
          %vm1058 = vcmask 64512
          %1059 = vst.msk [vmem:[#allocation3] sm:$0xff] %vm1058, %v1056
          %1060 = vst.msk [vmem:[#allocation3 + $0x8] sm:$0xff] %vm1058, %v1057
        $region132: #{tpu_custom_call.1} parent=95 // pred_fallthru
          _
        %v1061 = vld [vmem:[#allocation2] sm:$0xff]
        %v1062 = vld [vmem:[#allocation2 + $0x8] sm:$0xff]
        %v1063 = vld [vmem:[%s938] sm:$0x1]
        %v1064 = vld [vmem:[%s941] sm:$0x1]
        %1065 = vadd.xlane.f32.xlu0 %v1061
        %v1066 = vpop.xlane.xlu0 %1065
        %1067 = vadd.xlane.f32.xlu0 %v1062
        %v1068 = vpop.xlane.xlu0 %1067
        %v1069 = vmul.f32 %v1061, %v1061
        %v1070 = vmul.f32 %v1062, %v1062
        %1071 = vadd.xlane.f32.xlu0 %v1069
        %v1072 = vpop.xlane.xlu0 %1071
        %1073 = vadd.xlane.f32.xlu0 %v1070
        %v1074 = vpop.xlane.xlu0 %1073
        %v1075 = vmul.f32 %v1066, 0.03125
        %v1076 = vmul.f32 %v1068, 0.03125
        %v1077 = vmul.f32 %v1072, 0.03125
        %v1078 = vmul.f32 %v1074, 0.03125
        %v1079 = vmul.f32 %v1075, %v1075
        %v1080 = vmul.f32 %v1076, %v1076
        %v1081 = vsub.f32 %v1077, %v1079
        %v1082 = vsub.f32 %v1078, %v1080
        %v1083 = vsub.f32 %v1061, %v1075
        %v1084 = vsub.f32 %v1062, %v1076
        %v1085 = vadd.f32 %v1081, 1e-12
        %v1086 = vadd.f32 %v1082, 1e-12
        %v1087 = vrsqrt.pop %v1085
        %v1088 = vrsqrt.pop %v1086
        %v1089 = vmul.f32 %v1083, %v1087
        %v1090 = vmul.f32 %v1084, %v1088
        %v1092 = vlaneseq
        %v1093 = vshrl.u32 %v1092, 7
        %v1094 = vsub.s32 0, %v1093
        %v1095 = vrot.slane %v1063, %v1094
        %v1097 = vmul.f32 %v1089, %v1095
        %v1098 = vmul.f32 %v1090, %v1095
        %v1100 = vlaneseq
        %v1101 = vshrl.u32 %v1100, 7
        %v1102 = vsub.s32 0, %v1101
        %v1103 = vrot.slane %v1064, %v1102
        %v1105 = vadd.f32 %v1097, %v1103
        %v1106 = vadd.f32 %v1098, %v1103
        %v1107 = vpack.c.bf16 %v1106, %v1105
        %v1108 = vld [vmem:[%s797] sm:$0xff]
        %v1109 = vld [vmem:[%s797 + $0x8] sm:$0xff]
        %v1110 = vld [vmem:[%s797 + $0x10] sm:$0xff]
        %v1111 = vld [vmem:[%s797 + $0x18] sm:$0xff]
        %v1112 = vld [vmem:[%s797 + $0x20] sm:$0xff]
        %v1113 = vld [vmem:[%s797 + $0x28] sm:$0xff]
        %v1114 = vld [vmem:[%s797 + $0x30] sm:$0xff]
        %v1115 = vld [vmem:[%s797 + $0x38] sm:$0xff]
        %v1116 = vld [vmem:[%s797 + $0x40] sm:$0xff]
        %v1117 = vld [vmem:[%s797 + $0x48] sm:$0xff]
        %v1118 = vld [vmem:[%s797 + $0x50] sm:$0xff]
        %v1119 = vld [vmem:[%s797 + $0x58] sm:$0xff]
        %v1120 = vld [vmem:[%s797 + $0x60] sm:$0xff]
        %v1121 = vld [vmem:[%s797 + $0x68] sm:$0xff]
        %v1122 = vld [vmem:[%s797 + $0x70] sm:$0xff]
        %v1123 = vld [vmem:[%s797 + $0x78] sm:$0xff]
        %v1124 = vld [vmem:[%s797 + $0x80] sm:$0xff]
        %v1125 = vld [vmem:[%s797 + $0x88] sm:$0xff]
        %v1126 = vld [vmem:[%s797 + $0x90] sm:$0xff]
        %v1127 = vld [vmem:[%s797 + $0x98] sm:$0xff]
        %v1128 = vld [vmem:[%s797 + $0xa0] sm:$0xff]
        %v1129 = vld [vmem:[%s797 + $0xa8] sm:$0xff]
        %v1130 = vld [vmem:[%s797 + $0xb0] sm:$0xff]
        %v1131 = vld [vmem:[%s797 + $0xb8] sm:$0xff]
        %v1132 = vld [vmem:[%s797 + $0xc0] sm:$0xff]
        %v1133 = vld [vmem:[%s797 + $0xc8] sm:$0xff]
        %v1134 = vld [vmem:[%s797 + $0xd0] sm:$0xff]
        %v1135 = vld [vmem:[%s797 + $0xd8] sm:$0xff]
        %v1136 = vld [vmem:[%s797 + $0xe0] sm:$0xff]
        %v1137 = vld [vmem:[%s797 + $0xe8] sm:$0xff]
        %v1138 = vld [vmem:[%s797 + $0xf0] sm:$0xff]
        %v1139 = vld [vmem:[%s797 + $0xf8] sm:$0xff]
        %v1140 = vld [vmem:[%s797 + $0x100] sm:$0xff]
        %v1141 = vld [vmem:[%s797 + $0x108] sm:$0xff]
        %v1142 = vld [vmem:[%s797 + $0x110] sm:$0xff]
        %v1143 = vld [vmem:[%s797 + $0x118] sm:$0xff]
        %v1144 = vld [vmem:[%s797 + $0x120] sm:$0xff]
        %v1145 = vld [vmem:[%s797 + $0x128] sm:$0xff]
        %v1146 = vld [vmem:[%s797 + $0x130] sm:$0xff]
        %v1147 = vld [vmem:[%s797 + $0x138] sm:$0xff]
        %v1148 = vld [vmem:[%s797 + $0x140] sm:$0xff]
        %v1149 = vld [vmem:[%s797 + $0x148] sm:$0xff]
        %v1150 = vld [vmem:[%s797 + $0x150] sm:$0xff]
        %v1151 = vld [vmem:[%s797 + $0x158] sm:$0xff]
        %v1152 = vld [vmem:[%s797 + $0x160] sm:$0xff]
        %v1153 = vld [vmem:[%s797 + $0x168] sm:$0xff]
        %v1154 = vld [vmem:[%s797 + $0x170] sm:$0xff]
        %v1155 = vld [vmem:[%s797 + $0x178] sm:$0xff]
        %v1156 = vld [vmem:[%s945] sm:$0x3f]
        %v1158 = vlaneseq
        %v1159 = vshrl.u32 %v1158, 7
        %v1160 = vsub.s32 0, %v1159
        %v1161 = vrot.slane %v1156, %v1160
        %v1162 = vlaneseq
        %v1163 = vshrl.u32 %v1162, 7
        %v1164 = vsub.s32 1, %v1163
        %v1165 = vrot.slane %v1156, %v1164
        %v1166 = vlaneseq
        %v1167 = vshrl.u32 %v1166, 7
        %v1168 = vsub.s32 2, %v1167
        %v1169 = vrot.slane %v1156, %v1168
        %v1170 = vlaneseq
        %v1171 = vshrl.u32 %v1170, 7
        %v1172 = vsub.s32 3, %v1171
        %v1173 = vrot.slane %v1156, %v1172
        %v1174 = vlaneseq
        %v1175 = vshrl.u32 %v1174, 7
        %v1176 = vsub.s32 4, %v1175
        %v1177 = vrot.slane %v1156, %v1176
        %v1178 = vlaneseq
        %v1179 = vshrl.u32 %v1178, 7
        %v1180 = vsub.s32 5, %v1179
        %v1181 = vrot.slane %v1156, %v1180
        %v1236 = vunpack.c.l.b16 %v1108
        %v1237 = vunpack.c.h.b16 %v1108
        %v1238 = vunpack.c.l.b16 %v1109
        %v1239 = vunpack.c.h.b16 %v1109
        %v1240 = vunpack.c.l.b16 %v1110
        %v1241 = vunpack.c.h.b16 %v1110
        %v1242 = vunpack.c.l.b16 %v1111
        %v1243 = vunpack.c.h.b16 %v1111
        %v1244 = vunpack.c.l.b16 %v1112
        %v1245 = vunpack.c.h.b16 %v1112
        %v1246 = vunpack.c.l.b16 %v1113
        %v1247 = vunpack.c.h.b16 %v1113
        %v1248 = vunpack.c.l.b16 %v1114
        %v1249 = vunpack.c.h.b16 %v1114
        %v1250 = vunpack.c.l.b16 %v1115
        %v1251 = vunpack.c.h.b16 %v1115
        %v1252 = vunpack.c.l.b16 %v1116
        %v1253 = vunpack.c.h.b16 %v1116
        %v1254 = vunpack.c.l.b16 %v1117
        %v1255 = vunpack.c.h.b16 %v1117
        %v1256 = vunpack.c.l.b16 %v1118
        %v1257 = vunpack.c.h.b16 %v1118
        %v1258 = vunpack.c.l.b16 %v1119
        %v1259 = vunpack.c.h.b16 %v1119
        %v1260 = vunpack.c.l.b16 %v1120
        %v1261 = vunpack.c.h.b16 %v1120
        %v1262 = vunpack.c.l.b16 %v1121
        %v1263 = vunpack.c.h.b16 %v1121
        %v1264 = vunpack.c.l.b16 %v1122
        %v1265 = vunpack.c.h.b16 %v1122
        %v1266 = vunpack.c.l.b16 %v1123
        %v1267 = vunpack.c.h.b16 %v1123
        %v1268 = vunpack.c.l.b16 %v1124
        %v1269 = vunpack.c.h.b16 %v1124
        %v1270 = vunpack.c.l.b16 %v1125
        %v1271 = vunpack.c.h.b16 %v1125
        %v1272 = vunpack.c.l.b16 %v1126
        %v1273 = vunpack.c.h.b16 %v1126
        %v1274 = vunpack.c.l.b16 %v1127
        %v1275 = vunpack.c.h.b16 %v1127
        %v1276 = vunpack.c.l.b16 %v1128
        %v1277 = vunpack.c.h.b16 %v1128
        %v1278 = vunpack.c.l.b16 %v1129
        %v1279 = vunpack.c.h.b16 %v1129
        %v1280 = vunpack.c.l.b16 %v1130
        %v1281 = vunpack.c.h.b16 %v1130
        %v1282 = vunpack.c.l.b16 %v1131
        %v1283 = vunpack.c.h.b16 %v1131
        %v1284 = vunpack.c.l.b16 %v1132
        %v1285 = vunpack.c.h.b16 %v1132
        %v1286 = vunpack.c.l.b16 %v1133
        %v1287 = vunpack.c.h.b16 %v1133
        %v1288 = vunpack.c.l.b16 %v1134
        %v1289 = vunpack.c.h.b16 %v1134
        %v1290 = vunpack.c.l.b16 %v1135
        %v1291 = vunpack.c.h.b16 %v1135
        %v1292 = vunpack.c.l.b16 %v1136
        %v1293 = vunpack.c.h.b16 %v1136
        %v1294 = vunpack.c.l.b16 %v1137
        %v1295 = vunpack.c.h.b16 %v1137
        %v1296 = vunpack.c.l.b16 %v1138
        %v1297 = vunpack.c.h.b16 %v1138
        %v1298 = vunpack.c.l.b16 %v1139
        %v1299 = vunpack.c.h.b16 %v1139
        %v1300 = vunpack.c.l.b16 %v1140
        %v1301 = vunpack.c.h.b16 %v1140
        %v1302 = vunpack.c.l.b16 %v1141
        %v1303 = vunpack.c.h.b16 %v1141
        %v1304 = vunpack.c.l.b16 %v1142
        %v1305 = vunpack.c.h.b16 %v1142
        %v1306 = vunpack.c.l.b16 %v1143
        %v1307 = vunpack.c.h.b16 %v1143
        %v1308 = vunpack.c.l.b16 %v1144
        %v1309 = vunpack.c.h.b16 %v1144
        %v1310 = vunpack.c.l.b16 %v1145
        %v1311 = vunpack.c.h.b16 %v1145
        %v1312 = vunpack.c.l.b16 %v1146
        %v1313 = vunpack.c.h.b16 %v1146
        %v1314 = vunpack.c.l.b16 %v1147
        %v1315 = vunpack.c.h.b16 %v1147
        %v1316 = vunpack.c.l.b16 %v1148
        %v1317 = vunpack.c.h.b16 %v1148
        %v1318 = vunpack.c.l.b16 %v1149
        %v1319 = vunpack.c.h.b16 %v1149
        %v1320 = vunpack.c.l.b16 %v1150
        %v1321 = vunpack.c.h.b16 %v1150
        %v1322 = vunpack.c.l.b16 %v1151
        %v1323 = vunpack.c.h.b16 %v1151
        %v1324 = vunpack.c.l.b16 %v1152
        %v1325 = vunpack.c.h.b16 %v1152
        %v1326 = vunpack.c.l.b16 %v1153
        %v1327 = vunpack.c.h.b16 %v1153
        %v1328 = vunpack.c.l.b16 %v1154
        %v1329 = vunpack.c.h.b16 %v1154
        %v1330 = vunpack.c.l.b16 %v1155
        %v1331 = vunpack.c.h.b16 %v1155
        %v1332 = vpack.c.b16 %v1242, %v1236
        %v1333 = vpack.c.b16 %v1243, %v1237
        %v1334 = vpack.c.b16 %v1244, %v1238
        %v1335 = vpack.c.b16 %v1245, %v1239
        %v1336 = vpack.c.b16 %v1246, %v1240
        %v1337 = vpack.c.b16 %v1247, %v1241
        %v1338 = vpack.c.b16 %v1254, %v1248
        %v1339 = vpack.c.b16 %v1255, %v1249
        %v1340 = vpack.c.b16 %v1256, %v1250
        %v1341 = vpack.c.b16 %v1257, %v1251
        %v1342 = vpack.c.b16 %v1258, %v1252
        %v1343 = vpack.c.b16 %v1259, %v1253
        %v1344 = vpack.c.b16 %v1266, %v1260
        %v1345 = vpack.c.b16 %v1267, %v1261
        %v1346 = vpack.c.b16 %v1268, %v1262
        %v1347 = vpack.c.b16 %v1269, %v1263
        %v1348 = vpack.c.b16 %v1270, %v1264
        %v1349 = vpack.c.b16 %v1271, %v1265
        %v1350 = vpack.c.b16 %v1278, %v1272
        %v1351 = vpack.c.b16 %v1279, %v1273
        %v1352 = vpack.c.b16 %v1280, %v1274
        %v1353 = vpack.c.b16 %v1281, %v1275
        %v1354 = vpack.c.b16 %v1282, %v1276
        %v1355 = vpack.c.b16 %v1283, %v1277
        %v1356 = vpack.c.b16 %v1290, %v1284
        %v1357 = vpack.c.b16 %v1291, %v1285
        %v1358 = vpack.c.b16 %v1292, %v1286
        %v1359 = vpack.c.b16 %v1293, %v1287
        %v1360 = vpack.c.b16 %v1294, %v1288
        %v1361 = vpack.c.b16 %v1295, %v1289
        %v1362 = vpack.c.b16 %v1302, %v1296
        %v1363 = vpack.c.b16 %v1303, %v1297
        %v1364 = vpack.c.b16 %v1304, %v1298
        %v1365 = vpack.c.b16 %v1305, %v1299
        %v1366 = vpack.c.b16 %v1306, %v1300
        %v1367 = vpack.c.b16 %v1307, %v1301
        %v1368 = vpack.c.b16 %v1314, %v1308
        %v1369 = vpack.c.b16 %v1315, %v1309
        %v1370 = vpack.c.b16 %v1316, %v1310
        %v1371 = vpack.c.b16 %v1317, %v1311
        %v1372 = vpack.c.b16 %v1318, %v1312
        %v1373 = vpack.c.b16 %v1319, %v1313
        %v1374 = vpack.c.b16 %v1326, %v1320
        %v1375 = vpack.c.b16 %v1327, %v1321
        %v1376 = vpack.c.b16 %v1328, %v1322
        %v1377 = vpack.c.b16 %v1329, %v1323
        %v1378 = vpack.c.b16 %v1330, %v1324
        %v1379 = vpack.c.b16 %v1331, %v1325
        %1428 = vmatprep.subr.bf16.mxu0 %v1333
        %1429 = vmatpush1.bf16.msra.mxu0 %v1332
        %1430 = vmatprep.subr.bf16.mxu0 %v1339
        %1431 = vmatpush1.bf16.msra.mxu0 %v1338
        %1432 = vmatprep.subr.bf16.mxu0 %v1345
        %1433 = vmatpush1.bf16.msra.mxu0 %v1344
        %1434 = vmatprep.subr.bf16.mxu0 %v1351
        %1435 = vmatpush1.bf16.msra.mxu0 %v1350
        %1436 = vmatprep.subr.bf16.mxu0 %v1357
        %1437 = vmatpush1.bf16.msra.mxu0 %v1356
        %1438 = vmatprep.subr.bf16.mxu0 %v1363
        %1439 = vmatpush1.bf16.msra.mxu0 %v1362
        %1440 = vmatprep.subr.bf16.mxu0 %v1369
        %1441 = vmatpush1.bf16.msra.mxu0 %v1368
        %1442 = vmatprep.subr.bf16.mxu0 %v1375
        %1443 = vmatpush1.bf16.msra.mxu0 %v1374
        %1444 = vmatprep.subr.bf16.mxu0 0
        %1445 = vmatpush1.bf16.msra.mxu0 0
        %1446 = vmatprep.subr.bf16.mxu0 0
        %1447 = vmatpush1.bf16.msra.mxu0 0
        %1448 = vmatprep.subr.bf16.mxu0 0
        %1449 = vmatpush1.bf16.msra.mxu0 0
        %1450 = vmatprep.subr.bf16.mxu0 0
        %1451 = vmatpush1.bf16.msra.mxu0 0
        %1452 = vmatprep.subr.bf16.mxu0 0
        %1453 = vmatpush1.bf16.msra.mxu0 0
        %1454 = vmatprep.subr.bf16.mxu0 0
        %1455 = vmatpush1.bf16.msra.mxu0 0
        %1456 = vmatprep.subr.bf16.mxu0 0
        %1457 = vmatpush1.bf16.msra.mxu0 0
        %1458 = vmatprep.subr.bf16.mxu0 0
        %1459 = vmatpush1.bf16.msra.mxu0 0
        %1460 = vmatprep.mubr.bf16.mxu0 0
        %1461 = vmatmul.mubr.bf16.gmra.mrb[0].mxu0 %v1107
        %v1462 = vpop.f32.mrb[0].mxu0
        %v1463 = vadd.f32 %v1161, %v1462
        %v1464 = vpop.f32.mrb[0].mxu0
        %v1465 = vadd.f32 %v1165, %v1464
        %v1466 = vpop.f32.mrb[0].mxu0
        %v1467 = vadd.f32 %v1161, %v1466
        %v1468 = vpop.f32.mrb[0].mxu0
        %v1469 = vadd.f32 %v1165, %v1468
        %1470 = vdwg.mxu0
        %1471 = vmatprep.subr.bf16.mxu0 %v1335
        %1472 = vmatpush1.bf16.msra.mxu0 %v1334
        %1473 = vmatprep.subr.bf16.mxu0 %v1341
        %1474 = vmatpush1.bf16.msra.mxu0 %v1340
        %1475 = vmatprep.subr.bf16.mxu0 %v1347
        %1476 = vmatpush1.bf16.msra.mxu0 %v1346
        %1477 = vmatprep.subr.bf16.mxu0 %v1353
        %1478 = vmatpush1.bf16.msra.mxu0 %v1352
        %1479 = vmatprep.subr.bf16.mxu0 %v1359
        %1480 = vmatpush1.bf16.msra.mxu0 %v1358
        %1481 = vmatprep.subr.bf16.mxu0 %v1365
        %1482 = vmatpush1.bf16.msra.mxu0 %v1364
        %1483 = vmatprep.subr.bf16.mxu0 %v1371
        %1484 = vmatpush1.bf16.msra.mxu0 %v1370
        %1485 = vmatprep.subr.bf16.mxu0 %v1377
        %1486 = vmatpush1.bf16.msra.mxu0 %v1376
        %1487 = vmatprep.subr.bf16.mxu0 0
        %1488 = vmatpush1.bf16.msra.mxu0 0
        %1489 = vmatprep.subr.bf16.mxu0 0
        %1490 = vmatpush1.bf16.msra.mxu0 0
        %1491 = vmatprep.subr.bf16.mxu0 0
        %1492 = vmatpush1.bf16.msra.mxu0 0
        %1493 = vmatprep.subr.bf16.mxu0 0
        %1494 = vmatpush1.bf16.msra.mxu0 0
        %1495 = vmatprep.subr.bf16.mxu0 0
        %1496 = vmatpush1.bf16.msra.mxu0 0
        %1497 = vmatprep.subr.bf16.mxu0 0
        %1498 = vmatpush1.bf16.msra.mxu0 0
        %1499 = vmatprep.subr.bf16.mxu0 0
        %1500 = vmatpush1.bf16.msra.mxu0 0
        %1501 = vmatprep.subr.bf16.mxu0 0
        %1502 = vmatpush1.bf16.msra.mxu0 0
        %1503 = vmatprep.mubr.bf16.mxu0 0
        %1504 = vmatmul.mubr.bf16.gmra.mrb[0].mxu0 %v1107
        %v1505 = vpop.f32.mrb[0].mxu0
        %v1506 = vadd.f32 %v1169, %v1505
        %v1507 = vpop.f32.mrb[0].mxu0
        %v1508 = vadd.f32 %v1173, %v1507
        %v1509 = vpop.f32.mrb[0].mxu0
        %v1510 = vadd.f32 %v1169, %v1509
        %v1511 = vpop.f32.mrb[0].mxu0
        %v1512 = vadd.f32 %v1173, %v1511
        %1513 = vdwg.mxu0
        %1514 = vmatprep.subr.bf16.mxu0 %v1337
        %1515 = vmatpush1.bf16.msra.mxu0 %v1336
        %1516 = vmatprep.subr.bf16.mxu0 %v1343
        %1517 = vmatpush1.bf16.msra.mxu0 %v1342
        %1518 = vmatprep.subr.bf16.mxu0 %v1349
        %1519 = vmatpush1.bf16.msra.mxu0 %v1348
        %1520 = vmatprep.subr.bf16.mxu0 %v1355
        %1521 = vmatpush1.bf16.msra.mxu0 %v1354
        %1522 = vmatprep.subr.bf16.mxu0 %v1361
        %1523 = vmatpush1.bf16.msra.mxu0 %v1360
        %1524 = vmatprep.subr.bf16.mxu0 %v1367
        %1525 = vmatpush1.bf16.msra.mxu0 %v1366
        %1526 = vmatprep.subr.bf16.mxu0 %v1373
        %1527 = vmatpush1.bf16.msra.mxu0 %v1372
        %1528 = vmatprep.subr.bf16.mxu0 %v1379
        %1529 = vmatpush1.bf16.msra.mxu0 %v1378
        %1530 = vmatprep.subr.bf16.mxu0 0
        %1531 = vmatpush1.bf16.msra.mxu0 0
        %1532 = vmatprep.subr.bf16.mxu0 0
        %1533 = vmatpush1.bf16.msra.mxu0 0
        %1534 = vmatprep.subr.bf16.mxu0 0
        %1535 = vmatpush1.bf16.msra.mxu0 0
        %1536 = vmatprep.subr.bf16.mxu0 0
        %1537 = vmatpush1.bf16.msra.mxu0 0
        %1538 = vmatprep.subr.bf16.mxu0 0
        %1539 = vmatpush1.bf16.msra.mxu0 0
        %1540 = vmatprep.subr.bf16.mxu0 0
        %1541 = vmatpush1.bf16.msra.mxu0 0
        %1542 = vmatprep.subr.bf16.mxu0 0
        %1543 = vmatpush1.bf16.msra.mxu0 0
        %1544 = vmatprep.subr.bf16.mxu0 0
        %1545 = vmatpush1.bf16.msra.mxu0 0
        %1546 = vmatprep.mubr.bf16.mxu0 0
        %1547 = vmatmul.mubr.bf16.gmra.mrb[0].mxu0 %v1107
        %v1548 = vpop.f32.mrb[0].mxu0
        %v1549 = vadd.f32 %v1177, %v1548
        %v1550 = vpop.f32.mrb[0].mxu0
        %v1551 = vadd.f32 %v1181, %v1550
        %v1552 = vpop.f32.mrb[0].mxu0
        %v1553 = vadd.f32 %v1177, %v1552
        %v1554 = vpop.f32.mrb[0].mxu0
        %v1555 = vadd.f32 %v1181, %v1554
        %1556 = vdwg.mxu0
        %v1557 = vpack.c.bf16 %v1463, %v1463
        %v1558 = vpack.c.bf16 %v1465, %v1465
        %v1559 = vpack.c.bf16 %v1506, %v1506
        %v1560 = vpack.c.bf16 %v1508, %v1508
        %v1561 = vpack.c.bf16 %v1549, %v1549
        %v1562 = vpack.c.bf16 %v1551, %v1551
        %v1563 = vpack.c.bf16 %v1467, %v1467
        %v1564 = vpack.c.bf16 %v1469, %v1469
        %v1565 = vpack.c.bf16 %v1510, %v1510
        %v1566 = vpack.c.bf16 %v1512, %v1512
        %v1567 = vpack.c.bf16 %v1553, %v1553
        %v1568 = vpack.c.bf16 %v1555, %v1555
        %v1569 = vld [vmem:[#allocation3] sm:$0xff]
        %v1570 = vld [vmem:[#allocation3 + $0x8] sm:$0xff]
        %1571 = vmatprep.subr.bf16.mxu0 0
        %1572 = vmatpush1.bf16.xpose.msra.mxu0 %v1559
        %1573 = vmatprep.subr.bf16.mxu0 0
        %1574 = vmatpush1.bf16.xpose.msra.mxu0 0
        %1575 = vmatprep.subr.bf16.mxu0 0
        %1576 = vmatpush1.bf16.xpose.msra.mxu0 0
        %1577 = vmatprep.subr.bf16.mxu0 0
        %1578 = vmatpush1.bf16.xpose.msra.mxu0 0
        %1579 = vmatprep.subr.bf16.mxu0 0
        %1580 = vmatpush1.bf16.xpose.msra.mxu0 0
        %1581 = vmatprep.subr.bf16.mxu0 0
        %1582 = vmatpush1.bf16.xpose.msra.mxu0 0
        %1583 = vmatprep.subr.bf16.mxu0 0
        %1584 = vmatpush1.bf16.xpose.msra.mxu0 0
        %1585 = vmatprep.subr.bf16.mxu0 0
        %1586 = vmatpush1.bf16.xpose.msra.mxu0 0
        %1587 = vmatprep.subr.bf16.mxu0 0
        %1588 = vmatpush1.bf16.xpose.msra.mxu0 0
        %1589 = vmatprep.subr.bf16.mxu0 0
        %1590 = vmatpush1.bf16.xpose.msra.mxu0 0
        %1591 = vmatprep.subr.bf16.mxu0 0
        %1592 = vmatpush1.bf16.xpose.msra.mxu0 0
        %1593 = vmatprep.subr.bf16.mxu0 0
        %1594 = vmatpush1.bf16.xpose.msra.mxu0 0
        %1595 = vmatprep.subr.bf16.mxu0 0
        %1596 = vmatpush1.bf16.xpose.msra.mxu0 0
        %1597 = vmatprep.subr.bf16.mxu0 0
        %1598 = vmatpush1.bf16.xpose.msra.mxu0 0
        %1599 = vmatprep.subr.bf16.mxu0 0
        %1600 = vmatpush1.bf16.xpose.msra.mxu0 0
        %1601 = vmatprep.subr.bf16.mxu0 0
        %1602 = vmatpush1.bf16.xpose.msra.mxu0 0
        %1603 = vmatprep.mubr.bf16.mxu0 0
        %1604 = vmatmul.mubr.bf16.gmra.mrb[0].mxu0 %v1557
        %v1605 = vpop.f32.mrb[0].mxu0
        %v1606 = vadd.f32 %v1569, %v1605
        %v1607 = vpop.f32.mrb[0].mxu0
        %v1608 = vpop.f32.mrb[0].mxu0
        %v1609 = vpop.f32.mrb[0].mxu0
        %1610 = vdwg.mxu0
        %1611 = vmatprep.subr.bf16.mxu0 0
        %1612 = vmatpush1.bf16.xpose.msra.mxu0 %v1565
        %1613 = vmatprep.subr.bf16.mxu0 0
        %1614 = vmatpush1.bf16.xpose.msra.mxu0 0
        %1615 = vmatprep.subr.bf16.mxu0 0
        %1616 = vmatpush1.bf16.xpose.msra.mxu0 0
        %1617 = vmatprep.subr.bf16.mxu0 0
        %1618 = vmatpush1.bf16.xpose.msra.mxu0 0
        %1619 = vmatprep.subr.bf16.mxu0 0
        %1620 = vmatpush1.bf16.xpose.msra.mxu0 0
        %1621 = vmatprep.subr.bf16.mxu0 0
        %1622 = vmatpush1.bf16.xpose.msra.mxu0 0
        %1623 = vmatprep.subr.bf16.mxu0 0
        %1624 = vmatpush1.bf16.xpose.msra.mxu0 0
        %1625 = vmatprep.subr.bf16.mxu0 0
        %1626 = vmatpush1.bf16.xpose.msra.mxu0 0
        %1627 = vmatprep.subr.bf16.mxu0 0
        %1628 = vmatpush1.bf16.xpose.msra.mxu0 0
        %1629 = vmatprep.subr.bf16.mxu0 0
        %1630 = vmatpush1.bf16.xpose.msra.mxu0 0
        %1631 = vmatprep.subr.bf16.mxu0 0
        %1632 = vmatpush1.bf16.xpose.msra.mxu0 0
        %1633 = vmatprep.subr.bf16.mxu0 0
        %1634 = vmatpush1.bf16.xpose.msra.mxu0 0
        %1635 = vmatprep.subr.bf16.mxu0 0
        %1636 = vmatpush1.bf16.xpose.msra.mxu0 0
        %1637 = vmatprep.subr.bf16.mxu0 0
        %1638 = vmatpush1.bf16.xpose.msra.mxu0 0
        %1639 = vmatprep.subr.bf16.mxu0 0
        %1640 = vmatpush1.bf16.xpose.msra.mxu0 0
        %1641 = vmatprep.subr.bf16.mxu0 0
        %1642 = vmatpush1.bf16.xpose.msra.mxu0 0
        %1643 = vmatprep.mubr.bf16.mxu0 0
        %1644 = vmatmul.mubr.bf16.gmra.mrb[0].mxu0 %v1563
        %v1645 = vpop.f32.mrb[0].mxu0
        %v1646 = vadd.f32 %v1570, %v1645
        %v1647 = vpop.f32.mrb[0].mxu0
        %v1648 = vpop.f32.mrb[0].mxu0
        %v1649 = vpop.f32.mrb[0].mxu0
        %1650 = vdwg.mxu0
        %vm1651 = vcmask 64512
        %v1652 = vsel %vm1651, %v1606, -inf
        %1653 = vmax.xlane.f32.xlu0 %v1652
        %v1654 = vpop.xlane.xlu0 %1653
        %v1655 = vsel %vm1651, %v1646, -inf
        %1656 = vmax.xlane.f32.xlu0 %v1655
        %v1657 = vpop.xlane.xlu0 %1656
        %v1658 = vsub.f32 %v1606, %v1654
        %v1659 = vsub.f32 %v1646, %v1657
        %v1660 = vmul.f32 %v1658, 1.442695
        %v1661 = vpow.pop %v1660
        %v1662 = vmul.f32 %v1659, 1.442695
        %v1663 = vpow.pop %v1662
        %v1664 = vsel %vm1651, %v1661, 0.0
        %1665 = vadd.xlane.f32.xlu0 %v1664
        %v1666 = vpop.xlane.xlu0 %1665
        %v1667 = vsel %vm1651, %v1663, 0.0
        %1668 = vadd.xlane.f32.xlu0 %v1667
        %v1669 = vpop.xlane.xlu0 %1668
        %v1670 = vrcp.pop %v1666
        %v1671 = vrcp.pop %v1669
        %v1672 = vmul.f32 %v1661, %v1670
        %v1673 = vmul.f32 %v1663, %v1671
        %v1674 = vpack.c.bf16 %v1672, %v1672
        %v1675 = vpack.c.bf16 %v1673, %v1673
        %v1677 = vsel %vm1651, %v1674, 0
        %vm1679 = vcmask 1043456
        %v1681 = vsel %vm1679, %v1561, 0
        %1683 = vmatprep.subr.bf16.mxu0 0
        %1684 = vmatpush1.bf16.msra.mxu0 %v1681
        %1685 = vmatprep.subr.bf16.mxu0 0
        %1686 = vmatpush1.bf16.msra.mxu0 0
        %1687 = vmatprep.subr.bf16.mxu0 0
        %1688 = vmatpush1.bf16.msra.mxu0 0
        %1689 = vmatprep.subr.bf16.mxu0 0
        %1690 = vmatpush1.bf16.msra.mxu0 0
        %1691 = vmatprep.subr.bf16.mxu0 0
        %1692 = vmatpush1.bf16.msra.mxu0 0
        %1693 = vmatprep.subr.bf16.mxu0 0
        %1694 = vmatpush1.bf16.msra.mxu0 0
        %1695 = vmatprep.subr.bf16.mxu0 0
        %1696 = vmatpush1.bf16.msra.mxu0 0
        %1697 = vmatprep.subr.bf16.mxu0 0
        %1698 = vmatpush1.bf16.msra.mxu0 0
        %1699 = vmatprep.subr.bf16.mxu0 0
        %1700 = vmatpush1.bf16.msra.mxu0 0
        %1701 = vmatprep.subr.bf16.mxu0 0
        %1702 = vmatpush1.bf16.msra.mxu0 0
        %1703 = vmatprep.subr.bf16.mxu0 0
        %1704 = vmatpush1.bf16.msra.mxu0 0
        %1705 = vmatprep.subr.bf16.mxu0 0
        %1706 = vmatpush1.bf16.msra.mxu0 0
        %1707 = vmatprep.subr.bf16.mxu0 0
        %1708 = vmatpush1.bf16.msra.mxu0 0
        %1709 = vmatprep.subr.bf16.mxu0 0
        %1710 = vmatpush1.bf16.msra.mxu0 0
        %1711 = vmatprep.subr.bf16.mxu0 0
        %1712 = vmatpush1.bf16.msra.mxu0 0
        %1713 = vmatprep.subr.bf16.mxu0 0
        %1714 = vmatpush1.bf16.msra.mxu0 0
        %1715 = vmatprep.mubr.bf16.mxu0 0
        %1716 = vmatmul.mubr.bf16.gmra.mrb[0].mxu0 %v1677
        %v1717 = vpop.f32.mrb[0].mxu0
        %v1718 = vadd.f32 0.0, %v1717
        %v1719 = vpop.f32.mrb[0].mxu0
        %v1720 = vpop.f32.mrb[0].mxu0
        %v1721 = vpop.f32.mrb[0].mxu0
        %1722 = vdwg.mxu0
        %v1724 = vsel %vm1651, %v1675, 0
        %v1727 = vsel %vm1679, %v1567, 0
        %1729 = vmatprep.subr.bf16.mxu0 0
        %1730 = vmatpush1.bf16.msra.mxu0 %v1727
        %1731 = vmatprep.subr.bf16.mxu0 0
        %1732 = vmatpush1.bf16.msra.mxu0 0
        %1733 = vmatprep.subr.bf16.mxu0 0
        %1734 = vmatpush1.bf16.msra.mxu0 0
        %1735 = vmatprep.subr.bf16.mxu0 0
        %1736 = vmatpush1.bf16.msra.mxu0 0
        %1737 = vmatprep.subr.bf16.mxu0 0
        %1738 = vmatpush1.bf16.msra.mxu0 0
        %1739 = vmatprep.subr.bf16.mxu0 0
        %1740 = vmatpush1.bf16.msra.mxu0 0
        %1741 = vmatprep.subr.bf16.mxu0 0
        %1742 = vmatpush1.bf16.msra.mxu0 0
        %1743 = vmatprep.subr.bf16.mxu0 0
        %1744 = vmatpush1.bf16.msra.mxu0 0
        %1745 = vmatprep.subr.bf16.mxu0 0
        %1746 = vmatpush1.bf16.msra.mxu0 0
        %1747 = vmatprep.subr.bf16.mxu0 0
        %1748 = vmatpush1.bf16.msra.mxu0 0
        %1749 = vmatprep.subr.bf16.mxu0 0
        %1750 = vmatpush1.bf16.msra.mxu0 0
        %1751 = vmatprep.subr.bf16.mxu0 0
        %1752 = vmatpush1.bf16.msra.mxu0 0
        %1753 = vmatprep.subr.bf16.mxu0 0
        %1754 = vmatpush1.bf16.msra.mxu0 0
        %1755 = vmatprep.subr.bf16.mxu0 0
        %1756 = vmatpush1.bf16.msra.mxu0 0
        %1757 = vmatprep.subr.bf16.mxu0 0
        %1758 = vmatpush1.bf16.msra.mxu0 0
        %1759 = vmatprep.subr.bf16.mxu0 0
        %1760 = vmatpush1.bf16.msra.mxu0 0
        %1761 = vmatprep.mubr.bf16.mxu0 0
        %1762 = vmatmul.mubr.bf16.gmra.mrb[0].mxu0 %v1724
        %v1763 = vpop.f32.mrb[0].mxu0
        %v1764 = vadd.f32 0.0, %v1763
        %v1765 = vpop.f32.mrb[0].mxu0
        %v1766 = vpop.f32.mrb[0].mxu0
        %v1767 = vpop.f32.mrb[0].mxu0
        %1768 = vdwg.mxu0
        %v1769 = vpack.c.bf16 %v1764, %v1718
        %v1770 = vld [vmem:[%s806] sm:$0xf]
        %v1771 = vld [vmem:[%s806 + $0x4] sm:$0xf]
        %v1772 = vld [vmem:[%s806 + $0x8] sm:$0xf]
        %v1773 = vld [vmem:[%s806 + $0xc] sm:$0xf]
        %v1774 = vld [vmem:[%s806 + $0x10] sm:$0xf]
        %v1775 = vld [vmem:[%s806 + $0x14] sm:$0xf]
        %v1776 = vld [vmem:[%s806 + $0x18] sm:$0xf]
        %v1777 = vld [vmem:[%s806 + $0x1c] sm:$0xf]
        %v1778 = vld [vmem:[%s806 + $0x20] sm:$0xf]
        %v1779 = vld [vmem:[%s806 + $0x24] sm:$0xf]
        %v1780 = vld [vmem:[%s806 + $0x28] sm:$0xf]
        %v1781 = vld [vmem:[%s806 + $0x2c] sm:$0xf]
        %v1782 = vld [vmem:[%s806 + $0x30] sm:$0xf]
        %v1783 = vld [vmem:[%s806 + $0x34] sm:$0xf]
        %v1784 = vld [vmem:[%s806 + $0x38] sm:$0xf]
        %v1785 = vld [vmem:[%s806 + $0x3c] sm:$0xf]
        %1786 = vmatprep.subr.bf16.mxu0 0
        %1787 = vmatpush1.bf16.xpose.msra.mxu0 %v1560
        %1788 = vmatprep.subr.bf16.mxu0 0
        %1789 = vmatpush1.bf16.xpose.msra.mxu0 0
        %1790 = vmatprep.subr.bf16.mxu0 0
        %1791 = vmatpush1.bf16.xpose.msra.mxu0 0
        %1792 = vmatprep.subr.bf16.mxu0 0
        %1793 = vmatpush1.bf16.xpose.msra.mxu0 0
        %1794 = vmatprep.subr.bf16.mxu0 0
        %1795 = vmatpush1.bf16.xpose.msra.mxu0 0
        %1796 = vmatprep.subr.bf16.mxu0 0
        %1797 = vmatpush1.bf16.xpose.msra.mxu0 0
        %1798 = vmatprep.subr.bf16.mxu0 0
        %1799 = vmatpush1.bf16.xpose.msra.mxu0 0
        %1800 = vmatprep.subr.bf16.mxu0 0
        %1801 = vmatpush1.bf16.xpose.msra.mxu0 0
        %1802 = vmatprep.subr.bf16.mxu0 0
        %1803 = vmatpush1.bf16.xpose.msra.mxu0 0
        %1804 = vmatprep.subr.bf16.mxu0 0
        %1805 = vmatpush1.bf16.xpose.msra.mxu0 0
        %1806 = vmatprep.subr.bf16.mxu0 0
        %1807 = vmatpush1.bf16.xpose.msra.mxu0 0
        %1808 = vmatprep.subr.bf16.mxu0 0
        %1809 = vmatpush1.bf16.xpose.msra.mxu0 0
        %1810 = vmatprep.subr.bf16.mxu0 0
        %1811 = vmatpush1.bf16.xpose.msra.mxu0 0
        %1812 = vmatprep.subr.bf16.mxu0 0
        %1813 = vmatpush1.bf16.xpose.msra.mxu0 0
        %1814 = vmatprep.subr.bf16.mxu0 0
        %1815 = vmatpush1.bf16.xpose.msra.mxu0 0
        %1816 = vmatprep.subr.bf16.mxu0 0
        %1817 = vmatpush1.bf16.xpose.msra.mxu0 0
        %1818 = vmatprep.mubr.bf16.mxu0 0
        %1819 = vmatmul.mubr.bf16.gmra.mrb[0].mxu0 %v1558
        %v1820 = vpop.f32.mrb[0].mxu0
        %v1821 = vadd.f32 %v1569, %v1820
        %v1822 = vpop.f32.mrb[0].mxu0
        %v1823 = vpop.f32.mrb[0].mxu0
        %v1824 = vpop.f32.mrb[0].mxu0
        %1825 = vdwg.mxu0
        %1826 = vmatprep.subr.bf16.mxu0 0
        %1827 = vmatpush1.bf16.xpose.msra.mxu0 %v1566
        %1828 = vmatprep.subr.bf16.mxu0 0
        %1829 = vmatpush1.bf16.xpose.msra.mxu0 0
        %1830 = vmatprep.subr.bf16.mxu0 0
        %1831 = vmatpush1.bf16.xpose.msra.mxu0 0
        %1832 = vmatprep.subr.bf16.mxu0 0
        %1833 = vmatpush1.bf16.xpose.msra.mxu0 0
        %1834 = vmatprep.subr.bf16.mxu0 0
        %1835 = vmatpush1.bf16.xpose.msra.mxu0 0
        %1836 = vmatprep.subr.bf16.mxu0 0
        %1837 = vmatpush1.bf16.xpose.msra.mxu0 0
        %1838 = vmatprep.subr.bf16.mxu0 0
        %1839 = vmatpush1.bf16.xpose.msra.mxu0 0
        %1840 = vmatprep.subr.bf16.mxu0 0
        %1841 = vmatpush1.bf16.xpose.msra.mxu0 0
        %1842 = vmatprep.subr.bf16.mxu0 0
        %1843 = vmatpush1.bf16.xpose.msra.mxu0 0
        %1844 = vmatprep.subr.bf16.mxu0 0
        %1845 = vmatpush1.bf16.xpose.msra.mxu0 0
        %1846 = vmatprep.subr.bf16.mxu0 0
        %1847 = vmatpush1.bf16.xpose.msra.mxu0 0
        %1848 = vmatprep.subr.bf16.mxu0 0
        %1849 = vmatpush1.bf16.xpose.msra.mxu0 0
        %1850 = vmatprep.subr.bf16.mxu0 0
        %1851 = vmatpush1.bf16.xpose.msra.mxu0 0
        %1852 = vmatprep.subr.bf16.mxu0 0
        %1853 = vmatpush1.bf16.xpose.msra.mxu0 0
        %1854 = vmatprep.subr.bf16.mxu0 0
        %1855 = vmatpush1.bf16.xpose.msra.mxu0 0
        %1856 = vmatprep.subr.bf16.mxu0 0
        %1857 = vmatpush1.bf16.xpose.msra.mxu0 0
        %1858 = vmatprep.mubr.bf16.mxu0 0
        %1859 = vmatmul.mubr.bf16.gmra.mrb[0].mxu0 %v1564
        %v1860 = vpop.f32.mrb[0].mxu0
        %v1861 = vadd.f32 %v1570, %v1860
        %v1862 = vpop.f32.mrb[0].mxu0
        %v1863 = vpop.f32.mrb[0].mxu0
        %v1864 = vpop.f32.mrb[0].mxu0
        %1865 = vdwg.mxu0
        %v1866 = vsel %vm1651, %v1821, -inf
        %1867 = vmax.xlane.f32.xlu0 %v1866
        %v1868 = vpop.xlane.xlu0 %1867
        %v1869 = vsel %vm1651, %v1861, -inf
        %1870 = vmax.xlane.f32.xlu0 %v1869
        %v1871 = vpop.xlane.xlu0 %1870
        %v1872 = vsub.f32 %v1821, %v1868
        %v1873 = vsub.f32 %v1861, %v1871
        %v1874 = vmul.f32 %v1872, 1.442695
        %v1875 = vpow.pop %v1874
        %v1876 = vmul.f32 %v1873, 1.442695
        %v1877 = vpow.pop %v1876
        %v1878 = vsel %vm1651, %v1875, 0.0
        %1879 = vadd.xlane.f32.xlu0 %v1878
        %v1880 = vpop.xlane.xlu0 %1879
        %v1881 = vsel %vm1651, %v1877, 0.0
        %1882 = vadd.xlane.f32.xlu0 %v1881
        %v1883 = vpop.xlane.xlu0 %1882
        %v1884 = vrcp.pop %v1880
        %v1885 = vrcp.pop %v1883
        %v1886 = vmul.f32 %v1875, %v1884
        %v1887 = vmul.f32 %v1877, %v1885
        %v1888 = vpack.c.bf16 %v1886, %v1886
        %v1889 = vpack.c.bf16 %v1887, %v1887
        %v1891 = vsel %vm1651, %v1888, 0
        %v1894 = vsel %vm1679, %v1562, 0
        %1896 = vmatprep.subr.bf16.mxu0 0
        %1897 = vmatpush1.bf16.msra.mxu0 %v1894
        %1898 = vmatprep.subr.bf16.mxu0 0
        %1899 = vmatpush1.bf16.msra.mxu0 0
        %1900 = vmatprep.subr.bf16.mxu0 0
        %1901 = vmatpush1.bf16.msra.mxu0 0
        %1902 = vmatprep.subr.bf16.mxu0 0
        %1903 = vmatpush1.bf16.msra.mxu0 0
        %1904 = vmatprep.subr.bf16.mxu0 0
        %1905 = vmatpush1.bf16.msra.mxu0 0
        %1906 = vmatprep.subr.bf16.mxu0 0
        %1907 = vmatpush1.bf16.msra.mxu0 0
        %1908 = vmatprep.subr.bf16.mxu0 0
        %1909 = vmatpush1.bf16.msra.mxu0 0
        %1910 = vmatprep.subr.bf16.mxu0 0
        %1911 = vmatpush1.bf16.msra.mxu0 0
        %1912 = vmatprep.subr.bf16.mxu0 0
        %1913 = vmatpush1.bf16.msra.mxu0 0
        %1914 = vmatprep.subr.bf16.mxu0 0
        %1915 = vmatpush1.bf16.msra.mxu0 0
        %1916 = vmatprep.subr.bf16.mxu0 0
        %1917 = vmatpush1.bf16.msra.mxu0 0
        %1918 = vmatprep.subr.bf16.mxu0 0
        %1919 = vmatpush1.bf16.msra.mxu0 0
        %1920 = vmatprep.subr.bf16.mxu0 0
        %1921 = vmatpush1.bf16.msra.mxu0 0
        %1922 = vmatprep.subr.bf16.mxu0 0
        %1923 = vmatpush1.bf16.msra.mxu0 0
        %1924 = vmatprep.subr.bf16.mxu0 0
        %1925 = vmatpush1.bf16.msra.mxu0 0
        %1926 = vmatprep.subr.bf16.mxu0 0
        %1927 = vmatpush1.bf16.msra.mxu0 0
        %1928 = vmatprep.mubr.bf16.mxu0 0
        %1929 = vmatmul.mubr.bf16.gmra.mrb[0].mxu0 %v1891
        %v1930 = vpop.f32.mrb[0].mxu0
        %v1931 = vadd.f32 0.0, %v1930
        %v1932 = vpop.f32.mrb[0].mxu0
        %v1933 = vpop.f32.mrb[0].mxu0
        %v1934 = vpop.f32.mrb[0].mxu0
        %1935 = vdwg.mxu0
        %v1937 = vsel %vm1651, %v1889, 0
        %v1940 = vsel %vm1679, %v1568, 0
        %1942 = vmatprep.subr.bf16.mxu0 0
        %1943 = vmatpush1.bf16.msra.mxu0 %v1940
        %1944 = vmatprep.subr.bf16.mxu0 0
        %1945 = vmatpush1.bf16.msra.mxu0 0
        %1946 = vmatprep.subr.bf16.mxu0 0
        %1947 = vmatpush1.bf16.msra.mxu0 0
        %1948 = vmatprep.subr.bf16.mxu0 0
        %1949 = vmatpush1.bf16.msra.mxu0 0
        %1950 = vmatprep.subr.bf16.mxu0 0
        %1951 = vmatpush1.bf16.msra.mxu0 0
        %1952 = vmatprep.subr.bf16.mxu0 0
        %1953 = vmatpush1.bf16.msra.mxu0 0
        %1954 = vmatprep.subr.bf16.mxu0 0
        %1955 = vmatpush1.bf16.msra.mxu0 0
        %1956 = vmatprep.subr.bf16.mxu0 0
        %1957 = vmatpush1.bf16.msra.mxu0 0
        %1958 = vmatprep.subr.bf16.mxu0 0
        %1959 = vmatpush1.bf16.msra.mxu0 0
        %1960 = vmatprep.subr.bf16.mxu0 0
        %1961 = vmatpush1.bf16.msra.mxu0 0
        %1962 = vmatprep.subr.bf16.mxu0 0
        %1963 = vmatpush1.bf16.msra.mxu0 0
        %1964 = vmatprep.subr.bf16.mxu0 0
        %1965 = vmatpush1.bf16.msra.mxu0 0
        %1966 = vmatprep.subr.bf16.mxu0 0
        %1967 = vmatpush1.bf16.msra.mxu0 0
        %1968 = vmatprep.subr.bf16.mxu0 0
        %1969 = vmatpush1.bf16.msra.mxu0 0
        %1970 = vmatprep.subr.bf16.mxu0 0
        %1971 = vmatpush1.bf16.msra.mxu0 0
        %1972 = vmatprep.subr.bf16.mxu0 0
        %1973 = vmatpush1.bf16.msra.mxu0 0
        %1974 = vmatprep.mubr.bf16.mxu0 0
        %1975 = vmatmul.mubr.bf16.gmra.mrb[0].mxu0 %v1937
        %v1976 = vpop.f32.mrb[0].mxu0
        %v1977 = vadd.f32 0.0, %v1976
        %v1978 = vpop.f32.mrb[0].mxu0
        %v1979 = vpop.f32.mrb[0].mxu0
        %v1980 = vpop.f32.mrb[0].mxu0
        %1981 = vdwg.mxu0
        %v1982 = vpack.c.bf16 %v1977, %v1931
        %v1983 = vld [vmem:[%s806 + $0x40] sm:$0xf]
        %v1984 = vld [vmem:[%s806 + $0x44] sm:$0xf]
        %v1985 = vld [vmem:[%s806 + $0x48] sm:$0xf]
        %v1986 = vld [vmem:[%s806 + $0x4c] sm:$0xf]
        %v1987 = vld [vmem:[%s806 + $0x50] sm:$0xf]
        %v1988 = vld [vmem:[%s806 + $0x54] sm:$0xf]
        %v1989 = vld [vmem:[%s806 + $0x58] sm:$0xf]
        %v1990 = vld [vmem:[%s806 + $0x5c] sm:$0xf]
        %v1991 = vld [vmem:[%s806 + $0x60] sm:$0xf]
        %v1992 = vld [vmem:[%s806 + $0x64] sm:$0xf]
        %v1993 = vld [vmem:[%s806 + $0x68] sm:$0xf]
        %v1994 = vld [vmem:[%s806 + $0x6c] sm:$0xf]
        %v1995 = vld [vmem:[%s806 + $0x70] sm:$0xf]
        %v1996 = vld [vmem:[%s806 + $0x74] sm:$0xf]
        %v1997 = vld [vmem:[%s806 + $0x78] sm:$0xf]
        %v1998 = vld [vmem:[%s806 + $0x7c] sm:$0xf]
        %v2015 = vunpack.c.l.b16 %v1983
        %v2016 = vunpack.c.l.b16 %v1984
        %v2017 = vunpack.c.l.b16 %v1985
        %v2018 = vunpack.c.l.b16 %v1986
        %v2019 = vunpack.c.l.b16 %v1987
        %v2020 = vunpack.c.l.b16 %v1988
        %v2021 = vunpack.c.l.b16 %v1989
        %v2022 = vunpack.c.l.b16 %v1990
        %v2023 = vunpack.c.l.b16 %v1991
        %v2024 = vunpack.c.l.b16 %v1992
        %v2025 = vunpack.c.l.b16 %v1993
        %v2026 = vunpack.c.l.b16 %v1994
        %v2027 = vunpack.c.l.b16 %v1995
        %v2028 = vunpack.c.l.b16 %v1996
        %v2029 = vunpack.c.l.b16 %v1997
        %v2030 = vunpack.c.l.b16 %v1998
        %v2031 = vpack.c.b16 %v2016, %v2015
        %v2032 = vpack.c.b16 %v2018, %v2017
        %v2033 = vpack.c.b16 %v2020, %v2019
        %v2034 = vpack.c.b16 %v2022, %v2021
        %v2035 = vpack.c.b16 %v2024, %v2023
        %v2036 = vpack.c.b16 %v2026, %v2025
        %v2037 = vpack.c.b16 %v2028, %v2027
        %v2038 = vpack.c.b16 %v2030, %v2029
        %2047 = vmatprep.subr.bf16.mxu0 0
        %2048 = vmatpush1.bf16.msra.mxu0 %v2031
        %2049 = vmatprep.subr.bf16.mxu0 0
        %2050 = vmatpush1.bf16.msra.mxu0 %v2032
        %2051 = vmatprep.subr.bf16.mxu0 0
        %2052 = vmatpush1.bf16.msra.mxu0 %v2033
        %2053 = vmatprep.subr.bf16.mxu0 0
        %2054 = vmatpush1.bf16.msra.mxu0 %v2034
        %2055 = vmatprep.subr.bf16.mxu0 0
        %2056 = vmatpush1.bf16.msra.mxu0 %v2035
        %2057 = vmatprep.subr.bf16.mxu0 0
        %2058 = vmatpush1.bf16.msra.mxu0 %v2036
        %2059 = vmatprep.subr.bf16.mxu0 0
        %2060 = vmatpush1.bf16.msra.mxu0 %v2037
        %2061 = vmatprep.subr.bf16.mxu0 0
        %2062 = vmatpush1.bf16.msra.mxu0 %v2038
        %2063 = vmatprep.subr.bf16.mxu0 0
        %2064 = vmatpush1.bf16.msra.mxu0 0
        %2065 = vmatprep.subr.bf16.mxu0 0
        %2066 = vmatpush1.bf16.msra.mxu0 0
        %2067 = vmatprep.subr.bf16.mxu0 0
        %2068 = vmatpush1.bf16.msra.mxu0 0
        %2069 = vmatprep.subr.bf16.mxu0 0
        %2070 = vmatpush1.bf16.msra.mxu0 0
        %2071 = vmatprep.subr.bf16.mxu0 0
        %2072 = vmatpush1.bf16.msra.mxu0 0
        %2073 = vmatprep.subr.bf16.mxu0 0
        %2074 = vmatpush1.bf16.msra.mxu0 0
        %2075 = vmatprep.subr.bf16.mxu0 0
        %2076 = vmatpush1.bf16.msra.mxu0 0
        %2077 = vmatprep.subr.bf16.mxu0 0
        %2078 = vmatpush1.bf16.msra.mxu0 0
        %2079 = vmatprep.mubr.bf16.mxu0 0
        %2080 = vmatmul.mubr.bf16.gmra.mrb[0].mxu0 %v1982
        %v2081 = vpop.f32.mrb[0].mxu0
        %v2082 = vadd.f32 0.0, %v2081
        %v2083 = vpop.f32.mrb[0].mxu0
        %v2084 = vpop.f32.mrb[0].mxu0
        %v2085 = vadd.f32 0.0, %v2084
        %v2086 = vpop.f32.mrb[0].mxu0
        %2087 = vdwg.mxu0
        %v2104 = vunpack.c.l.b16 %v1770
        %v2105 = vunpack.c.l.b16 %v1771
        %v2106 = vunpack.c.l.b16 %v1772
        %v2107 = vunpack.c.l.b16 %v1773
        %v2108 = vunpack.c.l.b16 %v1774
        %v2109 = vunpack.c.l.b16 %v1775
        %v2110 = vunpack.c.l.b16 %v1776
        %v2111 = vunpack.c.l.b16 %v1777
        %v2112 = vunpack.c.l.b16 %v1778
        %v2113 = vunpack.c.l.b16 %v1779
        %v2114 = vunpack.c.l.b16 %v1780
        %v2115 = vunpack.c.l.b16 %v1781
        %v2116 = vunpack.c.l.b16 %v1782
        %v2117 = vunpack.c.l.b16 %v1783
        %v2118 = vunpack.c.l.b16 %v1784
        %v2119 = vunpack.c.l.b16 %v1785
        %v2120 = vpack.c.b16 %v2105, %v2104
        %v2121 = vpack.c.b16 %v2107, %v2106
        %v2122 = vpack.c.b16 %v2109, %v2108
        %v2123 = vpack.c.b16 %v2111, %v2110
        %v2124 = vpack.c.b16 %v2113, %v2112
        %v2125 = vpack.c.b16 %v2115, %v2114
        %v2126 = vpack.c.b16 %v2117, %v2116
        %v2127 = vpack.c.b16 %v2119, %v2118
        %2136 = vmatprep.subr.bf16.mxu0 0
        %2137 = vmatpush1.bf16.msra.mxu0 %v2120
        %2138 = vmatprep.subr.bf16.mxu0 0
        %2139 = vmatpush1.bf16.msra.mxu0 %v2121
        %2140 = vmatprep.subr.bf16.mxu0 0
        %2141 = vmatpush1.bf16.msra.mxu0 %v2122
        %2142 = vmatprep.subr.bf16.mxu0 0
        %2143 = vmatpush1.bf16.msra.mxu0 %v2123
        %2144 = vmatprep.subr.bf16.mxu0 0
        %2145 = vmatpush1.bf16.msra.mxu0 %v2124
        %2146 = vmatprep.subr.bf16.mxu0 0
        %2147 = vmatpush1.bf16.msra.mxu0 %v2125
        %2148 = vmatprep.subr.bf16.mxu0 0
        %2149 = vmatpush1.bf16.msra.mxu0 %v2126
        %2150 = vmatprep.subr.bf16.mxu0 0
        %2151 = vmatpush1.bf16.msra.mxu0 %v2127
        %2152 = vmatprep.subr.bf16.mxu0 0
        %2153 = vmatpush1.bf16.msra.mxu0 0
        %2154 = vmatprep.subr.bf16.mxu0 0
        %2155 = vmatpush1.bf16.msra.mxu0 0
        %2156 = vmatprep.subr.bf16.mxu0 0
        %2157 = vmatpush1.bf16.msra.mxu0 0
        %2158 = vmatprep.subr.bf16.mxu0 0
        %2159 = vmatpush1.bf16.msra.mxu0 0
        %2160 = vmatprep.subr.bf16.mxu0 0
        %2161 = vmatpush1.bf16.msra.mxu0 0
        %2162 = vmatprep.subr.bf16.mxu0 0
        %2163 = vmatpush1.bf16.msra.mxu0 0
        %2164 = vmatprep.subr.bf16.mxu0 0
        %2165 = vmatpush1.bf16.msra.mxu0 0
        %2166 = vmatprep.subr.bf16.mxu0 0
        %2167 = vmatpush1.bf16.msra.mxu0 0
        %2168 = vmatprep.mubr.bf16.mxu0 0
        %2169 = vmatmul.mubr.bf16.gmra.mrb[0].mxu0 %v1769
        %v2170 = vpop.f32.mrb[0].mxu0
        %v2171 = vadd.f32 %v2082, %v2170
        %v2172 = vpop.f32.mrb[0].mxu0
        %v2173 = vpop.f32.mrb[0].mxu0
        %v2174 = vadd.f32 %v2085, %v2173
        %v2175 = vpop.f32.mrb[0].mxu0
        %2176 = vdwg.mxu0
        %v2177 = vadd.f32 %v1061, %v2171
        %v2178 = vadd.f32 %v1062, %v2174
        %v2179 = vld [vmem:[%s948] sm:$0x1]
        %v2181 = vlaneseq
        %v2182 = vshrl.u32 %v2181, 7
        %v2183 = vsub.s32 0, %v2182
        %v2184 = vrot.slane %v2179, %v2183
        %v2186 = vadd.f32 %v2177, %v2184
        %v2187 = vadd.f32 %v2178, %v2184
        %v2188 = vld [vmem:[%s951] sm:$0x1]
        %v2189 = vld [vmem:[%s954] sm:$0x1]
        %2190 = vadd.xlane.f32.xlu0 %v2186
        %v2191 = vpop.xlane.xlu0 %2190
        %2192 = vadd.xlane.f32.xlu0 %v2187
        %v2193 = vpop.xlane.xlu0 %2192
        %v2194 = vmul.f32 %v2186, %v2186
        %v2195 = vmul.f32 %v2187, %v2187
        %2196 = vadd.xlane.f32.xlu0 %v2194
        %v2197 = vpop.xlane.xlu0 %2196
        %2198 = vadd.xlane.f32.xlu0 %v2195
        %v2199 = vpop.xlane.xlu0 %2198
        %v2200 = vmul.f32 %v2191, 0.03125
        %v2201 = vmul.f32 %v2193, 0.03125
        %v2202 = vmul.f32 %v2197, 0.03125
        %v2203 = vmul.f32 %v2199, 0.03125
        %v2204 = vmul.f32 %v2200, %v2200
        %v2205 = vmul.f32 %v2201, %v2201
        %v2206 = vsub.f32 %v2202, %v2204
        %v2207 = vsub.f32 %v2203, %v2205
        %v2208 = vsub.f32 %v2186, %v2200
        %v2209 = vsub.f32 %v2187, %v2201
        %v2210 = vadd.f32 %v2206, 1e-12
        %v2211 = vadd.f32 %v2207, 1e-12
        %v2212 = vrsqrt.pop %v2210
        %v2213 = vrsqrt.pop %v2211
        %v2214 = vmul.f32 %v2208, %v2212
        %v2215 = vmul.f32 %v2209, %v2213
        %v2217 = vlaneseq
        %v2218 = vshrl.u32 %v2217, 7
        %v2219 = vsub.s32 0, %v2218
        %v2220 = vrot.slane %v2188, %v2219
        %v2222 = vmul.f32 %v2214, %v2220
        %v2223 = vmul.f32 %v2215, %v2220
        %v2225 = vlaneseq
        %v2226 = vshrl.u32 %v2225, 7
        %v2227 = vsub.s32 0, %v2226
        %v2228 = vrot.slane %v2189, %v2227
        %v2230 = vadd.f32 %v2222, %v2228
        %v2231 = vadd.f32 %v2223, %v2228
        %v2232 = vpack.c.bf16 %v2231, %v2230
        %v2233 = vld [vmem:[%s815] sm:$0xf]
        %v2234 = vld [vmem:[%s815 + $0x4] sm:$0xf]
        %v2235 = vld [vmem:[%s815 + $0x8] sm:$0xf]
        %v2236 = vld [vmem:[%s815 + $0xc] sm:$0xf]
        %v2237 = vld [vmem:[%s815 + $0x10] sm:$0xf]
        %v2238 = vld [vmem:[%s815 + $0x14] sm:$0xf]
        %v2239 = vld [vmem:[%s815 + $0x18] sm:$0xf]
        %v2240 = vld [vmem:[%s815 + $0x1c] sm:$0xf]
        %v2241 = vld [vmem:[%s815 + $0x20] sm:$0xf]
        %v2242 = vld [vmem:[%s815 + $0x24] sm:$0xf]
        %v2243 = vld [vmem:[%s815 + $0x28] sm:$0xf]
        %v2244 = vld [vmem:[%s815 + $0x2c] sm:$0xf]
        %v2245 = vld [vmem:[%s815 + $0x30] sm:$0xf]
        %v2246 = vld [vmem:[%s815 + $0x34] sm:$0xf]
        %v2247 = vld [vmem:[%s815 + $0x38] sm:$0xf]
        %v2248 = vld [vmem:[%s815 + $0x3c] sm:$0xf]
        %v2249 = vld [vmem:[%s957] sm:$0x1]
        %v2251 = vlaneseq
        %v2252 = vshrl.u32 %v2251, 7
        %v2253 = vsub.s32 0, %v2252
        %v2254 = vrot.slane %v2249, %v2253
        %v2272 = vunpack.c.l.b16 %v2233
        %v2273 = vunpack.c.l.b16 %v2234
        %v2274 = vunpack.c.l.b16 %v2235
        %v2275 = vunpack.c.l.b16 %v2236
        %v2276 = vunpack.c.l.b16 %v2237
        %v2277 = vunpack.c.l.b16 %v2238
        %v2278 = vunpack.c.l.b16 %v2239
        %v2279 = vunpack.c.l.b16 %v2240
        %v2280 = vunpack.c.l.b16 %v2241
        %v2281 = vunpack.c.l.b16 %v2242
        %v2282 = vunpack.c.l.b16 %v2243
        %v2283 = vunpack.c.l.b16 %v2244
        %v2284 = vunpack.c.l.b16 %v2245
        %v2285 = vunpack.c.l.b16 %v2246
        %v2286 = vunpack.c.l.b16 %v2247
        %v2287 = vunpack.c.l.b16 %v2248
        %v2288 = vpack.c.b16 %v2273, %v2272
        %v2289 = vpack.c.b16 %v2275, %v2274
        %v2290 = vpack.c.b16 %v2277, %v2276
        %v2291 = vpack.c.b16 %v2279, %v2278
        %v2292 = vpack.c.b16 %v2281, %v2280
        %v2293 = vpack.c.b16 %v2283, %v2282
        %v2294 = vpack.c.b16 %v2285, %v2284
        %v2295 = vpack.c.b16 %v2287, %v2286
        %2304 = vmatprep.subr.bf16.mxu0 0
        %2305 = vmatpush1.bf16.msra.mxu0 %v2288
        %2306 = vmatprep.subr.bf16.mxu0 0
        %2307 = vmatpush1.bf16.msra.mxu0 %v2289
        %2308 = vmatprep.subr.bf16.mxu0 0
        %2309 = vmatpush1.bf16.msra.mxu0 %v2290
        %2310 = vmatprep.subr.bf16.mxu0 0
        %2311 = vmatpush1.bf16.msra.mxu0 %v2291
        %2312 = vmatprep.subr.bf16.mxu0 0
        %2313 = vmatpush1.bf16.msra.mxu0 %v2292
        %2314 = vmatprep.subr.bf16.mxu0 0
        %2315 = vmatpush1.bf16.msra.mxu0 %v2293
        %2316 = vmatprep.subr.bf16.mxu0 0
        %2317 = vmatpush1.bf16.msra.mxu0 %v2294
        %2318 = vmatprep.subr.bf16.mxu0 0
        %2319 = vmatpush1.bf16.msra.mxu0 %v2295
        %2320 = vmatprep.subr.bf16.mxu0 0
        %2321 = vmatpush1.bf16.msra.mxu0 0
        %2322 = vmatprep.subr.bf16.mxu0 0
        %2323 = vmatpush1.bf16.msra.mxu0 0
        %2324 = vmatprep.subr.bf16.mxu0 0
        %2325 = vmatpush1.bf16.msra.mxu0 0
        %2326 = vmatprep.subr.bf16.mxu0 0
        %2327 = vmatpush1.bf16.msra.mxu0 0
        %2328 = vmatprep.subr.bf16.mxu0 0
        %2329 = vmatpush1.bf16.msra.mxu0 0
        %2330 = vmatprep.subr.bf16.mxu0 0
        %2331 = vmatpush1.bf16.msra.mxu0 0
        %2332 = vmatprep.subr.bf16.mxu0 0
        %2333 = vmatpush1.bf16.msra.mxu0 0
        %2334 = vmatprep.subr.bf16.mxu0 0
        %2335 = vmatpush1.bf16.msra.mxu0 0
        %2336 = vmatprep.mubr.bf16.mxu0 0
        %2337 = vmatmul.mubr.bf16.gmra.mrb[0].mxu0 %v2232
        %v2338 = vpop.f32.mrb[0].mxu0
        %v2339 = vadd.f32 %v2254, %v2338
        %v2340 = vpop.f32.mrb[0].mxu0
        %v2341 = vpop.f32.mrb[0].mxu0
        %v2342 = vadd.f32 %v2254, %v2341
        %v2343 = vpop.f32.mrb[0].mxu0
        %2344 = vdwg.mxu0
        %v2345 = vmul.f32 %v2339, %v2339
        %v2346 = vmul.f32 %v2342, %v2342
        %v2347 = vmul.f32 %v2339, %v2345
        %v2348 = vmul.f32 %v2342, %v2346
        %v2349 = vmul.f32 %v2347, 0.044715
        %v2350 = vmul.f32 %v2348, 0.044715
        %v2351 = vadd.f32 %v2339, %v2349
        %v2352 = vadd.f32 %v2342, %v2350
        %v2353 = vmul.f32 %v2351, 0.7978846
        %v2354 = vmul.f32 %v2352, 0.7978846
        %v2355 = vtanh.pop %v2353
        %v2356 = vtanh.pop %v2354
        %v2357 = vadd.f32 %v2355, 1.0
        %v2358 = vadd.f32 %v2356, 1.0
        %v2359 = vmul.f32 %v2357, 0.5
        %v2360 = vmul.f32 %v2358, 0.5
        %v2361 = vmul.f32 %v2339, %v2359
        %v2362 = vmul.f32 %v2342, %v2360
        %v2363 = vpack.c.bf16 %v2362, %v2361
        %v2364 = vld [vmem:[%s824] sm:$0xf]
        %v2365 = vld [vmem:[%s824 + $0x4] sm:$0xf]
        %v2366 = vld [vmem:[%s824 + $0x8] sm:$0xf]
        %v2367 = vld [vmem:[%s824 + $0xc] sm:$0xf]
        %v2368 = vld [vmem:[%s824 + $0x10] sm:$0xf]
        %v2369 = vld [vmem:[%s824 + $0x14] sm:$0xf]
        %v2370 = vld [vmem:[%s824 + $0x18] sm:$0xf]
        %v2371 = vld [vmem:[%s824 + $0x1c] sm:$0xf]
        %v2372 = vld [vmem:[%s824 + $0x20] sm:$0xf]
        %v2373 = vld [vmem:[%s824 + $0x24] sm:$0xf]
        %v2374 = vld [vmem:[%s824 + $0x28] sm:$0xf]
        %v2375 = vld [vmem:[%s824 + $0x2c] sm:$0xf]
        %v2376 = vld [vmem:[%s824 + $0x30] sm:$0xf]
        %v2377 = vld [vmem:[%s824 + $0x34] sm:$0xf]
        %v2378 = vld [vmem:[%s824 + $0x38] sm:$0xf]
        %v2379 = vld [vmem:[%s824 + $0x3c] sm:$0xf]
        %v2380 = vld [vmem:[%s960] sm:$0x1]
        %v2382 = vlaneseq
        %v2383 = vshrl.u32 %v2382, 7
        %v2384 = vsub.s32 0, %v2383
        %v2385 = vrot.slane %v2380, %v2384
        %v2403 = vunpack.c.l.b16 %v2364
        %v2404 = vunpack.c.l.b16 %v2365
        %v2405 = vunpack.c.l.b16 %v2366
        %v2406 = vunpack.c.l.b16 %v2367
        %v2407 = vunpack.c.l.b16 %v2368
        %v2408 = vunpack.c.l.b16 %v2369
        %v2409 = vunpack.c.l.b16 %v2370
        %v2410 = vunpack.c.l.b16 %v2371
        %v2411 = vunpack.c.l.b16 %v2372
        %v2412 = vunpack.c.l.b16 %v2373
        %v2413 = vunpack.c.l.b16 %v2374
        %v2414 = vunpack.c.l.b16 %v2375
        %v2415 = vunpack.c.l.b16 %v2376
        %v2416 = vunpack.c.l.b16 %v2377
        %v2417 = vunpack.c.l.b16 %v2378
        %v2418 = vunpack.c.l.b16 %v2379
        %v2419 = vpack.c.b16 %v2404, %v2403
        %v2420 = vpack.c.b16 %v2406, %v2405
        %v2421 = vpack.c.b16 %v2408, %v2407
        %v2422 = vpack.c.b16 %v2410, %v2409
        %v2423 = vpack.c.b16 %v2412, %v2411
        %v2424 = vpack.c.b16 %v2414, %v2413
        %v2425 = vpack.c.b16 %v2416, %v2415
        %v2426 = vpack.c.b16 %v2418, %v2417
        %2435 = vmatprep.subr.bf16.mxu0 0
        %2436 = vmatpush1.bf16.msra.mxu0 %v2419
        %2437 = vmatprep.subr.bf16.mxu0 0
        %2438 = vmatpush1.bf16.msra.mxu0 %v2420
        %2439 = vmatprep.subr.bf16.mxu0 0
        %2440 = vmatpush1.bf16.msra.mxu0 %v2421
        %2441 = vmatprep.subr.bf16.mxu0 0
        %2442 = vmatpush1.bf16.msra.mxu0 %v2422
        %2443 = vmatprep.subr.bf16.mxu0 0
        %2444 = vmatpush1.bf16.msra.mxu0 %v2423
        %2445 = vmatprep.subr.bf16.mxu0 0
        %2446 = vmatpush1.bf16.msra.mxu0 %v2424
        %2447 = vmatprep.subr.bf16.mxu0 0
        %2448 = vmatpush1.bf16.msra.mxu0 %v2425
        %2449 = vmatprep.subr.bf16.mxu0 0
        %2450 = vmatpush1.bf16.msra.mxu0 %v2426
        %2451 = vmatprep.subr.bf16.mxu0 0
        %2452 = vmatpush1.bf16.msra.mxu0 0
        %2453 = vmatprep.subr.bf16.mxu0 0
        %2454 = vmatpush1.bf16.msra.mxu0 0
        %2455 = vmatprep.subr.bf16.mxu0 0
        %2456 = vmatpush1.bf16.msra.mxu0 0
        %2457 = vmatprep.subr.bf16.mxu0 0
        %2458 = vmatpush1.bf16.msra.mxu0 0
        %2459 = vmatprep.subr.bf16.mxu0 0
        %2460 = vmatpush1.bf16.msra.mxu0 0
        %2461 = vmatprep.subr.bf16.mxu0 0
        %2462 = vmatpush1.bf16.msra.mxu0 0
        %2463 = vmatprep.subr.bf16.mxu0 0
        %2464 = vmatpush1.bf16.msra.mxu0 0
        %2465 = vmatprep.subr.bf16.mxu0 0
        %2466 = vmatpush1.bf16.msra.mxu0 0
        %2467 = vmatprep.mubr.bf16.mxu0 0
        %2468 = vmatmul.mubr.bf16.gmra.mrb[0].mxu0 %v2363
        %v2469 = vpop.f32.mrb[0].mxu0
        %v2470 = vadd.f32 %v2385, %v2469
        %v2471 = vpop.f32.mrb[0].mxu0
        %v2472 = vpop.f32.mrb[0].mxu0
        %v2473 = vadd.f32 %v2385, %v2472
        %v2474 = vpop.f32.mrb[0].mxu0
        %2475 = vdwg.mxu0
        %v2476 = vadd.f32 %v2186, %v2470
        %v2477 = vadd.f32 %v2187, %v2473
        %2478 = vst [vmem:[#allocation2] sm:$0xff] %v2476
        %2479 = vst [vmem:[#allocation2 + $0x8] sm:$0xff] %v2477
        %p2480 = scmp.eq.s32.totalorder %s38, 1
        // Predicated region
        $region133: #{tpu_custom_call.1} parent=95 // pred_check
          %p2481 = pneg %p2480
        $region134: #{tpu_custom_call.1} parent=95 // pred_check_branch
          %2483 = sbr.rel (%p2481) target = $region136
        $region135: #{tpu_custom_call.1} parent=95 // pred_region
          %v2484 = vld [vmem:[%s964] sm:$0x1]
          %v2485 = vld [vmem:[%s964 + $0x1] sm:$0x1]
          %v2488 = vlaneseq
          %v2489 = vshrl.u32 %v2488, 7
          %v2490 = vsub.s32 0, %v2489
          %v2491 = vrot.slane %v2484, %v2490
          %v2492 = vlaneseq
          %v2493 = vshrl.u32 %v2492, 7
          %v2494 = vsub.s32 0, %v2493
          %v2495 = vrot.slane %v2485, %v2494
          %v2498 = vmul.f32 %v2476, %v2491
          %v2499 = vmul.f32 %v2477, %v2495
          %vm2500 = vcmask 1047559
          %v2501 = vsel %vm2500, %v2498, 0.0
          %2502 = vadd.xlane.f32.xlu0 %v2501
          %v2503 = vpop.xlane.xlu0 %2502
          %v2504 = vsel %vm2500, %v2499, 0.0
          %2505 = vadd.xlane.f32.xlu0 %v2504
          %v2506 = vpop.xlane.xlu0 %2505
          %v2507 = vld [vmem:[%s969] sm:$0x1]
          %v2508 = vld [vmem:[%s969 + $0x1] sm:$0x1]
          %v2511 = vlaneseq
          %v2512 = vshrl.u32 %v2511, 7
          %v2513 = vsub.s32 0, %v2512
          %v2514 = vrot.slane %v2507, %v2513
          %v2515 = vlaneseq
          %v2516 = vshrl.u32 %v2515, 7
          %v2517 = vsub.s32 0, %v2516
          %v2518 = vrot.slane %v2508, %v2517
          %v2521 = vmul.f32 %v2476, %v2514
          %v2522 = vmul.f32 %v2477, %v2518
          %v2523 = vsel %vm2500, %v2521, 0.0
          %2524 = vadd.xlane.f32.xlu0 %v2523
          %v2525 = vpop.xlane.xlu0 %2524
          %v2526 = vsel %vm2500, %v2522, 0.0
          %2527 = vadd.xlane.f32.xlu0 %v2526
          %v2528 = vpop.xlane.xlu0 %2527
          %v2529 = vsub.f32 0.0, %v2503
          %v2530 = vsub.f32 0.0, %v2506
          %v2531 = vmax.f32 %v2529, 0.0
          %v2532 = vmax.f32 %v2530, 0.0
          %v2533 = vand.u32 2147483647, %v2529
          %v2534 = vand.u32 2147483647, %v2530
          %v2535 = vsub.f32 0.0, %v2533
          %v2536 = vsub.f32 0.0, %v2534
          %v2537 = vmul.f32 %v2535, 1.442695
          %v2538 = vpow.pop %v2537
          %v2539 = vmul.f32 %v2536, 1.442695
          %v2540 = vpow.pop %v2539
          %v2541 = vadd.f32 %v2538, 1.0
          %v2542 = vadd.f32 %v2540, 1.0
          %v2543 = vlog2.pop %v2541
          %v2544 = vmul.f32 %v2543, 0.6931472
          %v2545 = vlog2.pop %v2542
          %v2546 = vmul.f32 %v2545, 0.6931472
          %v2547 = vadd.f32 %v2531, %v2544
          %v2548 = vadd.f32 %v2532, %v2546
          %v2549 = vmax.f32 %v2525, 0.0
          %v2550 = vmax.f32 %v2528, 0.0
          %v2551 = vand.u32 2147483647, %v2525
          %v2552 = vand.u32 2147483647, %v2528
          %v2553 = vsub.f32 0.0, %v2551
          %v2554 = vsub.f32 0.0, %v2552
          %v2555 = vmul.f32 %v2553, 1.442695
          %v2556 = vpow.pop %v2555
          %v2557 = vmul.f32 %v2554, 1.442695
          %v2558 = vpow.pop %v2557
          %v2559 = vadd.f32 %v2556, 1.0
          %v2560 = vadd.f32 %v2558, 1.0
          %v2561 = vlog2.pop %v2559
          %v2562 = vmul.f32 %v2561, 0.6931472
          %v2563 = vlog2.pop %v2560
          %v2564 = vmul.f32 %v2563, 0.6931472
          %v2565 = vadd.f32 %v2549, %v2562
          %v2566 = vadd.f32 %v2550, %v2564
          %v2567 = vadd.f32 %v2547, %v2565
          %v2568 = vadd.f32 %v2548, %v2566
          %v2571 = vrot.slane %v2568, 7
          %vm2574 = vcmask 7175
          %2575 = vst.msk [vmem:[%s974 - $0x7] sm:$0x80] %vm2574, %v2567
          %vm2576 = vcmask 0
          %2577 = vst.msk [vmem:[%s974 + $0x1] sm:$0x1] %vm2576, %v2571
        $region136: #{tpu_custom_call.1} parent=95 // pred_fallthru
          _
        %p2578 = scmp.lt.s32.totalorder %s37, 0
        %s2579 = scalar_select %p2578, %s37, 0
        %s2580 = smul.addr %s2579, 2
        %s2581 = scalar_lea.vmem %s19, %s2580
        // Predicated region
        $region137: #{tpu_custom_call.1} parent=95 // pred_check
          %p2582 = pneg %p542
        $region138: #{tpu_custom_call.1} parent=95 // pred_check_branch
          %2584 = sbr.rel (%p2582) target = $region140
        $region139: #{tpu_custom_call.1} parent=95 // pred_region
          _
        $region140: #{tpu_custom_call.1} parent=95 // pred_fallthru
          _
        // Predicated region
        $region141: #{tpu_custom_call.1} parent=95 // pred_check
          %p2585 = pneg %p542
        $region142: #{tpu_custom_call.1} parent=95 // pred_check_branch
          %2587 = sbr.rel (%p2585) target = $region144
        $region143: #{tpu_custom_call.1} parent=95 // pred_region
          %p2588 = scmp.lt.s32.totalorder %s37, 0
          %s2589 = scalar_select %p2588, %s37, 0
          %s2590 = smul.addr %s2589, 2
          %s2591 = scalar_lea.vmem %s19, %s2590
        $region144: #{tpu_custom_call.1} parent=95 // pred_fallthru
          _
      $region96: #{tpu_custom_call.1} parent=5 // pred_fallthru
        _
      %p2592 = scmp.le.s32.totalorder 2, %s28
      // Predicated region
      $region145: #{tpu_custom_call.1} parent=5 // pred_check
        %p2593 = pneg %p2592
      $region146: #{tpu_custom_call.1} parent=5 // pred_check_branch
        %2595 = sbr.rel (%p2593) target = $region148
      $region147: #{tpu_custom_call.1} parent=5 // pred_region
        %s2596 = ssub.s32 %s28, 2
      $region148: #{tpu_custom_call.1} parent=5 // pred_fallthru
        _
    $region6: #{tpu_custom_call.1} parent=1 // loop_footer
      %s32 = sadd.s32 1, %s28
    $region7: #{tpu_custom_call.1} parent=1 // loop_footer_branch
      %27 = sbr.rel target = $region3
    $region8: #{tpu_custom_call.1} parent=1 // loop_exit
      _
    %2597 = vsyncpa [#allocation5], 1
    %s2598 = scalar_lea.sflag [#allocation5], 1
    %2599 = vsyncpa %s2598, 1
    %2600 = vsyncpa [#allocation7], 1
    %2601 = vsyncpa [#allocation10], 1

</llo_original>
